<compile_context>
chip_gen: v5e
topology: v5e:2x2
jax: 0.10.0
libtpu: 0.0.40
codegen_flags: <defaults>
</compile_context>

<pallas_src>
import functools
import math

import jax
import jax.numpy as jnp
from jax.experimental import pallas as pl
from jax.experimental.pallas import tpu as pltpu


# --------------------------------------------------------------------------- #
# helpers
# --------------------------------------------------------------------------- #
def _round_up(x, m):
    return ((x + m - 1) // m) * m


def _gelu_new(x):
    # GPT2 "gelu_new" (tanh approximation).
    return 0.5 * x * (1.0 + jnp.tanh(
        math.sqrt(2.0 / math.pi) * (x + 0.044715 * x * x * x)))


# --------------------------------------------------------------------------- #
# row-tiled linear (embeddings)
# --------------------------------------------------------------------------- #
def _linear_kernel(x_ref, w_ref, b_ref, o_ref, *, activation):
    x = x_ref[...].astype(jnp.bfloat16)
    y = jnp.dot(x, w_ref[...], preferred_element_type=jnp.float32)
    y = y + b_ref[...]
    if activation == "tanh":
        y = jnp.tanh(y)
    o_ref[...] = y.astype(o_ref.dtype)


def linear(x, w, b, activation=None, row_tile=256):
    """x: (M, K) @ w: (K, N) + b: (N,), row-tiled & pipelined over M."""
    M, K = x.shape
    N = w.shape[1]
    tm = min(row_tile, _round_up(M, 8))
    Mp = _round_up(M, tm)
    if Mp != M:
        x = jnp.pad(x, ((0, Mp - M), (0, 0)))
    out = pl.pallas_call(
        functools.partial(_linear_kernel, activation=activation),
        out_shape=jax.ShapeDtypeStruct((Mp, N), jnp.float32),
        grid=(Mp // tm,),
        in_specs=[
            pl.BlockSpec((tm, K), lambda i: (i, 0)),
            pl.BlockSpec((K, N), lambda i: (0, 0)),
            pl.BlockSpec((1, N), lambda i: (0, 0)),
        ],
        out_specs=pl.BlockSpec((tm, N), lambda i: (i, 0)),
        compiler_params=pltpu.CompilerParams(dimension_semantics=("parallel",)),
    )(x, w.astype(jnp.bfloat16), b.reshape(1, N))
    return out[:M]


# --------------------------------------------------------------------------- #
# fused final LayerNorm + prediction head (+ tanh)
# --------------------------------------------------------------------------- #
def _ln_linear_kernel(x_ref, g_ref, be_ref, w_ref, b_ref, o_ref, *, activation):
    x = x_ref[...].astype(jnp.float32)
    mu = jnp.mean(x, axis=-1, keepdims=True)
    var = jnp.mean((x - mu) ** 2, axis=-1, keepdims=True)
    xn = (x - mu) * jax.lax.rsqrt(var + 1e-5)
    xn = xn * g_ref[...] + be_ref[...]
    y = jnp.dot(xn.astype(jnp.bfloat16), w_ref[...],
                preferred_element_type=jnp.float32) + b_ref[...]
    if activation == "tanh":
        y = jnp.tanh(y)
    o_ref[...] = y.astype(o_ref.dtype)


def ln_linear(x, g, be, w, b, activation=None, row_tile=256):
    M, H = x.shape
    N = w.shape[1]
    tm = min(row_tile, _round_up(M, 8))
    Mp = _round_up(M, tm)
    if Mp != M:
        x = jnp.pad(x, ((0, Mp - M), (0, 0)))
    out = pl.pallas_call(
        functools.partial(_ln_linear_kernel, activation=activation),
        out_shape=jax.ShapeDtypeStruct((Mp, N), jnp.float32),
        grid=(Mp // tm,),
        in_specs=[
            pl.BlockSpec((tm, H), lambda i: (i, 0)),
            pl.BlockSpec((1, H), lambda i: (0, 0)),
            pl.BlockSpec((1, H), lambda i: (0, 0)),
            pl.BlockSpec((H, N), lambda i: (0, 0)),
            pl.BlockSpec((1, N), lambda i: (0, 0)),
        ],
        out_specs=pl.BlockSpec((tm, N), lambda i: (i, 0)),
        compiler_params=pltpu.CompilerParams(dimension_semantics=("parallel",)),
    )(x, g.reshape(1, H), be.reshape(1, H), w.astype(jnp.bfloat16),
      b.reshape(1, N))
    return out[:M]


# --------------------------------------------------------------------------- #
# fused attention block:  LN1 -> QKV -> causal MHA -> out-proj -> residual
# --------------------------------------------------------------------------- #
def _attn_block_kernel(h_ref, lng_ref, lnb_ref, wqkv_ref, bqkv_ref,
                       wproj_ref, bproj_ref, o_ref, *, n_head, head_dim, scale):
    h = h_ref[0].astype(jnp.float32)                       # (T, H)
    T, H = h.shape
    dh = head_dim

    # LayerNorm 1 (f32 statistics)
    mu = jnp.mean(h, axis=-1, keepdims=True)
    var = jnp.mean((h - mu) ** 2, axis=-1, keepdims=True)
    x = (h - mu) * jax.lax.rsqrt(var + 1e-5)
    x = x * lng_ref[...] + lnb_ref[...]

    # QKV projection (bf16 MXU, f32 accumulation)
    qkv = jnp.dot(x.astype(jnp.bfloat16), wqkv_ref[...],
                  preferred_element_type=jnp.float32) + bqkv_ref[...]  # (T, 3H)

    # in-kernel causal mask — no (B, T, T) bias tensor DMA'd from HBM
    row = jax.lax.broadcasted_iota(jnp.int32, (T, T), 0)
    col = jax.lax.broadcasted_iota(jnp.int32, (T, T), 1)
    causal = jnp.where(row >= col, 0.0, -1e9).astype(jnp.float32)

    # TODO(synk): for long sequences convert this to a flash-style KV-tiled
    # loop (online softmax) instead of materializing the (T, T) score matrix.
    acc = jnp.zeros((T, H), jnp.float32)
    for hd in range(n_head):                               # static unroll
        # scale Q (T, dh) instead of scores (T, T): fewer VPU ops
        q = qkv[:, hd * dh:(hd + 1) * dh] * scale
        k = qkv[:, H + hd * dh:H + (hd + 1) * dh]
        v = qkv[:, 2 * H + hd * dh:2 * H + (hd + 1) * dh]
        s = jnp.dot(q.astype(jnp.bfloat16), k.astype(jnp.bfloat16).T,
                    preferred_element_type=jnp.float32) + causal
        m = jnp.max(s, axis=-1, keepdims=True)
        p = jnp.exp(s - m)
        p = p * pl.reciprocal(jnp.sum(p, axis=-1, keepdims=True), approx=True)
        a_h = jnp.dot(p.astype(jnp.bfloat16), v.astype(jnp.bfloat16),
                      preferred_element_type=jnp.float32)  # (T, dh)
        # head-wise slice of the output projection:  concat(a_h) @ Wp
        acc = acc + jnp.dot(a_h.astype(jnp.bfloat16),
                            wproj_ref[hd * dh:(hd + 1) * dh, :],
                            preferred_element_type=jnp.float32)

    o_ref[0] = (h + acc + bproj_ref[...]).astype(o_ref.dtype)


def attn_block(h, p, n_head):
    B, T, H = h.shape
    dh = H // n_head
    kern = functools.partial(_attn_block_kernel, n_head=n_head, head_dim=dh,
                             scale=1.0 / math.sqrt(dh))
    return pl.pallas_call(
        kern,
        out_shape=jax.ShapeDtypeStruct((B, T, H), jnp.float32),
        grid=(B,),
        in_specs=[
            pl.BlockSpec((1, T, H), lambda b: (b, 0, 0)),
            pl.BlockSpec((1, H), lambda b: (0, 0)),
            pl.BlockSpec((1, H), lambda b: (0, 0)),
            pl.BlockSpec((H, 3 * H), lambda b: (0, 0)),
            pl.BlockSpec((1, 3 * H), lambda b: (0, 0)),
            pl.BlockSpec((H, H), lambda b: (0, 0)),
            pl.BlockSpec((1, H), lambda b: (0, 0)),
        ],
        out_specs=pl.BlockSpec((1, T, H), lambda b: (b, 0, 0)),
        compiler_params=pltpu.CompilerParams(dimension_semantics=("parallel",)),
    )(h, p["ln1_g"].reshape(1, H), p["ln1_b"].reshape(1, H),
      p["attn_w"].astype(jnp.bfloat16), p["attn_b"].reshape(1, 3 * H),
      p["proj_w"].astype(jnp.bfloat16), p["proj_b"].reshape(1, H))


# --------------------------------------------------------------------------- #
# fused MoE block:  LN2 -> router softmax -> experts (streamed) -> residual
# grid = (token tiles [parallel], experts [arbitrary, last])
# --------------------------------------------------------------------------- #
def _moe_kernel(h_ref, lng_ref, lnb_ref, wr_ref, br_ref,
                w1_ref, b1_ref, w2_ref, b2_ref,
                o_ref, probs_ref,
                x_sc, probs_sc, acc_sc, *, tile_rows, n_valid_rows):
    i = pl.program_id(0)
    e = pl.program_id(1)
    n_e = pl.num_programs(1)

    @pl.when(e == 0)
    def _():
        h = h_ref[...].astype(jnp.float32)                 # (tm, H)
        mu = jnp.mean(h, axis=-1, keepdims=True)
        var = jnp.mean((h - mu) ** 2, axis=-1, keepdims=True)
        x = (h - mu) * jax.lax.rsqrt(var + 1e-5)
        x = x * lng_ref[...] + lnb_ref[...]
        x_sc[...] = x
        logits = jnp.dot(x.astype(jnp.bfloat16), wr_ref[...],
                         preferred_element_type=jnp.float32) + br_ref[...]
        mx = jnp.max(logits, axis=-1, keepdims=True)
        ex = jnp.exp(logits - mx)
        probs_sc[...] = ex * pl.reciprocal(
            jnp.sum(ex, axis=-1, keepdims=True), approx=True)
        acc_sc[...] = jnp.zeros_like(acc_sc)

    # expert `e` (its weights are the only expert weights resident in VMEM)
    xb = x_sc[...].astype(jnp.bfloat16)
    hm = jnp.dot(xb, w1_ref[0], preferred_element_type=jnp.float32) + b1_ref[0]
    hm = _gelu_new(hm)
    y = jnp.dot(hm.astype(jnp.bfloat16), w2_ref[0],
                preferred_element_type=jnp.float32) + b2_ref[0]
    # select column `e` of the router probabilities with a one-hot reduce
    cidx = jax.lax.broadcasted_iota(jnp.int32, probs_sc.shape, 1)
    pe = jnp.sum(jnp.where(cidx == e, probs_sc[...], 0.0),
                 axis=-1, keepdims=True)
    acc_sc[...] = acc_sc[...] + pe * y

    @pl.when(e == n_e - 1)
    def _():
        o_ref[...] = (h_ref[...].astype(jnp.float32)
                      + acc_sc[...]).astype(o_ref.dtype)
        # zero out padded rows so the balance-loss statistics stay exact
        ridx = i * tile_rows + jax.lax.broadcasted_iota(
            jnp.int32, probs_sc.shape, 0)
        probs_ref[...] = jnp.where(ridx < n_valid_rows, probs_sc[...], 0.0)


def moe_block(h, p, row_tile=256):
    """Soft mixture-of-experts FFN sub-block with fused LN2 + residual."""
    B, T, H = h.shape
    M = B * T
    E = p["router_w"].shape[1]
    F = p["w1"].shape[2]
    tm = min(row_tile, _round_up(M, 8))
    Mp = _round_up(M, tm)
    x = h.reshape(M, H)
    if Mp != M:
        x = jnp.pad(x, ((0, Mp - M), (0, 0)))

    kern = functools.partial(_moe_kernel, tile_rows=tm, n_valid_rows=M)
    out, probs = pl.pallas_call(
        kern,
        out_shape=(jax.ShapeDtypeStruct((Mp, H), jnp.float32),
                   jax.ShapeDtypeStruct((Mp, E), jnp.float32)),
        grid=(Mp // tm, E),
        in_specs=[
            pl.BlockSpec((tm, H), lambda i, e: (i, 0)),        # h
            pl.BlockSpec((1, H), lambda i, e: (0, 0)),         # ln2_g
            pl.BlockSpec((1, H), lambda i, e: (0, 0)),         # ln2_b
            pl.BlockSpec((H, E), lambda i, e: (0, 0)),         # router_w
            pl.BlockSpec((1, E), lambda i, e: (0, 0)),         # router_b
            pl.BlockSpec((1, H, F), lambda i, e: (e, 0, 0)),   # w1 (per expert)
            pl.BlockSpec((1, 1, F), lambda i, e: (e, 0, 0)),   # b1
            pl.BlockSpec((1, F, H), lambda i, e: (e, 0, 0)),   # w2
            pl.BlockSpec((1, 1, H), lambda i, e: (e, 0, 0)),   # b2
        ],
        out_specs=(pl.BlockSpec((tm, H), lambda i, e: (i, 0)),
                   pl.BlockSpec((tm, E), lambda i, e: (i, 0))),
        scratch_shapes=[pltpu.VMEM((tm, H), jnp.float32),      # post-LN x
                        pltpu.VMEM((tm, E), jnp.float32),      # router probs
                        pltpu.VMEM((tm, H), jnp.float32)],     # accumulator
        compiler_params=pltpu.CompilerParams(
            dimension_semantics=("parallel", "arbitrary")),
    )(x, p["ln2_g"].reshape(1, H), p["ln2_b"].reshape(1, H),
      p["router_w"].astype(jnp.bfloat16), p["router_b"].reshape(1, E),
      p["w1"].astype(jnp.bfloat16), p["b1"].reshape(E, 1, F),
      p["w2"].astype(jnp.bfloat16), p["b2"].reshape(E, 1, H))

    out = out[:M].reshape(B, T, H)
    # TODO(synk): exact GPT2MOEModel balance-loss formula is not part of this
    # module; a Switch-style load-balance loss on router probabilities is used.
    mean_p = jnp.sum(probs, axis=0) / M
    balance = E * jnp.sum(mean_p * mean_p)
    return out, balance


# --------------------------------------------------------------------------- #
# Model glue (plain JAX): GPT2-MoE block chain + DPT forward
# --------------------------------------------------------------------------- #
def gpt2_moe_block(h, p, n_head):
    h = attn_block(h, p, n_head)          # LN1 + MHA + proj + residual
    h, balance = moe_block(h, p)          # LN2 + MoE FFN + residual
    return h, balance


def dpt_forward_moe(params, state_seq, action_seq, reward_seq, query_states,
                    *, n_head):
    B, S = state_seq.shape[0], state_seq.shape[1]
    H = params["embed_state_w"].shape[1]
    A = params["pred_w"].shape[1]

    # timestep embeddings (timesteps default: arange(prompt_horizon+1))
    t_emb = params["embed_timestep"][jnp.arange(S + 1)]            # (S+1, H)

    # query-state + state embeddings share weights -> one fused/tiled call
    qs_and_states = jnp.concatenate([query_states, state_seq], axis=1)
    se = linear(qs_and_states.reshape(B * (S + 1), -1),
                params["embed_state_w"], params["embed_state_b"]
                ).reshape(B, S + 1, H)
    qs = se[:, :1] + t_emb[:1][None]
    st = se[:, 1:] + t_emb[1:][None]
    ac = linear(action_seq.reshape(B * S, -1),
                params["embed_action_w"], params["embed_action_b"]
                ).reshape(B, S, H) + t_emb[1:][None]
    rw = linear(reward_seq.reshape(B * S, 1),
                params["embed_return_w"], params["embed_return_b"]
                ).reshape(B, S, H) + t_emb[1:][None]

    # interleave (s, a, r) per timestep, prepend the query-state token
    stacked = jnp.stack([st, ac, rw], axis=1).transpose(0, 2, 1, 3)
    stacked = stacked.reshape(B, 3 * S, H)
    inputs = jnp.concatenate([qs, stacked], axis=1)                # (B, T, H)
    T = 3 * S + 1

    # GPT2 position embeddings + (identity) embedding dropout
    h = inputs + params["wpe"][:T][None]
    # NOTE: causal mask is generated inside the attention kernel; the default
    # all-ones attention_mask contributes no additive bias.

    balance_loss = jnp.float32(0.0)
    for layer_p in params["layers"]:
        h, bl = gpt2_moe_block(h, layer_p, n_head)
        balance_loss = balance_loss + bl

    # gather hidden states at the "state" token positions: [0, 1, 4, 7, ...]
    state_ids = jnp.array([0] + list(range(1, 3 * S + 1, 3)), jnp.int32)
    x = h[:, state_ids]                                            # (B, S+1, H)

    # final LayerNorm fused with the prediction head (+ tanh); ln_f is per-row
    # so applying it only to the gathered rows is equivalent for the output.
    preds = ln_linear(x.reshape(B * (S + 1), H),
                      params["ln_f_g"], params["ln_f_b"],
                      params["pred_w"], params["pred_b"],
                      activation="tanh").reshape(B, S + 1, A)

    # TODO(synk): GPT2MOEModel's contrastive routing loss depends on an external
    # target-network implementation that is not part of this module; returned as 0.
    contrastive_loss = jnp.float32(0.0)
    return preds, balance_loss, contrastive_loss


# --------------------------------------------------------------------------- #
# Deterministic parameter initialization
# --------------------------------------------------------------------------- #
def init_params(key, state_dim, action_dim, cfg):
    H = cfg["hidden_dim"]
    L = cfg["n_layer"]
    F = cfg["ff_dim"]
    E = cfg["moe_config"]["num_experts"]
    P = cfg["prompt_horizon"]
    n_pos = 3 * (1 + P)

    keys = iter(jax.random.split(key, 16 + 8 * L))

    def w(shape, scale=0.02):
        return (scale * jax.random.normal(next(keys), shape)).astype(jnp.float32)

    params = dict(
        embed_timestep=w((P + 1, H)),
        embed_state_w=w((state_dim, H)), embed_state_b=jnp.zeros((H,), jnp.float32),
        embed_action_w=w((action_dim, H)), embed_action_b=jnp.zeros((H,), jnp.float32),
        embed_return_w=w((1, H)), embed_return_b=jnp.zeros((H,), jnp.float32),
        wpe=w((n_pos, H)),
        ln_f_g=jnp.ones((H,), jnp.float32), ln_f_b=jnp.zeros((H,), jnp.float32),
        pred_w=w((H, action_dim)), pred_b=jnp.zeros((action_dim,), jnp.float32),
        layers=[],
    )
    for _ in range(L):
        params["layers"].append(dict(
            ln1_g=jnp.ones((H,), jnp.float32), ln1_b=jnp.zeros((H,), jnp.float32),
            attn_w=w((H, 3 * H)), attn_b=jnp.zeros((3 * H,), jnp.float32),
            proj_w=w((H, H)), proj_b=jnp.zeros((H,), jnp.float32),
            ln2_g=jnp.ones((H,), jnp.float32), ln2_b=jnp.zeros((H,), jnp.float32),
            router_w=w((H, E)), router_b=jnp.zeros((E,), jnp.float32),
            w1=w((E, H, F)), b1=jnp.zeros((E, F), jnp.float32),
            w2=w((E, F, H)), b2=jnp.zeros((E, H), jnp.float32),
        ))
    return params


# --------------------------------------------------------------------------- #
if __name__ == "__main__":
    config = dict(
        hidden_dim=32, n_layer=2, n_head=2, ff_dim=64,
        ff_pdrop=0.1, attn_pdrop=0.1, emb_pdrop=0.1, ff_moe_pdrop=0.1,
        prompt_horizon=8, activation_function="gelu_new",
        moe_config=dict(num_experts=4),
    )
    state_dim, action_dim, batch = 5, 3, 2
    S = config["prompt_horizon"]

    key = jax.random.PRNGKey(0)
    pkey, k1, k2, k3, k4 = jax.random.split(key, 5)
    params = init_params(pkey, state_dim, action_dim, config)

    state_seq = jax.random.normal(k1, (batch, S, state_dim), jnp.float32)
    action_seq = jax.random.normal(k2, (batch, S, action_dim), jnp.float32)
    reward_seq = jax.random.normal(k3, (batch, S, 1), jnp.float32)
    query_states = jax.random.normal(k4, (batch, 1, state_dim), jnp.float32)

    fwd = jax.jit(functools.partial(dpt_forward_moe, n_head=config["n_head"]))
    preds, balance_loss, contrastive_loss = fwd(
        params, state_seq, action_seq, reward_seq, query_states)
    jax.block_until_ready((preds, balance_loss, contrastive_loss))

    assert preds.shape == (batch, S + 1, action_dim)
    assert bool(jnp.all(jnp.isfinite(preds)))
    assert bool(jnp.isfinite(balance_loss))
    print("KERNEL_OK")
</pallas_src>

<mosaic_0001>
module attributes {stable_mosaic.version = 11 : i64} {
  func.func @_linear_kernel(%arg0: i32, %arg1: memref<24x5xf32, #tpu.memory_space<vmem>>, %arg2: memref<5x32xbf16, #tpu.memory_space<vmem>>, %arg3: memref<1x32xf32, #tpu.memory_space<vmem>>, %arg4: memref<24x32xf32, #tpu.memory_space<vmem>>) attributes {dimension_semantics = [#tpu.dimension_semantics<parallel>], iteration_bounds = array<i64: 1>, scalar_prefetch = 0 : i64, scratch_operands = 0 : i64, tpu.core_type = #tpu.core_type<tc>, window_params = [{transform_indices = @transform_0, window_bounds = array<i64: 24, 5>}, {pipeline_mode = #tpu.pipeline_mode<synchronous>, transform_indices = @transform_1, window_bounds = array<i64: 5, 32>}, {pipeline_mode = #tpu.pipeline_mode<synchronous>, transform_indices = @transform_2, window_bounds = array<i64: 1, 32>}, {transform_indices = @transform_3, window_bounds = array<i64: 24, 32>}]} {
    %c0 = arith.constant 0 : index
    %c0_0 = arith.constant 0 : index
    %0 = vector.load %arg1[%c0, %c0_0] : memref<24x5xf32, #tpu.memory_space<vmem>>, vector<24x5xf32>
    %1 = arith.truncf %0 : vector<24x5xf32> to vector<24x5xbf16>
    %c0_1 = arith.constant 0 : index
    %c0_2 = arith.constant 0 : index
    %2 = vector.load %arg2[%c0_1, %c0_2] : memref<5x32xbf16, #tpu.memory_space<vmem>>, vector<5x32xbf16>
    %cst = arith.constant dense<0.000000e+00> : vector<24x32xf32>
    %3 = tpu.matmul %1, %2, %cst {dimension_numbers = #tpu.dot_dimension_numbers<[1], [0], [0], [1], [0, 0, 1, 1], [], []>} : vector<24x5xbf16>, vector<5x32xbf16>, vector<24x32xf32> -> vector<24x32xf32>
    %c0_3 = arith.constant 0 : index
    %c0_4 = arith.constant 0 : index
    %4 = vector.load %arg3[%c0_3, %c0_4] : memref<1x32xf32, #tpu.memory_space<vmem>>, vector<1x32xf32>
    %5 = vector.broadcast %4 : vector<1x32xf32> to vector<24x32xf32>
    %6 = arith.addf %3, %5 : vector<24x32xf32>
    %c0_5 = arith.constant 0 : index
    %c0_6 = arith.constant 0 : index
    %7 = vector.load %arg4[%c0_5, %c0_6] : memref<24x32xf32, #tpu.memory_space<vmem>>, vector<24x32xf32>
    tpu.vector_store %arg4[%c0_5, %c0_6], %6 {strides = array<i32>} : memref<24x32xf32, #tpu.memory_space<vmem>>, vector<24x32xf32>,
    return
  }
  func.func @transform_0(%arg0: i32) -> (i32, i32) {
    %c0_i32 = arith.constant 0 : i32
    %c0_i32_0 = arith.constant 0 : i32
    return %arg0, %c0_i32 : i32, i32
  }
  func.func @transform_1(%arg0: i32) -> (i32, i32) {
    %c0_i32 = arith.constant 0 : i32
    %c0_i32_0 = arith.constant 0 : i32
    %c0_i32_1 = arith.constant 0 : i32
    return %c0_i32, %c0_i32_0 : i32, i32
  }
  func.func @transform_2(%arg0: i32) -> (i32, i32) {
    %c0_i32 = arith.constant 0 : i32
    %c0_i32_0 = arith.constant 0 : i32
    %c0_i32_1 = arith.constant 0 : i32
    return %c0_i32, %c0_i32_0 : i32, i32
  }
  func.func @transform_3(%arg0: i32) -> (i32, i32) {
    %c0_i32 = arith.constant 0 : i32
    %c0_i32_0 = arith.constant 0 : i32
    return %arg0, %c0_i32 : i32, i32
  }
}

module attributes {stable_mosaic.version = 11 : i64} {
  func.func @_linear_kernel(%arg0: i32, %arg1: memref<16x1xf32, #tpu.memory_space<vmem>>, %arg2: memref<1x32xbf16, #tpu.memory_space<vmem>>, %arg3: memref<1x32xf32, #tpu.memory_space<vmem>>, %arg4: memref<16x32xf32, #tpu.memory_space<vmem>>) attributes {dimension_semantics = [#tpu.dimension_semantics<parallel>], iteration_bounds = array<i64: 1>, scalar_prefetch = 0 : i64, scratch_operands = 0 : i64, tpu.core_type = #tpu.core_type<tc>, window_params = [{transform_indices = @transform_0, window_bounds = array<i64: 16, 1>}, {pipeline_mode = #tpu.pipeline_mode<synchronous>, transform_indices = @transform_1, window_bounds = array<i64: 1, 32>}, {pipeline_mode = #tpu.pipeline_mode<synchronous>, transform_indices = @transform_2, window_bounds = array<i64: 1, 32>}, {transform_indices = @transform_3, window_bounds = array<i64: 16, 32>}]} {
    %c0 = arith.constant 0 : index
    %c0_0 = arith.constant 0 : index
    %0 = vector.load %arg1[%c0, %c0_0] : memref<16x1xf32, #tpu.memory_space<vmem>>, vector<16x1xf32>
    %1 = arith.truncf %0 : vector<16x1xf32> to vector<16x1xbf16>
    %c0_1 = arith.constant 0 : index
    %c0_2 = arith.constant 0 : index
    %2 = vector.load %arg2[%c0_1, %c0_2] : memref<1x32xbf16, #tpu.memory_space<vmem>>, vector<1x32xbf16>
    %cst = arith.constant dense<0.000000e+00> : vector<16x32xf32>
    %3 = tpu.matmul %1, %2, %cst {dimension_numbers = #tpu.dot_dimension_numbers<[1], [0], [0], [1], [0, 0, 1, 1], [], []>} : vector<16x1xbf16>, vector<1x32xbf16>, vector<16x32xf32> -> vector<16x32xf32>
    %c0_3 = arith.constant 0 : index
    %c0_4 = arith.constant 0 : index
    %4 = vector.load %arg3[%c0_3, %c0_4] : memref<1x32xf32, #tpu.memory_space<vmem>>, vector<1x32xf32>
    %5 = vector.broadcast %4 : vector<1x32xf32> to vector<16x32xf32>
    %6 = arith.addf %3, %5 : vector<16x32xf32>
    %c0_5 = arith.constant 0 : index
    %c0_6 = arith.constant 0 : index
    %7 = vector.load %arg4[%c0_5, %c0_6] : memref<16x32xf32, #tpu.memory_space<vmem>>, vector<16x32xf32>
    tpu.vector_store %arg4[%c0_5, %c0_6], %6 {strides = array<i32>} : memref<16x32xf32, #tpu.memory_space<vmem>>, vector<16x32xf32>,
    return
  }
  func.func @transform_0(%arg0: i32) -> (i32, i32) {
    %c0_i32 = arith.constant 0 : i32
    %c0_i32_0 = arith.constant 0 : i32
    return %arg0, %c0_i32 : i32, i32
  }
  func.func @transform_1(%arg0: i32) -> (i32, i32) {
    %c0_i32 = arith.constant 0 : i32
    %c0_i32_0 = arith.constant 0 : i32
    %c0_i32_1 = arith.constant 0 : i32
    return %c0_i32, %c0_i32_0 : i32, i32
  }
  func.func @transform_2(%arg0: i32) -> (i32, i32) {
    %c0_i32 = arith.constant 0 : i32
    %c0_i32_0 = arith.constant 0 : i32
    %c0_i32_1 = arith.constant 0 : i32
    return %c0_i32, %c0_i32_0 : i32, i32
  }
  func.func @transform_3(%arg0: i32) -> (i32, i32) {
    %c0_i32 = arith.constant 0 : i32
    %c0_i32_0 = arith.constant 0 : i32
    return %arg0, %c0_i32 : i32, i32
  }
}

module attributes {stable_mosaic.version = 11 : i64} {
  func.func @_linear_kernel(%arg0: i32, %arg1: memref<16x3xf32, #tpu.memory_space<vmem>>, %arg2: memref<3x32xbf16, #tpu.memory_space<vmem>>, %arg3: memref<1x32xf32, #tpu.memory_space<vmem>>, %arg4: memref<16x32xf32, #tpu.memory_space<vmem>>) attributes {dimension_semantics = [#tpu.dimension_semantics<parallel>], iteration_bounds = array<i64: 1>, scalar_prefetch = 0 : i64, scratch_operands = 0 : i64, tpu.core_type = #tpu.core_type<tc>, window_params = [{transform_indices = @transform_0, window_bounds = array<i64: 16, 3>}, {pipeline_mode = #tpu.pipeline_mode<synchronous>, transform_indices = @transform_1, window_bounds = array<i64: 3, 32>}, {pipeline_mode = #tpu.pipeline_mode<synchronous>, transform_indices = @transform_2, window_bounds = array<i64: 1, 32>}, {transform_indices = @transform_3, window_bounds = array<i64: 16, 32>}]} {
    %c0 = arith.constant 0 : index
    %c0_0 = arith.constant 0 : index
    %0 = vector.load %arg1[%c0, %c0_0] : memref<16x3xf32, #tpu.memory_space<vmem>>, vector<16x3xf32>
    %1 = arith.truncf %0 : vector<16x3xf32> to vector<16x3xbf16>
    %c0_1 = arith.constant 0 : index
    %c0_2 = arith.constant 0 : index
    %2 = vector.load %arg2[%c0_1, %c0_2] : memref<3x32xbf16, #tpu.memory_space<vmem>>, vector<3x32xbf16>
    %cst = arith.constant dense<0.000000e+00> : vector<16x32xf32>
    %3 = tpu.matmul %1, %2, %cst {dimension_numbers = #tpu.dot_dimension_numbers<[1], [0], [0], [1], [0, 0, 1, 1], [], []>} : vector<16x3xbf16>, vector<3x32xbf16>, vector<16x32xf32> -> vector<16x32xf32>
    %c0_3 = arith.constant 0 : index
    %c0_4 = arith.constant 0 : index
    %4 = vector.load %arg3[%c0_3, %c0_4] : memref<1x32xf32, #tpu.memory_space<vmem>>, vector<1x32xf32>
    %5 = vector.broadcast %4 : vector<1x32xf32> to vector<16x32xf32>
    %6 = arith.addf %3, %5 : vector<16x32xf32>
    %c0_5 = arith.constant 0 : index
    %c0_6 = arith.constant 0 : index
    %7 = vector.load %arg4[%c0_5, %c0_6] : memref<16x32xf32, #tpu.memory_space<vmem>>, vector<16x32xf32>
    tpu.vector_store %arg4[%c0_5, %c0_6], %6 {strides = array<i32>} : memref<16x32xf32, #tpu.memory_space<vmem>>, vector<16x32xf32>,
    return
  }
  func.func @transform_0(%arg0: i32) -> (i32, i32) {
    %c0_i32 = arith.constant 0 : i32
    %c0_i32_0 = arith.constant 0 : i32
    return %arg0, %c0_i32 : i32, i32
  }
  func.func @transform_1(%arg0: i32) -> (i32, i32) {
    %c0_i32 = arith.constant 0 : i32
    %c0_i32_0 = arith.constant 0 : i32
    %c0_i32_1 = arith.constant 0 : i32
    return %c0_i32, %c0_i32_0 : i32, i32
  }
  func.func @transform_2(%arg0: i32) -> (i32, i32) {
    %c0_i32 = arith.constant 0 : i32
    %c0_i32_0 = arith.constant 0 : i32
    %c0_i32_1 = arith.constant 0 : i32
    return %c0_i32, %c0_i32_0 : i32, i32
  }
  func.func @transform_3(%arg0: i32) -> (i32, i32) {
    %c0_i32 = arith.constant 0 : i32
    %c0_i32_0 = arith.constant 0 : i32
    return %arg0, %c0_i32 : i32, i32
  }
}

module attributes {stable_mosaic.version = 11 : i64} {
  func.func @_attn_block_kernel(%arg0: i32, %arg1: memref<1x25x32xf32, #tpu.memory_space<vmem>>, %arg2: memref<1x32xf32, #tpu.memory_space<vmem>>, %arg3: memref<1x32xf32, #tpu.memory_space<vmem>>, %arg4: memref<32x96xbf16, #tpu.memory_space<vmem>>, %arg5: memref<1x96xf32, #tpu.memory_space<vmem>>, %arg6: memref<32x32xbf16, #tpu.memory_space<vmem>>, %arg7: memref<1x32xf32, #tpu.memory_space<vmem>>, %arg8: memref<1x25x32xf32, #tpu.memory_space<vmem>>) attributes {dimension_semantics = [#tpu.dimension_semantics<parallel>], iteration_bounds = array<i64: 2>, scalar_prefetch = 0 : i64, scratch_operands = 0 : i64, tpu.core_type = #tpu.core_type<tc>, window_params = [{transform_indices = @transform_0, window_bounds = array<i64: 1, 25, 32>}, {pipeline_mode = #tpu.pipeline_mode<synchronous>, transform_indices = @transform_1, window_bounds = array<i64: 1, 32>}, {pipeline_mode = #tpu.pipeline_mode<synchronous>, transform_indices = @transform_2, window_bounds = array<i64: 1, 32>}, {pipeline_mode = #tpu.pipeline_mode<synchronous>, transform_indices = @transform_3, window_bounds = array<i64: 32, 96>}, {pipeline_mode = #tpu.pipeline_mode<synchronous>, transform_indices = @transform_4, window_bounds = array<i64: 1, 96>}, {pipeline_mode = #tpu.pipeline_mode<synchronous>, transform_indices = @transform_5, window_bounds = array<i64: 32, 32>}, {pipeline_mode = #tpu.pipeline_mode<synchronous>, transform_indices = @transform_6, window_bounds = array<i64: 1, 32>}, {transform_indices = @transform_7, window_bounds = array<i64: 1, 25, 32>}]} {
    %c0 = arith.constant 0 : index
    %c0_0 = arith.constant 0 : index
    %c0_1 = arith.constant 0 : index
    %0 = vector.load %arg1[%c0, %c0_0, %c0_1] : memref<1x25x32xf32, #tpu.memory_space<vmem>>, vector<1x25x32xf32>
    %1 = vector.shape_cast %0 : vector<1x25x32xf32> to vector<25x32xf32>
    %cst = arith.constant dense<0.000000e+00> : vector<25xf32>
    %2 = vector.multi_reduction <add>, %1, %cst [1] : vector<25x32xf32> to vector<25xf32>
    %3 = vector.shape_cast %2 : vector<25xf32> to vector<25x1xf32>
    %cst_2 = arith.constant 3.200000e+01 : f32
    %4 = vector.broadcast %cst_2 : f32 to vector<25x1xf32>
    %5 = arith.divf %3, %4 : vector<25x1xf32>
    %6 = vector.broadcast %5 : vector<25x1xf32> to vector<25x32xf32>
    %7 = arith.subf %1, %6 : vector<25x32xf32>
    %8 = arith.mulf %7, %7 : vector<25x32xf32>
    %cst_3 = arith.constant dense<0.000000e+00> : vector<25xf32>
    %9 = vector.multi_reduction <add>, %8, %cst_3 [1] : vector<25x32xf32> to vector<25xf32>
    %10 = vector.shape_cast %9 : vector<25xf32> to vector<25x1xf32>
    %cst_4 = arith.constant 3.200000e+01 : f32
    %11 = vector.broadcast %cst_4 : f32 to vector<25x1xf32>
    %12 = arith.divf %10, %11 : vector<25x1xf32>
    %13 = vector.broadcast %5 : vector<25x1xf32> to vector<25x32xf32>
    %14 = arith.subf %1, %13 : vector<25x32xf32>
    %cst_5 = arith.constant 9.99999974E-6 : f32
    %15 = vector.broadcast %cst_5 : f32 to vector<25x1xf32>
    %16 = arith.addf %12, %15 : vector<25x1xf32>
    %17 = math.rsqrt %16 : vector<25x1xf32>
    %18 = vector.broadcast %17 : vector<25x1xf32> to vector<25x32xf32>
    %19 = arith.mulf %14, %18 : vector<25x32xf32>
    %c0_6 = arith.constant 0 : index
    %c0_7 = arith.constant 0 : index
    %20 = vector.load %arg2[%c0_6, %c0_7] : memref<1x32xf32, #tpu.memory_space<vmem>>, vector<1x32xf32>
    %21 = vector.broadcast %20 : vector<1x32xf32> to vector<25x32xf32>
    %22 = arith.mulf %19, %21 : vector<25x32xf32>
    %c0_8 = arith.constant 0 : index
    %c0_9 = arith.constant 0 : index
    %23 = vector.load %arg3[%c0_8, %c0_9] : memref<1x32xf32, #tpu.memory_space<vmem>>, vector<1x32xf32>
    %24 = vector.broadcast %23 : vector<1x32xf32> to vector<25x32xf32>
    %25 = arith.addf %22, %24 : vector<25x32xf32>
    %26 = arith.truncf %25 : vector<25x32xf32> to vector<25x32xbf16>
    %c0_10 = arith.constant 0 : index
    %c0_11 = arith.constant 0 : index
    %27 = vector.load %arg4[%c0_10, %c0_11] : memref<32x96xbf16, #tpu.memory_space<vmem>>, vector<32x96xbf16>
    %cst_12 = arith.constant dense<0.000000e+00> : vector<25x96xf32>
    %28 = tpu.matmul %26, %27, %cst_12 {dimension_numbers = #tpu.dot_dimension_numbers<[1], [0], [0], [1], [0, 0, 1, 1], [], []>} : vector<25x32xbf16>, vector<32x96xbf16>, vector<25x96xf32> -> vector<25x96xf32>
    %c0_13 = arith.constant 0 : index
    %c0_14 = arith.constant 0 : index
    %29 = vector.load %arg5[%c0_13, %c0_14] : memref<1x96xf32, #tpu.memory_space<vmem>>, vector<1x96xf32>
    %30 = vector.broadcast %29 : vector<1x96xf32> to vector<25x96xf32>
    %31 = arith.addf %28, %30 : vector<25x96xf32>
    %32 = tpu.iota {dimensions = array<i32: 0>} : vector<25x25xi32>
    %33 = tpu.iota {dimensions = array<i32: 1>} : vector<25x25xi32>
    %34 = arith.cmpi sge, %32, %33 : vector<25x25xi32>
    %cst_15 = arith.constant 0.000000e+00 : f32
    %cst_16 = arith.constant -1.000000e+09 : f32
    %35 = vector.broadcast %cst_15 : f32 to vector<25x25xf32>
    %36 = vector.broadcast %cst_16 : f32 to vector<25x25xf32>
    %37 = arith.select %34, %35, %36 : vector<25x25xi1>, vector<25x25xf32>
    %cst_17 = arith.constant 0.000000e+00 : f32
    %38 = vector.broadcast %cst_17 : f32 to vector<25x32xf32>
    %39 = vector.extract_strided_slice %31 {offsets = [0, 0], sizes = [25, 16], strides = [1, 1]} : vector<25x96xf32> to vector<25x16xf32>
    %cst_18 = arith.constant 2.500000e-01 : f32
    %40 = vector.broadcast %cst_18 : f32 to vector<25x16xf32>
    %41 = arith.mulf %39, %40 : vector<25x16xf32>
    %42 = vector.extract_strided_slice %31 {offsets = [0, 32], sizes = [25, 16], strides = [1, 1]} : vector<25x96xf32> to vector<25x16xf32>
    %43 = vector.extract_strided_slice %31 {offsets = [0, 64], sizes = [25, 16], strides = [1, 1]} : vector<25x96xf32> to vector<25x16xf32>
    %44 = arith.truncf %41 : vector<25x16xf32> to vector<25x16xbf16>
    %45 = arith.truncf %42 : vector<25x16xf32> to vector<25x16xbf16>
    %46 = tpu.transpose %45, [1, 0] : vector<25x16xbf16> -> vector<16x25xbf16>
    %cst_19 = arith.constant dense<0.000000e+00> : vector<25x25xf32>
    %47 = tpu.matmul %44, %46, %cst_19 {dimension_numbers = #tpu.dot_dimension_numbers<[1], [0], [0], [1], [0, 0, 1, 1], [], []>} : vector<25x16xbf16>, vector<16x25xbf16>, vector<25x25xf32> -> vector<25x25xf32>
    %48 = arith.addf %47, %37 : vector<25x25xf32>
    %cst_20 = arith.constant dense<0xFF800000> : vector<25xf32>
    %49 = vector.multi_reduction <maximumf>, %48, %cst_20 [1] : vector<25x25xf32> to vector<25xf32>
    %50 = vector.shape_cast %49 : vector<25xf32> to vector<25x1xf32>
    %51 = vector.broadcast %50 : vector<25x1xf32> to vector<25x25xf32>
    %52 = arith.subf %48, %51 : vector<25x25xf32>
    %53 = math.exp %52 : vector<25x25xf32>
    %cst_21 = arith.constant dense<0.000000e+00> : vector<25xf32>
    %54 = vector.multi_reduction <add>, %53, %cst_21 [1] : vector<25x25xf32> to vector<25xf32>
    %55 = vector.shape_cast %54 : vector<25xf32> to vector<25x1xf32>
    %56 = tpu.reciprocal %55 {approx = true} : vector<25x1xf32> -> vector<25x1xf32>
    %57 = vector.broadcast %56 : vector<25x1xf32> to vector<25x25xf32>
    %58 = arith.mulf %53, %57 : vector<25x25xf32>
    %59 = arith.truncf %58 : vector<25x25xf32> to vector<25x25xbf16>
    %60 = arith.truncf %43 : vector<25x16xf32> to vector<25x16xbf16>
    %cst_22 = arith.constant dense<0.000000e+00> : vector<25x16xf32>
    %61 = tpu.matmul %59, %60, %cst_22 {dimension_numbers = #tpu.dot_dimension_numbers<[1], [0], [0], [1], [0, 0, 1, 1], [], []>} : vector<25x25xbf16>, vector<25x16xbf16>, vector<25x16xf32> -> vector<25x16xf32>
    %62 = arith.truncf %61 : vector<25x16xf32> to vector<25x16xbf16>
    %c0_23 = arith.constant 0 : index
    %c0_24 = arith.constant 0 : index
    %63 = vector.load %arg6[%c0_23, %c0_24] : memref<32x32xbf16, #tpu.memory_space<vmem>>, vector<16x32xbf16>
    %cst_25 = arith.constant dense<0.000000e+00> : vector<25x32xf32>
    %64 = tpu.matmul %62, %63, %cst_25 {dimension_numbers = #tpu.dot_dimension_numbers<[1], [0], [0], [1], [0, 0, 1, 1], [], []>} : vector<25x16xbf16>, vector<16x32xbf16>, vector<25x32xf32> -> vector<25x32xf32>
    %65 = arith.addf %38, %64 : vector<25x32xf32>
    %66 = vector.extract_strided_slice %31 {offsets = [0, 16], sizes = [25, 16], strides = [1, 1]} : vector<25x96xf32> to vector<25x16xf32>
    %cst_26 = arith.constant 2.500000e-01 : f32
    %67 = vector.broadcast %cst_26 : f32 to vector<25x16xf32>
    %68 = arith.mulf %66, %67 : vector<25x16xf32>
    %69 = vector.extract_strided_slice %31 {offsets = [0, 48], sizes = [25, 16], strides = [1, 1]} : vector<25x96xf32> to vector<25x16xf32>
    %70 = vector.extract_strided_slice %31 {offsets = [0, 80], sizes = [25, 16], strides = [1, 1]} : vector<25x96xf32> to vector<25x16xf32>
    %71 = arith.truncf %68 : vector<25x16xf32> to vector<25x16xbf16>
    %72 = arith.truncf %69 : vector<25x16xf32> to vector<25x16xbf16>
    %73 = tpu.transpose %72, [1, 0] : vector<25x16xbf16> -> vector<16x25xbf16>
    %cst_27 = arith.constant dense<0.000000e+00> : vector<25x25xf32>
    %74 = tpu.matmul %71, %73, %cst_27 {dimension_numbers = #tpu.dot_dimension_numbers<[1], [0], [0], [1], [0, 0, 1, 1], [], []>} : vector<25x16xbf16>, vector<16x25xbf16>, vector<25x25xf32> -> vector<25x25xf32>
    %75 = arith.addf %74, %37 : vector<25x25xf32>
    %cst_28 = arith.constant dense<0xFF800000> : vector<25xf32>
    %76 = vector.multi_reduction <maximumf>, %75, %cst_28 [1] : vector<25x25xf32> to vector<25xf32>
    %77 = vector.shape_cast %76 : vector<25xf32> to vector<25x1xf32>
    %78 = vector.broadcast %77 : vector<25x1xf32> to vector<25x25xf32>
    %79 = arith.subf %75, %78 : vector<25x25xf32>
    %80 = math.exp %79 : vector<25x25xf32>
    %cst_29 = arith.constant dense<0.000000e+00> : vector<25xf32>
    %81 = vector.multi_reduction <add>, %80, %cst_29 [1] : vector<25x25xf32> to vector<25xf32>
    %82 = vector.shape_cast %81 : vector<25xf32> to vector<25x1xf32>
    %83 = tpu.reciprocal %82 {approx = true} : vector<25x1xf32> -> vector<25x1xf32>
    %84 = vector.broadcast %83 : vector<25x1xf32> to vector<25x25xf32>
    %85 = arith.mulf %80, %84 : vector<25x25xf32>
    %86 = arith.truncf %85 : vector<25x25xf32> to vector<25x25xbf16>
    %87 = arith.truncf %70 : vector<25x16xf32> to vector<25x16xbf16>
    %cst_30 = arith.constant dense<0.000000e+00> : vector<25x16xf32>
    %88 = tpu.matmul %86, %87, %cst_30 {dimension_numbers = #tpu.dot_dimension_numbers<[1], [0], [0], [1], [0, 0, 1, 1], [], []>} : vector<25x25xbf16>, vector<25x16xbf16>, vector<25x16xf32> -> vector<25x16xf32>
    %89 = arith.truncf %88 : vector<25x16xf32> to vector<25x16xbf16>
    %c16 = arith.constant 16 : index
    %c0_31 = arith.constant 0 : index
    %90 = vector.load %arg6[%c16, %c0_31] : memref<32x32xbf16, #tpu.memory_space<vmem>>, vector<16x32xbf16>
    %cst_32 = arith.constant dense<0.000000e+00> : vector<25x32xf32>
    %91 = tpu.matmul %89, %90, %cst_32 {dimension_numbers = #tpu.dot_dimension_numbers<[1], [0], [0], [1], [0, 0, 1, 1], [], []>} : vector<25x16xbf16>, vector<16x32xbf16>, vector<25x32xf32> -> vector<25x32xf32>
    %92 = arith.addf %65, %91 : vector<25x32xf32>
    %93 = arith.addf %1, %92 : vector<25x32xf32>
    %c0_33 = arith.constant 0 : index
    %c0_34 = arith.constant 0 : index
    %94 = vector.load %arg7[%c0_33, %c0_34] : memref<1x32xf32, #tpu.memory_space<vmem>>, vector<1x32xf32>
    %95 = vector.broadcast %94 : vector<1x32xf32> to vector<25x32xf32>
    %96 = arith.addf %93, %95 : vector<25x32xf32>
    %c0_35 = arith.constant 0 : index
    %c0_36 = arith.constant 0 : index
    %c0_37 = arith.constant 0 : index
    %97 = vector.load %arg8[%c0_35, %c0_36, %c0_37] : memref<1x25x32xf32, #tpu.memory_space<vmem>>, vector<1x25x32xf32>
    %98 = vector.shape_cast %97 : vector<1x25x32xf32> to vector<25x32xf32>
    %99 = vector.shape_cast %96 : vector<25x32xf32> to vector<1x25x32xf32>
    tpu.vector_store %arg8[%c0_35, %c0_36, %c0_37], %99 {strides = array<i32>} : memref<1x25x32xf32, #tpu.memory_space<vmem>>, vector<1x25x32xf32>,
    return
  }
  func.func @transform_0(%arg0: i32) -> (i32, i32, i32) {
    %c0_i32 = arith.constant 0 : i32
    %c0_i32_0 = arith.constant 0 : i32
    %c0_i32_1 = arith.constant 0 : i32
    return %arg0, %c0_i32, %c0_i32_0 : i32, i32, i32
  }
  func.func @transform_1(%arg0: i32) -> (i32, i32) {
    %c0_i32 = arith.constant 0 : i32
    %c0_i32_0 = arith.constant 0 : i32
    %c0_i32_1 = arith.constant 0 : i32
    return %c0_i32, %c0_i32_0 : i32, i32
  }
  func.func @transform_2(%arg0: i32) -> (i32, i32) {
    %c0_i32 = arith.constant 0 : i32
    %c0_i32_0 = arith.constant 0 : i32
    %c0_i32_1 = arith.constant 0 : i32
    return %c0_i32, %c0_i32_0 : i32, i32
  }
  func.func @transform_3(%arg0: i32) -> (i32, i32) {
    %c0_i32 = arith.constant 0 : i32
    %c0_i32_0 = arith.constant 0 : i32
    %c0_i32_1 = arith.constant 0 : i32
    return %c0_i32, %c0_i32_0 : i32, i32
  }
  func.func @transform_4(%arg0: i32) -> (i32, i32) {
    %c0_i32 = arith.constant 0 : i32
    %c0_i32_0 = arith.constant 0 : i32
    %c0_i32_1 = arith.constant 0 : i32
    return %c0_i32, %c0_i32_0 : i32, i32
  }
  func.func @transform_5(%arg0: i32) -> (i32, i32) {
    %c0_i32 = arith.constant 0 : i32
    %c0_i32_0 = arith.constant 0 : i32
    %c0_i32_1 = arith.constant 0 : i32
    return %c0_i32, %c0_i32_0 : i32, i32
  }
  func.func @transform_6(%arg0: i32) -> (i32, i32) {
    %c0_i32 = arith.constant 0 : i32
    %c0_i32_0 = arith.constant 0 : i32
    %c0_i32_1 = arith.constant 0 : i32
    return %c0_i32, %c0_i32_0 : i32, i32
  }
  func.func @transform_7(%arg0: i32) -> (i32, i32, i32) {
    %c0_i32 = arith.constant 0 : i32
    %c0_i32_0 = arith.constant 0 : i32
    %c0_i32_1 = arith.constant 0 : i32
    return %arg0, %c0_i32, %c0_i32_0 : i32, i32, i32
  }
}

module attributes {stable_mosaic.version = 11 : i64} {
  func.func @_moe_kernel(%arg0: i32, %arg1: i32, %arg2: memref<56x32xf32, #tpu.memory_space<vmem>>, %arg3: memref<1x32xf32, #tpu.memory_space<vmem>>, %arg4: memref<1x32xf32, #tpu.memory_space<vmem>>, %arg5: memref<32x4xbf16, #tpu.memory_space<vmem>>, %arg6: memref<1x4xf32, #tpu.memory_space<vmem>>, %arg7: memref<1x32x64xbf16, #tpu.memory_space<vmem>>, %arg8: memref<1x1x64xf32, #tpu.memory_space<vmem>>, %arg9: memref<1x64x32xbf16, #tpu.memory_space<vmem>>, %arg10: memref<1x1x32xf32, #tpu.memory_space<vmem>>, %arg11: memref<56x32xf32, #tpu.memory_space<vmem>>, %arg12: memref<56x4xf32, #tpu.memory_space<vmem>>, %arg13: memref<56x32xf32, #tpu.memory_space<vmem>>, %arg14: memref<56x4xf32, #tpu.memory_space<vmem>>, %arg15: memref<56x32xf32, #tpu.memory_space<vmem>>) attributes {dimension_semantics = [#tpu.dimension_semantics<parallel>, #tpu.dimension_semantics<arbitrary>], iteration_bounds = array<i64: 1, 4>, scalar_prefetch = 0 : i64, scratch_operands = 3 : i64, tpu.core_type = #tpu.core_type<tc>, window_params = [{transform_indices = @transform_0, window_bounds = array<i64: 56, 32>}, {pipeline_mode = #tpu.pipeline_mode<synchronous>, transform_indices = @transform_1, window_bounds = array<i64: 1, 32>}, {pipeline_mode = #tpu.pipeline_mode<synchronous>, transform_indices = @transform_2, window_bounds = array<i64: 1, 32>}, {pipeline_mode = #tpu.pipeline_mode<synchronous>, transform_indices = @transform_3, window_bounds = array<i64: 32, 4>}, {pipeline_mode = #tpu.pipeline_mode<synchronous>, transform_indices = @transform_4, window_bounds = array<i64: 1, 4>}, {transform_indices = @transform_5, window_bounds = array<i64: 1, 32, 64>}, {transform_indices = @transform_6, window_bounds = array<i64: 1, 1, 64>}, {transform_indices = @transform_7, window_bounds = array<i64: 1, 64, 32>}, {transform_indices = @transform_8, window_bounds = array<i64: 1, 1, 32>}, {transform_indices = @transform_9, window_bounds = array<i64: 56, 32>}, {transform_indices = @transform_10, window_bounds = array<i64: 56, 4>}]} {
    %c0_i32 = arith.constant 0 : i32
    %0 = arith.cmpi eq, %arg1, %c0_i32 : i32
    %1 = arith.extui %0 : i1 to i32
    %c0_i32_0 = arith.constant 0 : i32
    %2 = arith.cmpi ne, %1, %c0_i32_0 : i32
    scf.if %2 {
      %c0_28 = arith.constant 0 : index
      %c0_29 = arith.constant 0 : index
      %49 = vector.load %arg2[%c0_28, %c0_29] : memref<56x32xf32, #tpu.memory_space<vmem>>, vector<56x32xf32>
      %cst_30 = arith.constant dense<0.000000e+00> : vector<56xf32>
      %50 = vector.multi_reduction <add>, %49, %cst_30 [1] : vector<56x32xf32> to vector<56xf32>
      %51 = vector.shape_cast %50 : vector<56xf32> to vector<56x1xf32>
      %cst_31 = arith.constant 3.200000e+01 : f32
      %52 = vector.broadcast %cst_31 : f32 to vector<56x1xf32>
      %53 = arith.divf %51, %52 : vector<56x1xf32>
      %54 = vector.broadcast %53 : vector<56x1xf32> to vector<56x32xf32>
      %55 = arith.subf %49, %54 : vector<56x32xf32>
      %56 = arith.mulf %55, %55 : vector<56x32xf32>
      %cst_32 = arith.constant dense<0.000000e+00> : vector<56xf32>
      %57 = vector.multi_reduction <add>, %56, %cst_32 [1] : vector<56x32xf32> to vector<56xf32>
      %58 = vector.shape_cast %57 : vector<56xf32> to vector<56x1xf32>
      %cst_33 = arith.constant 3.200000e+01 : f32
      %59 = vector.broadcast %cst_33 : f32 to vector<56x1xf32>
      %60 = arith.divf %58, %59 : vector<56x1xf32>
      %61 = vector.broadcast %53 : vector<56x1xf32> to vector<56x32xf32>
      %62 = arith.subf %49, %61 : vector<56x32xf32>
      %cst_34 = arith.constant 9.99999974E-6 : f32
      %63 = vector.broadcast %cst_34 : f32 to vector<56x1xf32>
      %64 = arith.addf %60, %63 : vector<56x1xf32>
      %65 = math.rsqrt %64 : vector<56x1xf32>
      %66 = vector.broadcast %65 : vector<56x1xf32> to vector<56x32xf32>
      %67 = arith.mulf %62, %66 : vector<56x32xf32>
      %c0_35 = arith.constant 0 : index
      %c0_36 = arith.constant 0 : index
      %68 = vector.load %arg3[%c0_35, %c0_36] : memref<1x32xf32, #tpu.memory_space<vmem>>, vector<1x32xf32>
      %69 = vector.broadcast %68 : vector<1x32xf32> to vector<56x32xf32>
      %70 = arith.mulf %67, %69 : vector<56x32xf32>
      %c0_37 = arith.constant 0 : index
      %c0_38 = arith.constant 0 : index
      %71 = vector.load %arg4[%c0_37, %c0_38] : memref<1x32xf32, #tpu.memory_space<vmem>>, vector<1x32xf32>
      %72 = vector.broadcast %71 : vector<1x32xf32> to vector<56x32xf32>
      %73 = arith.addf %70, %72 : vector<56x32xf32>
      %c0_39 = arith.constant 0 : index
      %c0_40 = arith.constant 0 : index
      %74 = vector.load %arg13[%c0_39, %c0_40] : memref<56x32xf32, #tpu.memory_space<vmem>>, vector<56x32xf32>
      tpu.vector_store %arg13[%c0_39, %c0_40], %73 {strides = array<i32>} : memref<56x32xf32, #tpu.memory_space<vmem>>, vector<56x32xf32>,
      %75 = arith.truncf %73 : vector<56x32xf32> to vector<56x32xbf16>
      %c0_41 = arith.constant 0 : index
      %c0_42 = arith.constant 0 : index
      %76 = vector.load %arg5[%c0_41, %c0_42] : memref<32x4xbf16, #tpu.memory_space<vmem>>, vector<32x4xbf16>
      %cst_43 = arith.constant dense<0.000000e+00> : vector<56x4xf32>
      %77 = tpu.matmul %75, %76, %cst_43 {dimension_numbers = #tpu.dot_dimension_numbers<[1], [0], [0], [1], [0, 0, 1, 1], [], []>} : vector<56x32xbf16>, vector<32x4xbf16>, vector<56x4xf32> -> vector<56x4xf32>
      %c0_44 = arith.constant 0 : index
      %c0_45 = arith.constant 0 : index
      %78 = vector.load %arg6[%c0_44, %c0_45] : memref<1x4xf32, #tpu.memory_space<vmem>>, vector<1x4xf32>
      %79 = vector.broadcast %78 : vector<1x4xf32> to vector<56x4xf32>
      %80 = arith.addf %77, %79 : vector<56x4xf32>
      %cst_46 = arith.constant dense<0xFF800000> : vector<56xf32>
      %81 = vector.multi_reduction <maximumf>, %80, %cst_46 [1] : vector<56x4xf32> to vector<56xf32>
      %82 = vector.shape_cast %81 : vector<56xf32> to vector<56x1xf32>
      %83 = vector.broadcast %82 : vector<56x1xf32> to vector<56x4xf32>
      %84 = arith.subf %80, %83 : vector<56x4xf32>
      %85 = math.exp %84 : vector<56x4xf32>
      %cst_47 = arith.constant dense<0.000000e+00> : vector<56xf32>
      %86 = vector.multi_reduction <add>, %85, %cst_47 [1] : vector<56x4xf32> to vector<56xf32>
      %87 = vector.shape_cast %86 : vector<56xf32> to vector<56x1xf32>
      %88 = tpu.reciprocal %87 {approx = true} : vector<56x1xf32> -> vector<56x1xf32>
      %89 = vector.broadcast %88 : vector<56x1xf32> to vector<56x4xf32>
      %90 = arith.mulf %85, %89 : vector<56x4xf32>
      %c0_48 = arith.constant 0 : index
      %c0_49 = arith.constant 0 : index
      %91 = vector.load %arg14[%c0_48, %c0_49] : memref<56x4xf32, #tpu.memory_space<vmem>>, vector<56x4xf32>
      tpu.vector_store %arg14[%c0_48, %c0_49], %90 {strides = array<i32>} : memref<56x4xf32, #tpu.memory_space<vmem>>, vector<56x4xf32>,
      %cst_50 = arith.constant 0.000000e+00 : f32
      %92 = vector.broadcast %cst_50 : f32 to vector<56x32xf32>
      %c0_51 = arith.constant 0 : index
      %c0_52 = arith.constant 0 : index
      %93 = vector.load %arg15[%c0_51, %c0_52] : memref<56x32xf32, #tpu.memory_space<vmem>>, vector<56x32xf32>
      tpu.vector_store %arg15[%c0_51, %c0_52], %92 {strides = array<i32>} : memref<56x32xf32, #tpu.memory_space<vmem>>, vector<56x32xf32>,
    } else {
    }
    %c0 = arith.constant 0 : index
    %c0_1 = arith.constant 0 : index
    %3 = vector.load %arg13[%c0, %c0_1] : memref<56x32xf32, #tpu.memory_space<vmem>>, vector<56x32xf32>
    %4 = arith.truncf %3 : vector<56x32xf32> to vector<56x32xbf16>
    %c0_2 = arith.constant 0 : index
    %c0_3 = arith.constant 0 : index
    %c0_4 = arith.constant 0 : index
    %5 = vector.load %arg7[%c0_2, %c0_3, %c0_4] : memref<1x32x64xbf16, #tpu.memory_space<vmem>>, vector<1x32x64xbf16>
    %6 = vector.shape_cast %5 : vector<1x32x64xbf16> to vector<32x64xbf16>
    %cst = arith.constant dense<0.000000e+00> : vector<56x64xf32>
    %7 = tpu.matmul %4, %6, %cst {dimension_numbers = #tpu.dot_dimension_numbers<[1], [0], [0], [1], [0, 0, 1, 1], [], []>} : vector<56x32xbf16>, vector<32x64xbf16>, vector<56x64xf32> -> vector<56x64xf32>
    %c0_5 = arith.constant 0 : index
    %c0_6 = arith.constant 0 : index
    %c0_7 = arith.constant 0 : index
    %8 = vector.load %arg8[%c0_5, %c0_6, %c0_7] : memref<1x1x64xf32, #tpu.memory_space<vmem>>, vector<1x1x64xf32>
    %9 = vector.shape_cast %8 : vector<1x1x64xf32> to vector<1x64xf32>
    %10 = vector.broadcast %9 : vector<1x64xf32> to vector<56x64xf32>
    %11 = arith.addf %7, %10 : vector<56x64xf32>
    %cst_8 = arith.constant 5.000000e-01 : f32
    %12 = vector.broadcast %cst_8 : f32 to vector<56x64xf32>
    %13 = arith.mulf %12, %11 : vector<56x64xf32>
    %cst_9 = arith.constant 4.471500e-02 : f32
    %14 = vector.broadcast %cst_9 : f32 to vector<56x64xf32>
    %15 = arith.mulf %14, %11 : vector<56x64xf32>
    %16 = arith.mulf %15, %11 : vector<56x64xf32>
    %17 = arith.mulf %16, %11 : vector<56x64xf32>
    %18 = arith.addf %11, %17 : vector<56x64xf32>
    %cst_10 = arith.constant 0.797884583 : f32
    %19 = vector.broadcast %cst_10 : f32 to vector<56x64xf32>
    %20 = arith.mulf %19, %18 : vector<56x64xf32>
    %21 = math.tanh %20 : vector<56x64xf32>
    %cst_11 = arith.constant 1.000000e+00 : f32
    %22 = vector.broadcast %cst_11 : f32 to vector<56x64xf32>
    %23 = arith.addf %22, %21 : vector<56x64xf32>
    %24 = arith.mulf %13, %23 : vector<56x64xf32>
    %25 = arith.truncf %24 : vector<56x64xf32> to vector<56x64xbf16>
    %c0_12 = arith.constant 0 : index
    %c0_13 = arith.constant 0 : index
    %c0_14 = arith.constant 0 : index
    %26 = vector.load %arg9[%c0_12, %c0_13, %c0_14] : memref<1x64x32xbf16, #tpu.memory_space<vmem>>, vector<1x64x32xbf16>
    %27 = vector.shape_cast %26 : vector<1x64x32xbf16> to vector<64x32xbf16>
    %cst_15 = arith.constant dense<0.000000e+00> : vector<56x32xf32>
    %28 = tpu.matmul %25, %27, %cst_15 {dimension_numbers = #tpu.dot_dimension_numbers<[1], [0], [0], [1], [0, 0, 1, 1], [], []>} : vector<56x64xbf16>, vector<64x32xbf16>, vector<56x32xf32> -> vector<56x32xf32>
    %c0_16 = arith.constant 0 : index
    %c0_17 = arith.constant 0 : index
    %c0_18 = arith.constant 0 : index
    %29 = vector.load %arg10[%c0_16, %c0_17, %c0_18] : memref<1x1x32xf32, #tpu.memory_space<vmem>>, vector<1x1x32xf32>
    %30 = vector.shape_cast %29 : vector<1x1x32xf32> to vector<1x32xf32>
    %31 = vector.broadcast %30 : vector<1x32xf32> to vector<56x32xf32>
    %32 = arith.addf %28, %31 : vector<56x32xf32>
    %33 = tpu.iota {dimensions = array<i32: 1>} : vector<56x4xi32>
    %34 = vector.broadcast %arg1 : i32 to vector<56x4xi32>
    %35 = arith.cmpi eq, %33, %34 : vector<56x4xi32>
    %c0_19 = arith.constant 0 : index
    %c0_20 = arith.constant 0 : index
    %36 = vector.load %arg14[%c0_19, %c0_20] : memref<56x4xf32, #tpu.memory_space<vmem>>, vector<56x4xf32>
    %cst_21 = arith.constant 0.000000e+00 : f32
    %37 = vector.broadcast %cst_21 : f32 to vector<56x4xf32>
    %38 = arith.select %35, %36, %37 : vector<56x4xi1>, vector<56x4xf32>
    %cst_22 = arith.constant dense<0.000000e+00> : vector<56xf32>
    %39 = vector.multi_reduction <add>, %38, %cst_22 [1] : vector<56x4xf32> to vector<56xf32>
    %40 = vector.shape_cast %39 : vector<56xf32> to vector<56x1xf32>
    %c0_23 = arith.constant 0 : index
    %c0_24 = arith.constant 0 : index
    %41 = vector.load %arg15[%c0_23, %c0_24] : memref<56x32xf32, #tpu.memory_space<vmem>>, vector<56x32xf32>
    %42 = vector.broadcast %40 : vector<56x1xf32> to vector<56x32xf32>
    %43 = arith.mulf %42, %32 : vector<56x32xf32>
    %44 = arith.addf %41, %43 : vector<56x32xf32>
    %c0_25 = arith.constant 0 : index
    %c0_26 = arith.constant 0 : index
    %45 = vector.load %arg15[%c0_25, %c0_26] : memref<56x32xf32, #tpu.memory_space<vmem>>, vector<56x32xf32>
    tpu.vector_store %arg15[%c0_25, %c0_26], %44 {strides = array<i32>} : memref<56x32xf32, #tpu.memory_space<vmem>>, vector<56x32xf32>,
    %c3_i32 = arith.constant 3 : i32
    %46 = arith.cmpi eq, %arg1, %c3_i32 : i32
    %47 = arith.extui %46 : i1 to i32
    %c0_i32_27 = arith.constant 0 : i32
    %48 = arith.cmpi ne, %47, %c0_i32_27 : i32
    scf.if %48 {
      %c0_28 = arith.constant 0 : index
      %c0_29 = arith.constant 0 : index
      %49 = vector.load %arg2[%c0_28, %c0_29] : memref<56x32xf32, #tpu.memory_space<vmem>>, vector<56x32xf32>
      %c0_30 = arith.constant 0 : index
      %c0_31 = arith.constant 0 : index
      %50 = vector.load %arg15[%c0_30, %c0_31] : memref<56x32xf32, #tpu.memory_space<vmem>>, vector<56x32xf32>
      %51 = arith.addf %49, %50 : vector<56x32xf32>
      %c0_32 = arith.constant 0 : index
      %c0_33 = arith.constant 0 : index
      %52 = vector.load %arg11[%c0_32, %c0_33] : memref<56x32xf32, #tpu.memory_space<vmem>>, vector<56x32xf32>
      tpu.vector_store %arg11[%c0_32, %c0_33], %51 {strides = array<i32>} : memref<56x32xf32, #tpu.memory_space<vmem>>, vector<56x32xf32>,
      %c56_i32 = arith.constant 56 : i32
      %53 = arith.muli %arg0, %c56_i32 : i32
      %54 = tpu.iota {dimensions = array<i32: 0>} : vector<56x4xi32>
      %55 = vector.broadcast %53 : i32 to vector<56x4xi32>
      %56 = arith.addi %55, %54 : vector<56x4xi32>
      %c50_i32 = arith.constant 50 : i32
      %57 = vector.broadcast %c50_i32 : i32 to vector<56x4xi32>
      %58 = arith.cmpi slt, %56, %57 : vector<56x4xi32>
      %c0_34 = arith.constant 0 : index
      %c0_35 = arith.constant 0 : index
      %59 = vector.load %arg14[%c0_34, %c0_35] : memref<56x4xf32, #tpu.memory_space<vmem>>, vector<56x4xf32>
      %cst_36 = arith.constant 0.000000e+00 : f32
      %60 = vector.broadcast %cst_36 : f32 to vector<56x4xf32>
      %61 = arith.select %58, %59, %60 : vector<56x4xi1>, vector<56x4xf32>
      %c0_37 = arith.constant 0 : index
      %c0_38 = arith.constant 0 : index
      %62 = vector.load %arg12[%c0_37, %c0_38] : memref<56x4xf32, #tpu.memory_space<vmem>>, vector<56x4xf32>
      tpu.vector_store %arg12[%c0_37, %c0_38], %61 {strides = array<i32>} : memref<56x4xf32, #tpu.memory_space<vmem>>, vector<56x4xf32>,
    } else {
    }
    return
  }
  func.func @transform_0(%arg0: i32, %arg1: i32) -> (i32, i32) {
    %c0_i32 = arith.constant 0 : i32
    %c0_i32_0 = arith.constant 0 : i32
    return %arg0, %c0_i32 : i32, i32
  }
  func.func @transform_1(%arg0: i32, %arg1: i32) -> (i32, i32) {
    %c0_i32 = arith.constant 0 : i32
    %c0_i32_0 = arith.constant 0 : i32
    %c0_i32_1 = arith.constant 0 : i32
    return %c0_i32, %c0_i32_0 : i32, i32
  }
  func.func @transform_2(%arg0: i32, %arg1: i32) -> (i32, i32) {
    %c0_i32 = arith.constant 0 : i32
    %c0_i32_0 = arith.constant 0 : i32
    %c0_i32_1 = arith.constant 0 : i32
    return %c0_i32, %c0_i32_0 : i32, i32
  }
  func.func @transform_3(%arg0: i32, %arg1: i32) -> (i32, i32) {
    %c0_i32 = arith.constant 0 : i32
    %c0_i32_0 = arith.constant 0 : i32
    %c0_i32_1 = arith.constant 0 : i32
    return %c0_i32, %c0_i32_0 : i32, i32
  }
  func.func @transform_4(%arg0: i32, %arg1: i32) -> (i32, i32) {
    %c0_i32 = arith.constant 0 : i32
    %c0_i32_0 = arith.constant 0 : i32
    %c0_i32_1 = arith.constant 0 : i32
    return %c0_i32, %c0_i32_0 : i32, i32
  }
  func.func @transform_5(%arg0: i32, %arg1: i32) -> (i32, i32, i32) {
    %c0_i32 = arith.constant 0 : i32
    %c0_i32_0 = arith.constant 0 : i32
    %c0_i32_1 = arith.constant 0 : i32
    return %arg1, %c0_i32, %c0_i32_0 : i32, i32, i32
  }
  func.func @transform_6(%arg0: i32, %arg1: i32) -> (i32, i32, i32) {
    %c0_i32 = arith.constant 0 : i32
    %c0_i32_0 = arith.constant 0 : i32
    %c0_i32_1 = arith.constant 0 : i32
    return %arg1, %c0_i32, %c0_i32_0 : i32, i32, i32
  }
  func.func @transform_7(%arg0: i32, %arg1: i32) -> (i32, i32, i32) {
    %c0_i32 = arith.constant 0 : i32
    %c0_i32_0 = arith.constant 0 : i32
    %c0_i32_1 = arith.constant 0 : i32
    return %arg1, %c0_i32, %c0_i32_0 : i32, i32, i32
  }
  func.func @transform_8(%arg0: i32, %arg1: i32) -> (i32, i32, i32) {
    %c0_i32 = arith.constant 0 : i32
    %c0_i32_0 = arith.constant 0 : i32
    %c0_i32_1 = arith.constant 0 : i32
    return %arg1, %c0_i32, %c0_i32_0 : i32, i32, i32
  }
  func.func @transform_9(%arg0: i32, %arg1: i32) -> (i32, i32) {
    %c0_i32 = arith.constant 0 : i32
    %c0_i32_0 = arith.constant 0 : i32
    return %arg0, %c0_i32 : i32, i32
  }
  func.func @transform_10(%arg0: i32, %arg1: i32) -> (i32, i32) {
    %c0_i32 = arith.constant 0 : i32
    %c0_i32_0 = arith.constant 0 : i32
    return %arg0, %c0_i32 : i32, i32
  }
}

module attributes {stable_mosaic.version = 11 : i64} {
  func.func @_ln_linear_kernel(%arg0: i32, %arg1: memref<24x32xf32, #tpu.memory_space<vmem>>, %arg2: memref<1x32xf32, #tpu.memory_space<vmem>>, %arg3: memref<1x32xf32, #tpu.memory_space<vmem>>, %arg4: memref<32x3xbf16, #tpu.memory_space<vmem>>, %arg5: memref<1x3xf32, #tpu.memory_space<vmem>>, %arg6: memref<24x3xf32, #tpu.memory_space<vmem>>) attributes {dimension_semantics = [#tpu.dimension_semantics<parallel>], iteration_bounds = array<i64: 1>, scalar_prefetch = 0 : i64, scratch_operands = 0 : i64, tpu.core_type = #tpu.core_type<tc>, window_params = [{transform_indices = @transform_0, window_bounds = array<i64: 24, 32>}, {pipeline_mode = #tpu.pipeline_mode<synchronous>, transform_indices = @transform_1, window_bounds = array<i64: 1, 32>}, {pipeline_mode = #tpu.pipeline_mode<synchronous>, transform_indices = @transform_2, window_bounds = array<i64: 1, 32>}, {pipeline_mode = #tpu.pipeline_mode<synchronous>, transform_indices = @transform_3, window_bounds = array<i64: 32, 3>}, {pipeline_mode = #tpu.pipeline_mode<synchronous>, transform_indices = @transform_4, window_bounds = array<i64: 1, 3>}, {transform_indices = @transform_5, window_bounds = array<i64: 24, 3>}]} {
    %c0 = arith.constant 0 : index
    %c0_0 = arith.constant 0 : index
    %0 = vector.load %arg1[%c0, %c0_0] : memref<24x32xf32, #tpu.memory_space<vmem>>, vector<24x32xf32>
    %cst = arith.constant dense<0.000000e+00> : vector<24xf32>
    %1 = vector.multi_reduction <add>, %0, %cst [1] : vector<24x32xf32> to vector<24xf32>
    %2 = vector.shape_cast %1 : vector<24xf32> to vector<24x1xf32>
    %cst_1 = arith.constant 3.200000e+01 : f32
    %3 = vector.broadcast %cst_1 : f32 to vector<24x1xf32>
    %4 = arith.divf %2, %3 : vector<24x1xf32>
    %5 = vector.broadcast %4 : vector<24x1xf32> to vector<24x32xf32>
    %6 = arith.subf %0, %5 : vector<24x32xf32>
    %7 = arith.mulf %6, %6 : vector<24x32xf32>
    %cst_2 = arith.constant dense<0.000000e+00> : vector<24xf32>
    %8 = vector.multi_reduction <add>, %7, %cst_2 [1] : vector<24x32xf32> to vector<24xf32>
    %9 = vector.shape_cast %8 : vector<24xf32> to vector<24x1xf32>
    %cst_3 = arith.constant 3.200000e+01 : f32
    %10 = vector.broadcast %cst_3 : f32 to vector<24x1xf32>
    %11 = arith.divf %9, %10 : vector<24x1xf32>
    %12 = vector.broadcast %4 : vector<24x1xf32> to vector<24x32xf32>
    %13 = arith.subf %0, %12 : vector<24x32xf32>
    %cst_4 = arith.constant 9.99999974E-6 : f32
    %14 = vector.broadcast %cst_4 : f32 to vector<24x1xf32>
    %15 = arith.addf %11, %14 : vector<24x1xf32>
    %16 = math.rsqrt %15 : vector<24x1xf32>
    %17 = vector.broadcast %16 : vector<24x1xf32> to vector<24x32xf32>
    %18 = arith.mulf %13, %17 : vector<24x32xf32>
    %c0_5 = arith.constant 0 : index
    %c0_6 = arith.constant 0 : index
    %19 = vector.load %arg2[%c0_5, %c0_6] : memref<1x32xf32, #tpu.memory_space<vmem>>, vector<1x32xf32>
    %20 = vector.broadcast %19 : vector<1x32xf32> to vector<24x32xf32>
    %21 = arith.mulf %18, %20 : vector<24x32xf32>
    %c0_7 = arith.constant 0 : index
    %c0_8 = arith.constant 0 : index
    %22 = vector.load %arg3[%c0_7, %c0_8] : memref<1x32xf32, #tpu.memory_space<vmem>>, vector<1x32xf32>
    %23 = vector.broadcast %22 : vector<1x32xf32> to vector<24x32xf32>
    %24 = arith.addf %21, %23 : vector<24x32xf32>
    %25 = arith.truncf %24 : vector<24x32xf32> to vector<24x32xbf16>
    %c0_9 = arith.constant 0 : index
    %c0_10 = arith.constant 0 : index
    %26 = vector.load %arg4[%c0_9, %c0_10] : memref<32x3xbf16, #tpu.memory_space<vmem>>, vector<32x3xbf16>
    %cst_11 = arith.constant dense<0.000000e+00> : vector<24x3xf32>
    %27 = tpu.matmul %25, %26, %cst_11 {dimension_numbers = #tpu.dot_dimension_numbers<[1], [0], [0], [1], [0, 0, 1, 1], [], []>} : vector<24x32xbf16>, vector<32x3xbf16>, vector<24x3xf32> -> vector<24x3xf32>
    %c0_12 = arith.constant 0 : index
    %c0_13 = arith.constant 0 : index
    %28 = vector.load %arg5[%c0_12, %c0_13] : memref<1x3xf32, #tpu.memory_space<vmem>>, vector<1x3xf32>
    %29 = vector.broadcast %28 : vector<1x3xf32> to vector<24x3xf32>
    %30 = arith.addf %27, %29 : vector<24x3xf32>
    %31 = math.tanh %30 : vector<24x3xf32>
    %c0_14 = arith.constant 0 : index
    %c0_15 = arith.constant 0 : index
    %32 = vector.load %arg6[%c0_14, %c0_15] : memref<24x3xf32, #tpu.memory_space<vmem>>, vector<24x3xf32>
    tpu.vector_store %arg6[%c0_14, %c0_15], %31 {strides = array<i32>} : memref<24x3xf32, #tpu.memory_space<vmem>>, vector<24x3xf32>,
    return
  }
  func.func @transform_0(%arg0: i32) -> (i32, i32) {
    %c0_i32 = arith.constant 0 : i32
    %c0_i32_0 = arith.constant 0 : i32
    return %arg0, %c0_i32 : i32, i32
  }
  func.func @transform_1(%arg0: i32) -> (i32, i32) {
    %c0_i32 = arith.constant 0 : i32
    %c0_i32_0 = arith.constant 0 : i32
    %c0_i32_1 = arith.constant 0 : i32
    return %c0_i32, %c0_i32_0 : i32, i32
  }
  func.func @transform_2(%arg0: i32) -> (i32, i32) {
    %c0_i32 = arith.constant 0 : i32
    %c0_i32_0 = arith.constant 0 : i32
    %c0_i32_1 = arith.constant 0 : i32
    return %c0_i32, %c0_i32_0 : i32, i32
  }
  func.func @transform_3(%arg0: i32) -> (i32, i32) {
    %c0_i32 = arith.constant 0 : i32
    %c0_i32_0 = arith.constant 0 : i32
    %c0_i32_1 = arith.constant 0 : i32
    return %c0_i32, %c0_i32_0 : i32, i32
  }
  func.func @transform_4(%arg0: i32) -> (i32, i32) {
    %c0_i32 = arith.constant 0 : i32
    %c0_i32_0 = arith.constant 0 : i32
    %c0_i32_1 = arith.constant 0 : i32
    return %c0_i32, %c0_i32_0 : i32, i32
  }
  func.func @transform_5(%arg0: i32) -> (i32, i32) {
    %c0_i32 = arith.constant 0 : i32
    %c0_i32_0 = arith.constant 0 : i32
    return %arg0, %c0_i32 : i32, i32
  }
}

</mosaic_0001>

<llo_original>
// kernel: dpt_forward_moe.10
$region0: #{dpt_forward_moe.10}
  #allocation0 [shape = 'u32[]', space=smem, size = 0x4, offset = 0x4, fixed_abs, tag = 'smem constant byte address 0x4 - core index']
  #allocation1 [shape = 'u32[72,128]{1,0:T(1,128)}', space=vmem, size = 0x9000, scoped, tag = 'internal scratch']
  %s0 = inlined_call_operand.vmem [shape: f32[16,1], index: 0, kind: input, shape index: {}]
  %s1 = inlined_call_operand.vmem [shape: bf16[1,32], index: 1, kind: input, shape index: {}]
  %s2 = inlined_call_operand.vmem [shape: f32[1,32], index: 2, kind: input, shape index: {}]
  %s3 = inlined_call_operand.vmem [shape: f32[16,32], index: 3, kind: output, shape index: {}]
  %s4 = sld [smem:[#allocation0]]
  $region22: #{dpt_forward_moe.10} parent=0
    _
  %s6 = ssub.s32 1, %s4
  %s7 = scalar_select 0, %s6, %s4
  // Predicated region
  $region2: #{dpt_forward_moe.10} parent=0 // pred_check
    _
  $region3: #{dpt_forward_moe.10} parent=0 // pred_check_branch
    %9 = sbr.rel (0) target = $region5
  $region4: #{dpt_forward_moe.10} parent=0 // pred_region
    _
  $region5: #{dpt_forward_moe.10} parent=0 // pred_fallthru
    _
  // Predicated region
  $region6: #{dpt_forward_moe.10} parent=0 // pred_check
    _
  $region7: #{dpt_forward_moe.10} parent=0 // pred_check_branch
    %11 = sbr.rel (0) target = $region9
  $region8: #{dpt_forward_moe.10} parent=0 // pred_region
    _
  $region9: #{dpt_forward_moe.10} parent=0 // pred_fallthru
    _
  // Predicated region
  $region10: #{dpt_forward_moe.10} parent=0 // pred_check
    _
  $region11: #{dpt_forward_moe.10} parent=0 // pred_check_branch
    %13 = sbr.rel (0) target = $region13
  $region12: #{dpt_forward_moe.10} parent=0 // pred_region
    _
  $region13: #{dpt_forward_moe.10} parent=0 // pred_fallthru
    _
  %v15 = vld [vmem:[%s0] sm:$0xff]
  %v16 = vld [vmem:[%s0 + $0x8] sm:$0xff]
  %v17 = vpack.c.bf16 %v16, %v15
  %v18 = vld [vmem:[%s1] sm:$0x1]
  %v19 = vld [vmem:[%s2] sm:$0x1]
  %v21 = vperm.slane %v19, 0
  %vm23 = vcmask 7168
  %v25 = vsel %vm23, %v17, 0
  %vm27 = vcmask 1040384
  %v28 = vsel 0, 4294967295, 65535
  %v29 = vsel %vm27, %v28, 0
  %v31 = vand.u32 %v18, %v29
  %33 = vmatpush.bf16.msra.mxu0 0
  %34 = vmatpush.bf16.msra.mxu0 0
  %35 = vmatpush.bf16.msra.mxu0 0
  %36 = vmatpush.bf16.msra.mxu0 0
  %37 = vmatpush.bf16.msra.mxu0 0
  %38 = vmatpush.bf16.msra.mxu0 0
  %39 = vmatpush.bf16.msra.mxu0 0
  %40 = vmatpush.bf16.msra.mxu0 %v31
  %41 = vmatmul.bf16.gmra.mxu0 %v25
  %v42 = vpop.f32.mrf.mxu0
  %v43 = vadd.f32 %v21, %v42
  %v44 = vpop.f32.mrf.mxu0
  %v45 = vadd.f32 %v21, %v44
  %46 = vdwg.mxu0
  %vm47 = vcmask 261120
  %48 = vst.msk [vmem:[%s3] sm:$0xff] %vm47, %v43
  %49 = vst.msk [vmem:[%s3 + $0x8] sm:$0xff] %vm47, %v45
  // Predicated region
  $region14: #{dpt_forward_moe.10} parent=0 // pred_check
    _
  $region15: #{dpt_forward_moe.10} parent=0 // pred_check_branch
    %51 = sbr.rel (0) target = $region17
  $region16: #{dpt_forward_moe.10} parent=0 // pred_region
    _
  $region17: #{dpt_forward_moe.10} parent=0 // pred_fallthru
    _
  // Predicated region
  $region18: #{dpt_forward_moe.10} parent=0 // pred_check
    _
  $region19: #{dpt_forward_moe.10} parent=0 // pred_check_branch
    %53 = sbr.rel (0) target = $region21
  $region20: #{dpt_forward_moe.10} parent=0 // pred_region
    _
  $region21: #{dpt_forward_moe.10} parent=0 // pred_fallthru
    _

// kernel: dpt_forward_moe.9
$region0: #{dpt_forward_moe.9}
  #allocation0 [shape = 'u32[]', space=smem, size = 0x4, offset = 0x4, fixed_abs, tag = 'smem constant byte address 0x4 - core index']
  #allocation1 [shape = 'u32[72,128]{1,0:T(1,128)}', space=vmem, size = 0x9000, scoped, tag = 'internal scratch']
  %s0 = inlined_call_operand.vmem [shape: f32[16,3], index: 0, kind: input, shape index: {}]
  %s1 = inlined_call_operand.vmem [shape: bf16[3,32], index: 1, kind: input, shape index: {}]
  %s2 = inlined_call_operand.vmem [shape: f32[1,32], index: 2, kind: input, shape index: {}]
  %s3 = inlined_call_operand.vmem [shape: f32[16,32], index: 3, kind: output, shape index: {}]
  %s4 = sld [smem:[#allocation0]]
  $region22: #{dpt_forward_moe.9} parent=0
    _
  %s6 = ssub.s32 1, %s4
  %s7 = scalar_select 0, %s6, %s4
  // Predicated region
  $region2: #{dpt_forward_moe.9} parent=0 // pred_check
    _
  $region3: #{dpt_forward_moe.9} parent=0 // pred_check_branch
    %9 = sbr.rel (0) target = $region5
  $region4: #{dpt_forward_moe.9} parent=0 // pred_region
    _
  $region5: #{dpt_forward_moe.9} parent=0 // pred_fallthru
    _
  // Predicated region
  $region6: #{dpt_forward_moe.9} parent=0 // pred_check
    _
  $region7: #{dpt_forward_moe.9} parent=0 // pred_check_branch
    %11 = sbr.rel (0) target = $region9
  $region8: #{dpt_forward_moe.9} parent=0 // pred_region
    _
  $region9: #{dpt_forward_moe.9} parent=0 // pred_fallthru
    _
  // Predicated region
  $region10: #{dpt_forward_moe.9} parent=0 // pred_check
    _
  $region11: #{dpt_forward_moe.9} parent=0 // pred_check_branch
    %13 = sbr.rel (0) target = $region13
  $region12: #{dpt_forward_moe.9} parent=0 // pred_region
    _
  $region13: #{dpt_forward_moe.9} parent=0 // pred_fallthru
    _
  %v15 = vld [vmem:[%s0] sm:$0xff]
  %v16 = vld [vmem:[%s0 + $0x8] sm:$0xff]
  %v17 = vpack.c.bf16 %v16, %v15
  %v18 = vld [vmem:[%s1] sm:$0x3]
  %v19 = vld [vmem:[%s2] sm:$0x1]
  %v21 = vperm.slane %v19, 0
  %vm23 = vcmask 23552
  %v25 = vsel %vm23, %v17, 0
  %vm27 = vcmask 1040384
  %vm28 = vcmask 1041408
  %v29 = vsel %vm27, 4294967295, 65535
  %v30 = vsel %vm28, %v29, 0
  %v32 = vand.u32 %v18, %v30
  %34 = vmatpush.bf16.msra.mxu0 0
  %35 = vmatpush.bf16.msra.mxu0 0
  %36 = vmatpush.bf16.msra.mxu0 0
  %37 = vmatpush.bf16.msra.mxu0 0
  %38 = vmatpush.bf16.msra.mxu0 0
  %39 = vmatpush.bf16.msra.mxu0 0
  %40 = vmatpush.bf16.msra.mxu0 0
  %41 = vmatpush.bf16.msra.mxu0 %v32
  %42 = vmatmul.bf16.gmra.mxu0 %v25
  %v43 = vpop.f32.mrf.mxu0
  %v44 = vadd.f32 %v21, %v43
  %v45 = vpop.f32.mrf.mxu0
  %v46 = vadd.f32 %v21, %v45
  %47 = vdwg.mxu0
  %vm48 = vcmask 261120
  %49 = vst.msk [vmem:[%s3] sm:$0xff] %vm48, %v44
  %50 = vst.msk [vmem:[%s3 + $0x8] sm:$0xff] %vm48, %v46
  // Predicated region
  $region14: #{dpt_forward_moe.9} parent=0 // pred_check
    _
  $region15: #{dpt_forward_moe.9} parent=0 // pred_check_branch
    %52 = sbr.rel (0) target = $region17
  $region16: #{dpt_forward_moe.9} parent=0 // pred_region
    _
  $region17: #{dpt_forward_moe.9} parent=0 // pred_fallthru
    _
  // Predicated region
  $region18: #{dpt_forward_moe.9} parent=0 // pred_check
    _
  $region19: #{dpt_forward_moe.9} parent=0 // pred_check_branch
    %54 = sbr.rel (0) target = $region21
  $region20: #{dpt_forward_moe.9} parent=0 // pred_region
    _
  $region21: #{dpt_forward_moe.9} parent=0 // pred_fallthru
    _

// kernel: dpt_forward_moe.8
$region0: #{dpt_forward_moe.8}
  #allocation0 [shape = 'u32[]', space=smem, size = 0x4, offset = 0x4, fixed_abs, tag = 'smem constant byte address 0x4 - core index']
  #allocation1 [shape = 'u32[72,128]{1,0:T(1,128)}', space=vmem, size = 0x9000, scoped, tag = 'internal scratch']
  %s0 = inlined_call_operand.vmem [shape: f32[24,5], index: 0, kind: input, shape index: {}]
  %s1 = inlined_call_operand.vmem [shape: bf16[5,32], index: 1, kind: input, shape index: {}]
  %s2 = inlined_call_operand.vmem [shape: f32[1,32], index: 2, kind: input, shape index: {}]
  %s3 = inlined_call_operand.vmem [shape: f32[24,32], index: 3, kind: output, shape index: {}]
  %s4 = sld [smem:[#allocation0]]
  $region22: #{dpt_forward_moe.8} parent=0
    _
  %s6 = ssub.s32 1, %s4
  %s7 = scalar_select 0, %s6, %s4
  // Predicated region
  $region2: #{dpt_forward_moe.8} parent=0 // pred_check
    _
  $region3: #{dpt_forward_moe.8} parent=0 // pred_check_branch
    %9 = sbr.rel (0) target = $region5
  $region4: #{dpt_forward_moe.8} parent=0 // pred_region
    _
  $region5: #{dpt_forward_moe.8} parent=0 // pred_fallthru
    _
  // Predicated region
  $region6: #{dpt_forward_moe.8} parent=0 // pred_check
    _
  $region7: #{dpt_forward_moe.8} parent=0 // pred_check_branch
    %11 = sbr.rel (0) target = $region9
  $region8: #{dpt_forward_moe.8} parent=0 // pred_region
    _
  $region9: #{dpt_forward_moe.8} parent=0 // pred_fallthru
    _
  // Predicated region
  $region10: #{dpt_forward_moe.8} parent=0 // pred_check
    _
  $region11: #{dpt_forward_moe.8} parent=0 // pred_check_branch
    %13 = sbr.rel (0) target = $region13
  $region12: #{dpt_forward_moe.8} parent=0 // pred_region
    _
  $region13: #{dpt_forward_moe.8} parent=0 // pred_fallthru
    _
  %v15 = vld [vmem:[%s0] sm:$0xff]
  %v16 = vld [vmem:[%s0 + $0x8] sm:$0xff]
  %v17 = vld [vmem:[%s0 + $0x10] sm:$0xff]
  %v18 = vpack.c.bf16 %v16, %v15
  %v19 = vpack.c.bf16 %v17, %v17
  %v20 = vld [vmem:[%s1] sm:$0x7]
  %v21 = vld [vmem:[%s2] sm:$0x1]
  %v23 = vperm.slane %v21, 0
  %vm25 = vcmask 39936
  %v27 = vsel %vm25, %v18, 0
  %v30 = vsel %vm25, %v19, 0
  %vm32 = vcmask 1041408
  %vm33 = vcmask 1042432
  %v34 = vsel %vm32, 4294967295, 65535
  %v35 = vsel %vm33, %v34, 0
  %v37 = vand.u32 %v20, %v35
  %39 = vmatpush.bf16.msra.mxu0 0
  %40 = vmatpush.bf16.msra.mxu0 0
  %41 = vmatpush.bf16.msra.mxu0 0
  %42 = vmatpush.bf16.msra.mxu0 0
  %43 = vmatpush.bf16.msra.mxu0 0
  %44 = vmatpush.bf16.msra.mxu0 0
  %45 = vmatpush.bf16.msra.mxu0 0
  %46 = vmatpush.bf16.msra.mxu0 %v37
  %47 = vmatmul.bf16.gmra.mxu0 %v27
  %v48 = vpop.f32.mrf.mxu0
  %v49 = vadd.f32 %v23, %v48
  %v50 = vpop.f32.mrf.mxu0
  %v51 = vadd.f32 %v23, %v50
  %52 = vmatmul.bf16.gmra.mxu0 %v30
  %v53 = vpop.f32.mrf.mxu0
  %v54 = vadd.f32 %v23, %v53
  %v55 = vpop.f32.mrf.mxu0
  %56 = vdwg.mxu0
  %vm57 = vcmask 261120
  %58 = vst.msk [vmem:[%s3] sm:$0xff] %vm57, %v49
  %59 = vst.msk [vmem:[%s3 + $0x8] sm:$0xff] %vm57, %v51
  %60 = vst.msk [vmem:[%s3 + $0x10] sm:$0xff] %vm57, %v54
  // Predicated region
  $region14: #{dpt_forward_moe.8} parent=0 // pred_check
    _
  $region15: #{dpt_forward_moe.8} parent=0 // pred_check_branch
    %62 = sbr.rel (0) target = $region17
  $region16: #{dpt_forward_moe.8} parent=0 // pred_region
    _
  $region17: #{dpt_forward_moe.8} parent=0 // pred_fallthru
    _
  // Predicated region
  $region18: #{dpt_forward_moe.8} parent=0 // pred_check
    _
  $region19: #{dpt_forward_moe.8} parent=0 // pred_check_branch
    %64 = sbr.rel (0) target = $region21
  $region20: #{dpt_forward_moe.8} parent=0 // pred_region
    _
  $region21: #{dpt_forward_moe.8} parent=0 // pred_fallthru
    _

// kernel: dpt_forward_moe.11
$region0: #{dpt_forward_moe.11}
  #allocation0 [shape = 'u32[]', space=smem, size = 0x4, offset = 0x4, fixed_abs, tag = 'smem constant byte address 0x4 - core index']
  #allocation1 [shape = 'u32[72,128]{1,0:T(1,128)}', space=vmem, size = 0x9000, scoped, tag = 'internal scratch']
  %s0 = inlined_call_operand.vmem [shape: f32[2,25,32], index: 0, kind: input, shape index: {}]
  %s1 = inlined_call_operand.vmem [shape: f32[1,32], index: 1, kind: input, shape index: {}]
  %s2 = inlined_call_operand.vmem [shape: f32[1,32], index: 2, kind: input, shape index: {}]
  %s3 = inlined_call_operand.vmem [shape: bf16[32,96], index: 3, kind: input, shape index: {}]
  %s4 = inlined_call_operand.vmem [shape: f32[1,96], index: 4, kind: input, shape index: {}]
  %s5 = inlined_call_operand.vmem [shape: bf16[32,32], index: 5, kind: input, shape index: {}]
  %s6 = inlined_call_operand.vmem [shape: f32[1,32], index: 6, kind: input, shape index: {}]
  %s7 = inlined_call_operand.vmem [shape: f32[2,25,32], index: 7, kind: output, shape index: {}]
  %s8 = sld [smem:[#allocation0]]
  $region61: #{dpt_forward_moe.11} parent=0
    _
  %s10 = ssub.s32 1, %s8
  %s11 = scalar_select 0, %s10, %s8
  loop: start=0, step=1, limit=4
  $region2: #{dpt_forward_moe.11} parent=0 // loop_pre_header
    _
  $region3: #{dpt_forward_moe.11} parent=0 // loop_header
    %s13 = sphi 0, %s17
    %p14 = scmp.ge.s32.totalorder %s13, 4
    %s23 = sphi 0, %s25
    %s26 = sphi 0, %s23
    %s27 = sphi 0, %s26
    %s43 = sphi 0, %s27
    %s47 = sphi 0, %s47
    %s49 = sphi 0, %s47
    %s50 = sphi 0, %s49
    %s64 = sphi 0, %s50
    %s68 = sphi 0, %s68
    %s70 = sphi 0, %s68
    %s71 = sphi 0, %s70
    %s85 = sphi 0, %s71
    %s89 = sphi 0, %s89
    %s91 = sphi 0, %s89
    %s92 = sphi 0, %s91
    %s106 = sphi 0, %s92
    %s110 = sphi 0, %s110
    %s112 = sphi 0, %s110
    %s113 = sphi 0, %s112
    %s127 = sphi 0, %s113
    %s131 = sphi 0, %s131
    %s133 = sphi 0, %s131
    %s134 = sphi 0, %s133
    %s148 = sphi 0, %s134
    %s152 = sphi 0, %s152
    %s154 = sphi 0, %s152
    %s155 = sphi 0, %s154
    %s169 = sphi 0, %s155
    %s175 = sphi 0, %s177
    %s178 = sphi 0, %s175
    %s179 = sphi 0, %s178
    %s195 = sphi 0, %s179
  $region4: #{dpt_forward_moe.11} parent=0 // loop_header_branch
    %16 = sbr.rel (%p14) target = $region8
  $region5: #{dpt_forward_moe.11} parent=0 // loop_body
    %s18 = ssub.s32 %s13, 1
    %s19 = ssub.s32 %s13, 2
    %s20 = sadd.s32 %s13, 1
    %s21 = ssub.s32 %s13, %s20
    %p22 = scmp.eq.s32.totalorder %s21, 0
    %s24 = sadd.s32 %s23, 1
    %s25 = scalar_select %p22, %s23, %s24
    %p28 = pneg %p22
    %p29 = scmp.eq.s32.totalorder %s13, 1
    %p30 = por %p28, %p29
    %p31 = scmp.ne.s32.totalorder %s23, %s26
    %p32 = scmp.eq.s32.totalorder %s13, 0
    %p33 = por %p31, %p32
    %p34 = scmp.ne.s32.totalorder %s23, %s26
    %p35 = scmp.eq.s32.totalorder %s18, 1
    %p36 = por %p34, %p35
    %p37 = scmp.ne.s32.totalorder %s26, %s27
    %p38 = scmp.eq.s32.totalorder %s18, 0
    %p39 = por %p37, %p38
    %p40 = scmp.ne.s32.totalorder %s26, %s27
    %p41 = scmp.eq.s32.totalorder %s19, 1
    %p42 = por %p40, %p41
    %p44 = scmp.ne.s32.totalorder %s27, %s43
    %p45 = scmp.eq.s32.totalorder %s19, 0
    %p46 = por %p44, %p45
    %s48 = sadd.s32 %s47, 1
    %p51 = scmp.eq.s32.totalorder %s13, 1
    %p52 = scmp.ne.s32.totalorder %s47, %s49
    %p53 = scmp.eq.s32.totalorder %s13, 0
    %p54 = por %p52, %p53
    %p55 = scmp.ne.s32.totalorder %s47, %s49
    %p56 = scmp.eq.s32.totalorder %s18, 1
    %p57 = por %p55, %p56
    %p58 = scmp.ne.s32.totalorder %s49, %s50
    %p59 = scmp.eq.s32.totalorder %s18, 0
    %p60 = por %p58, %p59
    %p61 = scmp.ne.s32.totalorder %s49, %s50
    %p62 = scmp.eq.s32.totalorder %s19, 1
    %p63 = por %p61, %p62
    %p65 = scmp.ne.s32.totalorder %s50, %s64
    %p66 = scmp.eq.s32.totalorder %s19, 0
    %p67 = por %p65, %p66
    %s69 = sadd.s32 %s68, 1
    %p72 = scmp.eq.s32.totalorder %s13, 1
    %p73 = scmp.ne.s32.totalorder %s68, %s70
    %p74 = scmp.eq.s32.totalorder %s13, 0
    %p75 = por %p73, %p74
    %p76 = scmp.ne.s32.totalorder %s68, %s70
    %p77 = scmp.eq.s32.totalorder %s18, 1
    %p78 = por %p76, %p77
    %p79 = scmp.ne.s32.totalorder %s70, %s71
    %p80 = scmp.eq.s32.totalorder %s18, 0
    %p81 = por %p79, %p80
    %p82 = scmp.ne.s32.totalorder %s70, %s71
    %p83 = scmp.eq.s32.totalorder %s19, 1
    %p84 = por %p82, %p83
    %p86 = scmp.ne.s32.totalorder %s71, %s85
    %p87 = scmp.eq.s32.totalorder %s19, 0
    %p88 = por %p86, %p87
    %s90 = sadd.s32 %s89, 1
    %p93 = scmp.eq.s32.totalorder %s13, 1
    %p94 = scmp.ne.s32.totalorder %s89, %s91
    %p95 = scmp.eq.s32.totalorder %s13, 0
    %p96 = por %p94, %p95
    %p97 = scmp.ne.s32.totalorder %s89, %s91
    %p98 = scmp.eq.s32.totalorder %s18, 1
    %p99 = por %p97, %p98
    %p100 = scmp.ne.s32.totalorder %s91, %s92
    %p101 = scmp.eq.s32.totalorder %s18, 0
    %p102 = por %p100, %p101
    %p103 = scmp.ne.s32.totalorder %s91, %s92
    %p104 = scmp.eq.s32.totalorder %s19, 1
    %p105 = por %p103, %p104
    %p107 = scmp.ne.s32.totalorder %s92, %s106
    %p108 = scmp.eq.s32.totalorder %s19, 0
    %p109 = por %p107, %p108
    %s111 = sadd.s32 %s110, 1
    %p114 = scmp.eq.s32.totalorder %s13, 1
    %p115 = scmp.ne.s32.totalorder %s110, %s112
    %p116 = scmp.eq.s32.totalorder %s13, 0
    %p117 = por %p115, %p116
    %p118 = scmp.ne.s32.totalorder %s110, %s112
    %p119 = scmp.eq.s32.totalorder %s18, 1
    %p120 = por %p118, %p119
    %p121 = scmp.ne.s32.totalorder %s112, %s113
    %p122 = scmp.eq.s32.totalorder %s18, 0
    %p123 = por %p121, %p122
    %p124 = scmp.ne.s32.totalorder %s112, %s113
    %p125 = scmp.eq.s32.totalorder %s19, 1
    %p126 = por %p124, %p125
    %p128 = scmp.ne.s32.totalorder %s113, %s127
    %p129 = scmp.eq.s32.totalorder %s19, 0
    %p130 = por %p128, %p129
    %s132 = sadd.s32 %s131, 1
    %p135 = scmp.eq.s32.totalorder %s13, 1
    %p136 = scmp.ne.s32.totalorder %s131, %s133
    %p137 = scmp.eq.s32.totalorder %s13, 0
    %p138 = por %p136, %p137
    %p139 = scmp.ne.s32.totalorder %s131, %s133
    %p140 = scmp.eq.s32.totalorder %s18, 1
    %p141 = por %p139, %p140
    %p142 = scmp.ne.s32.totalorder %s133, %s134
    %p143 = scmp.eq.s32.totalorder %s18, 0
    %p144 = por %p142, %p143
    %p145 = scmp.ne.s32.totalorder %s133, %s134
    %p146 = scmp.eq.s32.totalorder %s19, 1
    %p147 = por %p145, %p146
    %p149 = scmp.ne.s32.totalorder %s134, %s148
    %p150 = scmp.eq.s32.totalorder %s19, 0
    %p151 = por %p149, %p150
    %s153 = sadd.s32 %s152, 1
    %p156 = scmp.eq.s32.totalorder %s13, 1
    %p157 = scmp.ne.s32.totalorder %s152, %s154
    %p158 = scmp.eq.s32.totalorder %s13, 0
    %p159 = por %p157, %p158
    %p160 = scmp.ne.s32.totalorder %s152, %s154
    %p161 = scmp.eq.s32.totalorder %s18, 1
    %p162 = por %p160, %p161
    %p163 = scmp.ne.s32.totalorder %s154, %s155
    %p164 = scmp.eq.s32.totalorder %s18, 0
    %p165 = por %p163, %p164
    %p166 = scmp.ne.s32.totalorder %s154, %s155
    %p167 = scmp.eq.s32.totalorder %s19, 1
    %p168 = por %p166, %p167
    %p170 = scmp.ne.s32.totalorder %s155, %s169
    %p171 = scmp.eq.s32.totalorder %s19, 0
    %p172 = por %p170, %p171
    %s173 = ssub.s32 %s13, %s20
    %p174 = scmp.eq.s32.totalorder %s173, 0
    %s176 = sadd.s32 %s175, 1
    %s177 = scalar_select %p174, %s175, %s176
    %p180 = pneg %p174
    %p181 = scmp.eq.s32.totalorder %s13, 1
    %p182 = por %p180, %p181
    %p183 = scmp.ne.s32.totalorder %s175, %s178
    %p184 = scmp.eq.s32.totalorder %s13, 0
    %p185 = por %p183, %p184
    %p186 = scmp.ne.s32.totalorder %s175, %s178
    %p187 = scmp.eq.s32.totalorder %s18, 1
    %p188 = por %p186, %p187
    %p189 = scmp.ne.s32.totalorder %s178, %s179
    %p190 = scmp.eq.s32.totalorder %s18, 0
    %p191 = por %p189, %p190
    %p192 = scmp.ne.s32.totalorder %s178, %s179
    %p193 = scmp.eq.s32.totalorder %s19, 1
    %p194 = por %p192, %p193
    %p196 = scmp.ne.s32.totalorder %s179, %s195
    %p197 = scmp.eq.s32.totalorder %s19, 0
    %p198 = por %p196, %p197
    %p199 = scmp.le.s32.totalorder 1, %s13
    %p200 = scmp.lt.s32.totalorder %s13, 3
    %p201 = pnand %p199, %p200
    %p202 = pneg %p201
    // Predicated region
    $region9: #{dpt_forward_moe.11} parent=5 // pred_check
      _
    $region10: #{dpt_forward_moe.11} parent=5 // pred_check_branch
      %204 = sbr.rel (%p201) target = $region12
    $region11: #{dpt_forward_moe.11} parent=5 // pred_region
      %s205 = ssub.s32 %s13, 1
      // Predicated region
      $region13: #{dpt_forward_moe.11} parent=11 // pred_check
        %p206 = pneg %p60
      $region14: #{dpt_forward_moe.11} parent=11 // pred_check_branch
        %208 = sbr.rel (%p206) target = $region16
      $region15: #{dpt_forward_moe.11} parent=11 // pred_region
        _
      $region16: #{dpt_forward_moe.11} parent=11 // pred_fallthru
        _
      // Predicated region
      $region17: #{dpt_forward_moe.11} parent=11 // pred_check
        %p209 = pneg %p81
      $region18: #{dpt_forward_moe.11} parent=11 // pred_check_branch
        %211 = sbr.rel (%p209) target = $region20
      $region19: #{dpt_forward_moe.11} parent=11 // pred_region
        _
      $region20: #{dpt_forward_moe.11} parent=11 // pred_fallthru
        _
      // Predicated region
      $region21: #{dpt_forward_moe.11} parent=11 // pred_check
        %p212 = pneg %p102
      $region22: #{dpt_forward_moe.11} parent=11 // pred_check_branch
        %214 = sbr.rel (%p212) target = $region24
      $region23: #{dpt_forward_moe.11} parent=11 // pred_region
        _
      $region24: #{dpt_forward_moe.11} parent=11 // pred_fallthru
        _
      // Predicated region
      $region25: #{dpt_forward_moe.11} parent=11 // pred_check
        %p215 = pneg %p123
      $region26: #{dpt_forward_moe.11} parent=11 // pred_check_branch
        %217 = sbr.rel (%p215) target = $region28
      $region27: #{dpt_forward_moe.11} parent=11 // pred_region
        _
      $region28: #{dpt_forward_moe.11} parent=11 // pred_fallthru
        _
      // Predicated region
      $region29: #{dpt_forward_moe.11} parent=11 // pred_check
        %p218 = pneg %p144
      $region30: #{dpt_forward_moe.11} parent=11 // pred_check_branch
        %220 = sbr.rel (%p218) target = $region32
      $region31: #{dpt_forward_moe.11} parent=11 // pred_region
        _
      $region32: #{dpt_forward_moe.11} parent=11 // pred_fallthru
        _
      // Predicated region
      $region33: #{dpt_forward_moe.11} parent=11 // pred_check
        %p221 = pneg %p165
      $region34: #{dpt_forward_moe.11} parent=11 // pred_check_branch
        %223 = sbr.rel (%p221) target = $region36
      $region35: #{dpt_forward_moe.11} parent=11 // pred_region
        _
      $region36: #{dpt_forward_moe.11} parent=11 // pred_fallthru
        _
    $region12: #{dpt_forward_moe.11} parent=5 // pred_fallthru
      _
    %p224 = scmp.lt.s32.totalorder %s13, 2
    // Predicated region
    $region37: #{dpt_forward_moe.11} parent=5 // pred_check
      %p225 = pneg %p224
    $region38: #{dpt_forward_moe.11} parent=5 // pred_check_branch
      %227 = sbr.rel (%p225) target = $region40
    $region39: #{dpt_forward_moe.11} parent=5 // pred_region
      // Predicated region
      $region41: #{dpt_forward_moe.11} parent=39 // pred_check
        %p228 = pneg %p33
      $region42: #{dpt_forward_moe.11} parent=39 // pred_check_branch
        %230 = sbr.rel (%p228) target = $region44
      $region43: #{dpt_forward_moe.11} parent=39 // pred_region
        %p231 = scmp.lt.s32.totalorder %s13, 1
        %s232 = scalar_select %p231, %s13, 1
        %s233 = smul.addr %s232, 4
        %s234 = smul.addr %s233, 8
        %s235 = scalar_lea.vmem %s0, %s234
      $region44: #{dpt_forward_moe.11} parent=39 // pred_fallthru
        _
    $region40: #{dpt_forward_moe.11} parent=5 // pred_fallthru
      _
    %p236 = scmp.le.s32.totalorder 1, %s13
    %p237 = scmp.lt.s32.totalorder %s13, 3
    %p238 = pnand %p236, %p237
    %p239 = pneg %p238
    // Predicated region
    $region45: #{dpt_forward_moe.11} parent=5 // pred_check
      _
    $region46: #{dpt_forward_moe.11} parent=5 // pred_check_branch
      %241 = sbr.rel (%p238) target = $region48
    $region47: #{dpt_forward_moe.11} parent=5 // pred_region
      %s242 = ssub.s32 %s13, 1
      %p243 = scmp.lt.s32.totalorder %s18, 1
      %s244 = scalar_select %p243, %s18, 1
      %s245 = smul.addr %s244, 4
      %s246 = smul.addr %s245, 8
      %s247 = scalar_lea.vmem %s0, %s246
      %p248 = pneg %p39
      %p249 = pneg %p36
      %p250 = pneg %p60
      %p251 = pneg %p57
      %p252 = pneg %p81
      %p253 = pneg %p78
      %p254 = pneg %p102
      %p255 = pneg %p99
      %p256 = pneg %p123
      %p257 = pneg %p120
      %p258 = pneg %p144
      %p259 = pneg %p141
      %p260 = pneg %p165
      %p261 = pneg %p162
      %p262 = pneg %p191
      %p263 = pneg %p188
      %p264 = scmp.lt.s32.totalorder %s18, 1
      %s265 = scalar_select %p264, %s18, 1
      %s266 = smul.addr %s265, 4
      %s267 = smul.addr %s266, 8
      %s268 = scalar_lea.vmem %s7, %s267
      %p269 = scmp.lt.s32.totalorder %s18, 1
      %s270 = scalar_select %p269, %s18, 1
      %s271 = smul.addr %s270, 4
      %s272 = smul.addr %s271, 8
      %s273 = scalar_lea.vmem %s0, %s272
      %p274 = scmp.lt.s32.totalorder %s18, 1
      %s275 = scalar_select %p274, %s18, 1
      %s276 = smul.addr %s275, 4
      %s277 = smul.addr %s276, 8
      %s278 = scalar_lea.vmem %s7, %s277
      %v280 = vld [vmem:[%s273] sm:$0xff]
      %v281 = vld [vmem:[%s273 + $0x8] sm:$0xff]
      %v282 = vld [vmem:[%s273 + $0x10] sm:$0xff]
      %v283 = vld [vmem:[%s273 + $0x18] sm:$0x1]
      %vm284 = vcmask 261120
      %v285 = vsel %vm284, %v280, 0.0
      %286 = vadd.xlane.f32.xlu0 %v285
      %v287 = vpop.xlane.xlu0 %286
      %v288 = vsel %vm284, %v281, 0.0
      %289 = vadd.xlane.f32.xlu0 %v288
      %v290 = vpop.xlane.xlu0 %289
      %v291 = vsel %vm284, %v282, 0.0
      %292 = vadd.xlane.f32.xlu0 %v291
      %v293 = vpop.xlane.xlu0 %292
      %vm294 = vcmask 253952
      %v295 = vsel %vm294, %v283, 0.0
      %296 = vadd.xlane.f32.xlu0 %v295
      %v297 = vpop.xlane.xlu0 %296
      %v298 = vrcp.pop 32.0
      %v299 = vmul.f32 32.0, %v298
      %v300 = vsub.f32 1.0, %v299
      %v301 = vmul.f32 %v298, %v300
      %v302 = vadd.f32 %v298, %v301
      %vm303 = vweird.f32 %v298
      %v304 = vsel %vm303, %v298, %v302
      %v305 = vmul.f32 %v287, %v304
      %v306 = vmul.f32 %v290, %v304
      %v307 = vmul.f32 %v293, %v304
      %v308 = vmul.f32 %v297, %v304
      %v309 = vsub.f32 %v280, %v305
      %v310 = vsub.f32 %v281, %v306
      %v311 = vsub.f32 %v282, %v307
      %v312 = vsub.f32 %v283, %v308
      %v313 = vmul.f32 %v309, %v309
      %v314 = vmul.f32 %v310, %v310
      %v315 = vmul.f32 %v311, %v311
      %v316 = vmul.f32 %v312, %v312
      %v317 = vsel %vm284, %v313, 0.0
      %318 = vadd.xlane.f32.xlu0 %v317
      %v319 = vpop.xlane.xlu0 %318
      %v320 = vsel %vm284, %v314, 0.0
      %321 = vadd.xlane.f32.xlu0 %v320
      %v322 = vpop.xlane.xlu0 %321
      %v323 = vsel %vm284, %v315, 0.0
      %324 = vadd.xlane.f32.xlu0 %v323
      %v325 = vpop.xlane.xlu0 %324
      %v326 = vsel %vm294, %v316, 0.0
      %327 = vadd.xlane.f32.xlu0 %v326
      %v328 = vpop.xlane.xlu0 %327
      %v329 = vmul.f32 %v319, %v304
      %v330 = vmul.f32 %v322, %v304
      %v331 = vmul.f32 %v325, %v304
      %v332 = vmul.f32 %v328, %v304
      %v333 = vadd.f32 %v329, 1e-05
      %v334 = vadd.f32 %v330, 1e-05
      %v335 = vadd.f32 %v331, 1e-05
      %v336 = vadd.f32 %v332, 1e-05
      %v337 = vrsqrt.pop %v333
      %v338 = vmul.f32 %v337, %v333
      %v339 = vmul.f32 %v338, %v337
      %v340 = vmul.f32 0.5, %v339
      %v341 = vsub.f32 1.5, %v340
      %v342 = vmul.f32 %v337, %v341
      %vm343 = vweird.f32 %v333
      %vm344 = vweird.f32 %v337
      %vm345 = vmor %vm343, %vm344
      %v346 = vsel %vm345, %v337, %v342
      %v347 = vrsqrt.pop %v334
      %v348 = vmul.f32 %v347, %v334
      %v349 = vmul.f32 %v348, %v347
      %v350 = vmul.f32 0.5, %v349
      %v351 = vsub.f32 1.5, %v350
      %v352 = vmul.f32 %v347, %v351
      %vm353 = vweird.f32 %v334
      %vm354 = vweird.f32 %v347
      %vm355 = vmor %vm353, %vm354
      %v356 = vsel %vm355, %v347, %v352
      %v357 = vrsqrt.pop %v335
      %v358 = vmul.f32 %v357, %v335
      %v359 = vmul.f32 %v358, %v357
      %v360 = vmul.f32 0.5, %v359
      %v361 = vsub.f32 1.5, %v360
      %v362 = vmul.f32 %v357, %v361
      %vm363 = vweird.f32 %v335
      %vm364 = vweird.f32 %v357
      %vm365 = vmor %vm363, %vm364
      %v366 = vsel %vm365, %v357, %v362
      %v367 = vrsqrt.pop %v336
      %v368 = vmul.f32 %v367, %v336
      %v369 = vmul.f32 %v368, %v367
      %v370 = vmul.f32 0.5, %v369
      %v371 = vsub.f32 1.5, %v370
      %v372 = vmul.f32 %v367, %v371
      %vm373 = vweird.f32 %v336
      %vm374 = vweird.f32 %v367
      %vm375 = vmor %vm373, %vm374
      %v376 = vsel %vm375, %v367, %v372
      %v377 = vmul.f32 %v309, %v346
      %v378 = vmul.f32 %v310, %v356
      %v379 = vmul.f32 %v311, %v366
      %v380 = vmul.f32 %v312, %v376
      %v381 = vld [vmem:[%s1] sm:$0x1]
      %v383 = vperm.slane %v381, 0
      %v385 = vmul.f32 %v377, %v383
      %v386 = vmul.f32 %v378, %v383
      %v387 = vmul.f32 %v379, %v383
      %v388 = vmul.f32 %v380, %v383
      %v389 = vld [vmem:[%s2] sm:$0x1]
      %v391 = vperm.slane %v389, 0
      %v393 = vadd.f32 %v385, %v391
      %v394 = vadd.f32 %v386, %v391
      %v395 = vadd.f32 %v387, %v391
      %v396 = vadd.f32 %v388, %v391
      %v397 = vpack.c.bf16 %v394, %v393
      %v398 = vpack.c.bf16 %v396, %v395
      %v399 = vld [vmem:[%s3] sm:$0xf]
      %v400 = vld [vmem:[%s3 + $0x4] sm:$0xf]
      %v401 = vld [vmem:[%s3 + $0x8] sm:$0xf]
      %v402 = vld [vmem:[%s3 + $0xc] sm:$0xf]
      %v403 = vld [vmem:[%s4] sm:$0x1]
      %v405 = vperm.slane %v403, 0
      %v411 = vunpack.c.l.b16 %v399
      %v412 = vunpack.c.l.b16 %v400
      %v413 = vunpack.c.l.b16 %v401
      %v414 = vunpack.c.l.b16 %v402
      %v415 = vpack.c.b16 %v412, %v411
      %v416 = vpack.c.b16 %v414, %v413
      %v420 = vsel %vm284, %v397, 0
      %v423 = vsel %vm284, %v398, 0
      %425 = vmatpush.bf16.msra.mxu0 0
      %426 = vmatpush.bf16.msra.mxu0 0
      %427 = vmatpush.bf16.msra.mxu0 0
      %428 = vmatpush.bf16.msra.mxu0 0
      %429 = vmatpush.bf16.msra.mxu0 0
      %430 = vmatpush.bf16.msra.mxu0 0
      %431 = vmatpush.bf16.msra.mxu0 %v416
      %432 = vmatpush.bf16.msra.mxu0 %v415
      %433 = vmatmul.bf16.gmra.mxu0 %v420
      %v434 = vpop.f32.mrf.mxu0
      %v435 = vadd.f32 %v405, %v434
      %v436 = vpop.f32.mrf.mxu0
      %v437 = vadd.f32 %v405, %v436
      %438 = vmatmul.bf16.gmra.mxu0 %v423
      %v439 = vpop.f32.mrf.mxu0
      %v440 = vadd.f32 %v405, %v439
      %v441 = vpop.f32.mrf.mxu0
      %v442 = vadd.f32 %v405, %v441
      %443 = vdwg.mxu0
      %v444 = vlaneseq
      %v445 = vshrl.u32 %v444, 7
      %v446 = vadd.s32 %v445, 8
      %v447 = vadd.s32 %v445, 16
      %v448 = vadd.s32 %v445, 24
      %v449 = vlaneseq
      %v450 = vand.u32 %v449, 127
      %vm451 = vcmp.ge.s32.totalorder %v445, %v450
      %vm452 = vcmp.ge.s32.totalorder %v446, %v450
      %vm453 = vcmp.ge.s32.totalorder %v447, %v450
      %vm454 = vcmp.ge.s32.totalorder %v448, %v450
      %v455 = vsel %vm451, 0.0, -1e+09
      %v456 = vsel %vm452, 0.0, -1e+09
      %v457 = vsel %vm453, 0.0, -1e+09
      %v458 = vsel %vm454, 0.0, -1e+09
      %v459 = vmul.f32 %v435, 0.25
      %v460 = vmul.f32 %v437, 0.25
      %v461 = vmul.f32 %v440, 0.25
      %v462 = vmul.f32 %v442, 0.25
      %v463 = vpack.c.bf16 %v460, %v459
      %v464 = vpack.c.bf16 %v462, %v461
      %v465 = vpack.c.bf16 %v437, %v435
      %v466 = vpack.c.bf16 %v442, %v440
      %469 = vrot.lane.b32.xlu0 %v465, 96
      %v470 = vpop.permute.xlu0 %469
      %471 = vrot.lane.b32.xlu0 %v466, 96
      %v472 = vpop.permute.xlu0 %471
      %vm473 = vcmask 130048
      %v475 = vsel %vm473, %v463, 0
      %v478 = vsel %vm473, %v464, 0
      %v481 = vsel %vm473, %v470, 0
      %v484 = vsel %vm473, %v472, 0
      %486 = vmatpush.bf16.xpose.msra.mxu0 0
      %487 = vmatpush.bf16.xpose.msra.mxu0 0
      %488 = vmatpush.bf16.xpose.msra.mxu0 0
      %489 = vmatpush.bf16.xpose.msra.mxu0 0
      %490 = vmatpush.bf16.xpose.msra.mxu0 0
      %491 = vmatpush.bf16.xpose.msra.mxu0 0
      %492 = vmatpush.bf16.xpose.msra.mxu0 %v484
      %493 = vmatpush.bf16.xpose.msra.mxu0 %v481
      %494 = vmatmul.bf16.gmra.mxu0 %v475
      %v495 = vpop.f32.mrf.mxu0
      %v496 = vadd.f32 %v455, %v495
      %v497 = vpop.f32.mrf.mxu0
      %v498 = vadd.f32 %v456, %v497
      %499 = vmatmul.bf16.gmra.mxu0 %v478
      %v500 = vpop.f32.mrf.mxu0
      %v501 = vadd.f32 %v457, %v500
      %v502 = vpop.f32.mrf.mxu0
      %v503 = vadd.f32 %v458, %v502
      %504 = vdwg.mxu0
      %vm505 = vcmask 203776
      %v506 = vsel %vm505, %v496, -inf
      %507 = vmax.xlane.f32.xlu0 %v506
      %v508 = vpop.xlane.xlu0 %507
      %v509 = vsel %vm505, %v498, -inf
      %510 = vmax.xlane.f32.xlu0 %v509
      %v511 = vpop.xlane.xlu0 %510
      %v512 = vsel %vm505, %v501, -inf
      %513 = vmax.xlane.f32.xlu0 %v512
      %v514 = vpop.xlane.xlu0 %513
      %vm515 = vcmask 196608
      %v516 = vsel %vm515, %v503, -inf
      %517 = vmax.xlane.f32.xlu0 %v516
      %v518 = vpop.xlane.xlu0 %517
      %v519 = vsub.f32 %v496, %v508
      %v520 = vsub.f32 %v498, %v511
      %v521 = vsub.f32 %v501, %v514
      %v522 = vsub.f32 %v503, %v518
      %v523 = vmul.f32 %v519, 1.442695
      %v524 = vpow.pop %v523
      %v525 = vmul.f32 %v520, 1.442695
      %v526 = vpow.pop %v525
      %v527 = vmul.f32 %v521, 1.442695
      %v528 = vpow.pop %v527
      %v529 = vmul.f32 %v522, 1.442695
      %v530 = vpow.pop %v529
      %v531 = vsel %vm505, %v524, 0.0
      %532 = vadd.xlane.f32.xlu0 %v531
      %v533 = vpop.xlane.xlu0 %532
      %v534 = vsel %vm505, %v526, 0.0
      %535 = vadd.xlane.f32.xlu0 %v534
      %v536 = vpop.xlane.xlu0 %535
      %v537 = vsel %vm505, %v528, 0.0
      %538 = vadd.xlane.f32.xlu0 %v537
      %v539 = vpop.xlane.xlu0 %538
      %v540 = vsel %vm515, %v530, 0.0
      %541 = vadd.xlane.f32.xlu0 %v540
      %v542 = vpop.xlane.xlu0 %541
      %v543 = vrcp.pop %v533
      %v544 = vrcp.pop %v536
      %v545 = vrcp.pop %v539
      %v546 = vrcp.pop %v542
      %v547 = vmul.f32 %v524, %v543
      %v548 = vmul.f32 %v526, %v544
      %v549 = vmul.f32 %v528, %v545
      %v550 = vmul.f32 %v530, %v546
      %v551 = vpack.c.bf16 %v548, %v547
      %v552 = vpack.c.bf16 %v550, %v549
      %553 = vrot.lane.b32.xlu0 %v465, 64
      %v554 = vpop.permute.xlu0 %553
      %555 = vrot.lane.b32.xlu0 %v466, 64
      %v556 = vpop.permute.xlu0 %555
      %v559 = vsel %vm505, %v551, 0
      %v562 = vsel %vm505, %v552, 0
      %vm564 = vcmask 1043456
      %vm565 = vcmask 1044480
      %v566 = vsel %vm564, 4294967295, 65535
      %v567 = vsel %vm565, %v566, 0
      %v569 = vand.u32 %v556, %v567
      %571 = vmatpush.bf16.msra.mxu0 0
      %572 = vmatpush.bf16.msra.mxu0 0
      %573 = vmatpush.bf16.msra.mxu0 0
      %574 = vmatpush.bf16.msra.mxu0 0
      %575 = vmatpush.bf16.msra.mxu0 0
      %576 = vmatpush.bf16.msra.mxu0 0
      %577 = vmatpush.bf16.msra.mxu0 %v569
      %578 = vmatpush.bf16.msra.mxu0 %v554
      %579 = vmatmul.bf16.gmra.mxu0 %v559
      %v580 = vpop.f32.mrf.mxu0
      %v581 = vadd.f32 0.0, %v580
      %v582 = vpop.f32.mrf.mxu0
      %v583 = vadd.f32 0.0, %v582
      %584 = vmatmul.bf16.gmra.mxu0 %v562
      %v585 = vpop.f32.mrf.mxu0
      %v586 = vadd.f32 0.0, %v585
      %v587 = vpop.f32.mrf.mxu0
      %v588 = vadd.f32 0.0, %v587
      %589 = vdwg.mxu0
      %v590 = vpack.c.bf16 %v583, %v581
      %v591 = vpack.c.bf16 %v588, %v586
      %v592 = vld [vmem:[%s5] sm:$0xf]
      %v593 = vld [vmem:[%s5 + $0x4] sm:$0xf]
      %596 = vrot.lane.b32.xlu0 %v463, 112
      %v597 = vpop.permute.xlu0 %596
      %598 = vrot.lane.b32.xlu0 %v464, 112
      %v599 = vpop.permute.xlu0 %598
      %600 = vrot.lane.b32.xlu0 %v465, 80
      %v601 = vpop.permute.xlu0 %600
      %602 = vrot.lane.b32.xlu0 %v466, 80
      %v603 = vpop.permute.xlu0 %602
      %v605 = vsel %vm473, %v597, 0
      %v608 = vsel %vm473, %v599, 0
      %v611 = vsel %vm473, %v601, 0
      %v614 = vsel %vm473, %v603, 0
      %616 = vmatpush.bf16.xpose.msra.mxu0 0
      %617 = vmatpush.bf16.xpose.msra.mxu0 0
      %618 = vmatpush.bf16.xpose.msra.mxu0 0
      %619 = vmatpush.bf16.xpose.msra.mxu0 0
      %620 = vmatpush.bf16.xpose.msra.mxu0 0
      %621 = vmatpush.bf16.xpose.msra.mxu0 0
      %622 = vmatpush.bf16.xpose.msra.mxu0 %v614
      %623 = vmatpush.bf16.xpose.msra.mxu0 %v611
      %624 = vmatmul.bf16.gmra.mxu0 %v605
      %v625 = vpop.f32.mrf.mxu0
      %v626 = vadd.f32 %v455, %v625
      %v627 = vpop.f32.mrf.mxu0
      %v628 = vadd.f32 %v456, %v627
      %629 = vmatmul.bf16.gmra.mxu0 %v608
      %v630 = vpop.f32.mrf.mxu0
      %v631 = vadd.f32 %v457, %v630
      %v632 = vpop.f32.mrf.mxu0
      %v633 = vadd.f32 %v458, %v632
      %634 = vdwg.mxu0
      %v635 = vsel %vm505, %v626, -inf
      %636 = vmax.xlane.f32.xlu0 %v635
      %v637 = vpop.xlane.xlu0 %636
      %v638 = vsel %vm505, %v628, -inf
      %639 = vmax.xlane.f32.xlu0 %v638
      %v640 = vpop.xlane.xlu0 %639
      %v641 = vsel %vm505, %v631, -inf
      %642 = vmax.xlane.f32.xlu0 %v641
      %v643 = vpop.xlane.xlu0 %642
      %v644 = vsel %vm515, %v633, -inf
      %645 = vmax.xlane.f32.xlu0 %v644
      %v646 = vpop.xlane.xlu0 %645
      %v647 = vsub.f32 %v626, %v637
      %v648 = vsub.f32 %v628, %v640
      %v649 = vsub.f32 %v631, %v643
      %v650 = vsub.f32 %v633, %v646
      %v651 = vmul.f32 %v647, 1.442695
      %v652 = vpow.pop %v651
      %v653 = vmul.f32 %v648, 1.442695
      %v654 = vpow.pop %v653
      %v655 = vmul.f32 %v649, 1.442695
      %v656 = vpow.pop %v655
      %v657 = vmul.f32 %v650, 1.442695
      %v658 = vpow.pop %v657
      %v659 = vsel %vm505, %v652, 0.0
      %660 = vadd.xlane.f32.xlu0 %v659
      %v661 = vpop.xlane.xlu0 %660
      %v662 = vsel %vm505, %v654, 0.0
      %663 = vadd.xlane.f32.xlu0 %v662
      %v664 = vpop.xlane.xlu0 %663
      %v665 = vsel %vm505, %v656, 0.0
      %666 = vadd.xlane.f32.xlu0 %v665
      %v667 = vpop.xlane.xlu0 %666
      %v668 = vsel %vm515, %v658, 0.0
      %669 = vadd.xlane.f32.xlu0 %v668
      %v670 = vpop.xlane.xlu0 %669
      %v671 = vrcp.pop %v661
      %v672 = vrcp.pop %v664
      %v673 = vrcp.pop %v667
      %v674 = vrcp.pop %v670
      %v675 = vmul.f32 %v652, %v671
      %v676 = vmul.f32 %v654, %v672
      %v677 = vmul.f32 %v656, %v673
      %v678 = vmul.f32 %v658, %v674
      %v679 = vpack.c.bf16 %v676, %v675
      %v680 = vpack.c.bf16 %v678, %v677
      %681 = vrot.lane.b32.xlu0 %v465, 48
      %v682 = vpop.permute.xlu0 %681
      %683 = vrot.lane.b32.xlu0 %v466, 48
      %v684 = vpop.permute.xlu0 %683
      %v687 = vsel %vm505, %v679, 0
      %v690 = vsel %vm505, %v680, 0
      %v693 = vand.u32 %v684, %v567
      %695 = vmatpush.bf16.msra.mxu0 0
      %696 = vmatpush.bf16.msra.mxu0 0
      %697 = vmatpush.bf16.msra.mxu0 0
      %698 = vmatpush.bf16.msra.mxu0 0
      %699 = vmatpush.bf16.msra.mxu0 0
      %700 = vmatpush.bf16.msra.mxu0 0
      %701 = vmatpush.bf16.msra.mxu0 %v693
      %702 = vmatpush.bf16.msra.mxu0 %v682
      %703 = vmatmul.bf16.gmra.mxu0 %v687
      %v704 = vpop.f32.mrf.mxu0
      %v705 = vadd.f32 0.0, %v704
      %v706 = vpop.f32.mrf.mxu0
      %v707 = vadd.f32 0.0, %v706
      %708 = vmatmul.bf16.gmra.mxu0 %v690
      %v709 = vpop.f32.mrf.mxu0
      %v710 = vadd.f32 0.0, %v709
      %v711 = vpop.f32.mrf.mxu0
      %v712 = vadd.f32 0.0, %v711
      %713 = vdwg.mxu0
      %v714 = vpack.c.bf16 %v707, %v705
      %v715 = vpack.c.bf16 %v712, %v710
      %v716 = vld [vmem:[%s5 + $0x8] sm:$0xf]
      %v717 = vld [vmem:[%s5 + $0xc] sm:$0xf]
      %v720 = vunpack.c.l.b16 %v716
      %v721 = vunpack.c.l.b16 %v717
      %v722 = vpack.c.b16 %v721, %v720
      %v725 = vsel %vm473, %v714, 0
      %v728 = vsel %vm473, %v715, 0
      %730 = vmatpush.bf16.msra.mxu0 0
      %731 = vmatpush.bf16.msra.mxu0 0
      %732 = vmatpush.bf16.msra.mxu0 0
      %733 = vmatpush.bf16.msra.mxu0 0
      %734 = vmatpush.bf16.msra.mxu0 0
      %735 = vmatpush.bf16.msra.mxu0 0
      %736 = vmatpush.bf16.msra.mxu0 0
      %737 = vmatpush.bf16.msra.mxu0 %v722
      %738 = vmatmul.bf16.gmra.mxu0 %v725
      %v739 = vpop.f32.mrf.mxu0
      %v740 = vadd.f32 0.0, %v739
      %v741 = vpop.f32.mrf.mxu0
      %v742 = vadd.f32 0.0, %v741
      %743 = vmatmul.bf16.gmra.mxu0 %v728
      %v744 = vpop.f32.mrf.mxu0
      %v745 = vadd.f32 0.0, %v744
      %v746 = vpop.f32.mrf.mxu0
      %v747 = vadd.f32 0.0, %v746
      %748 = vdwg.mxu0
      %v751 = vunpack.c.l.b16 %v592
      %v752 = vunpack.c.l.b16 %v593
      %v753 = vpack.c.b16 %v752, %v751
      %v756 = vsel %vm473, %v590, 0
      %v759 = vsel %vm473, %v591, 0
      %761 = vmatpush.bf16.msra.mxu0 0
      %762 = vmatpush.bf16.msra.mxu0 0
      %763 = vmatpush.bf16.msra.mxu0 0
      %764 = vmatpush.bf16.msra.mxu0 0
      %765 = vmatpush.bf16.msra.mxu0 0
      %766 = vmatpush.bf16.msra.mxu0 0
      %767 = vmatpush.bf16.msra.mxu0 0
      %768 = vmatpush.bf16.msra.mxu0 %v753
      %769 = vmatmul.bf16.gmra.mxu0 %v756
      %v770 = vpop.f32.mrf.mxu0
      %v771 = vadd.f32 %v740, %v770
      %v772 = vpop.f32.mrf.mxu0
      %v773 = vadd.f32 %v742, %v772
      %774 = vmatmul.bf16.gmra.mxu0 %v759
      %v775 = vpop.f32.mrf.mxu0
      %v776 = vadd.f32 %v745, %v775
      %v777 = vpop.f32.mrf.mxu0
      %v778 = vadd.f32 %v747, %v777
      %779 = vdwg.mxu0
      %v780 = vadd.f32 %v280, %v771
      %v781 = vadd.f32 %v281, %v773
      %v782 = vadd.f32 %v282, %v776
      %v783 = vadd.f32 %v283, %v778
      %v784 = vld [vmem:[%s6] sm:$0x1]
      %v786 = vperm.slane %v784, 0
      %v788 = vadd.f32 %v780, %v786
      %v789 = vadd.f32 %v781, %v786
      %v790 = vadd.f32 %v782, %v786
      %v791 = vadd.f32 %v783, %v786
      %792 = vst.msk [vmem:[%s278] sm:$0xff] %vm284, %v788
      %793 = vst.msk [vmem:[%s278 + $0x8] sm:$0xff] %vm284, %v789
      %794 = vst.msk [vmem:[%s278 + $0x10] sm:$0xff] %vm284, %v790
      %795 = vst.msk [vmem:[%s278 + $0x18] sm:$0x1] %vm294, %v791
      %p796 = scmp.lt.s32.totalorder %s18, 1
      %s797 = scalar_select %p796, %s18, 1
      %s798 = smul.addr %s797, 4
      %s799 = smul.addr %s798, 8
      %s800 = scalar_lea.vmem %s7, %s799
      // Predicated region
      $region49: #{dpt_forward_moe.11} parent=47 // pred_check
        %p801 = pneg %p188
      $region50: #{dpt_forward_moe.11} parent=47 // pred_check_branch
        %803 = sbr.rel (%p801) target = $region52
      $region51: #{dpt_forward_moe.11} parent=47 // pred_region
        _
      $region52: #{dpt_forward_moe.11} parent=47 // pred_fallthru
        _
    $region48: #{dpt_forward_moe.11} parent=5 // pred_fallthru
      _
    %p804 = scmp.le.s32.totalorder 2, %s13
    // Predicated region
    $region53: #{dpt_forward_moe.11} parent=5 // pred_check
      %p805 = pneg %p804
    $region54: #{dpt_forward_moe.11} parent=5 // pred_check_branch
      %807 = sbr.rel (%p805) target = $region56
    $region55: #{dpt_forward_moe.11} parent=5 // pred_region
      %s808 = ssub.s32 %s13, 2
      // Predicated region
      $region57: #{dpt_forward_moe.11} parent=55 // pred_check
        %p809 = pneg %p194
      $region58: #{dpt_forward_moe.11} parent=55 // pred_check_branch
        %811 = sbr.rel (%p809) target = $region60
      $region59: #{dpt_forward_moe.11} parent=55 // pred_region
        %p812 = scmp.lt.s32.totalorder %s19, 1
        %s813 = scalar_select %p812, %s19, 1
        %s814 = smul.addr %s813, 4
        %s815 = smul.addr %s814, 8
        %s816 = scalar_lea.vmem %s7, %s815
      $region60: #{dpt_forward_moe.11} parent=55 // pred_fallthru
        _
    $region56: #{dpt_forward_moe.11} parent=5 // pred_fallthru
      _
  $region6: #{dpt_forward_moe.11} parent=0 // loop_footer
    %s17 = sadd.s32 1, %s13
  $region7: #{dpt_forward_moe.11} parent=0 // loop_footer_branch
    %12 = sbr.rel target = $region3
  $region8: #{dpt_forward_moe.11} parent=0 // loop_exit
    _

// kernel: dpt_forward_moe.12
$region0: #{dpt_forward_moe.12}
  #allocation0 [shape = 'u32[]', space=smem, size = 0x4, offset = 0x4, fixed_abs, tag = 'smem constant byte address 0x4 - core index']
  #allocation1 [shape = 'u32[72,128]{1,0:T(1,128)}', space=vmem, size = 0x9000, scoped, tag = 'internal scratch']
  #allocation2 [shape = 'f32[56,32]{1,0:T(8,128)}', space=vmem, size = 0x7000, scoped, tag = 'scratch operand']
  #allocation3 [shape = 'f32[56,4]{1,0:T(8,128)}', space=vmem, size = 0x7000, scoped, tag = 'scratch operand']
  #allocation4 [shape = 'f32[56,32]{1,0:T(8,128)}', space=vmem, size = 0x7000, scoped, tag = 'scratch operand']
  %s0 = inlined_call_operand.vmem [shape: f32[56,32], index: 0, kind: input, shape index: {}]
  %s1 = inlined_call_operand.vmem [shape: f32[1,32], index: 1, kind: input, shape index: {}]
  %s2 = inlined_call_operand.vmem [shape: f32[1,32], index: 2, kind: input, shape index: {}]
  %s3 = inlined_call_operand.vmem [shape: bf16[32,4], index: 3, kind: input, shape index: {}]
  %s4 = inlined_call_operand.vmem [shape: f32[1,4], index: 4, kind: input, shape index: {}]
  %s5 = inlined_call_operand.vmem [shape: bf16[4,32,64], index: 5, kind: input, shape index: {}]
  %s6 = inlined_call_operand.vmem [shape: f32[4,1,64], index: 6, kind: input, shape index: {}]
  %s7 = inlined_call_operand.vmem [shape: bf16[4,64,32], index: 7, kind: input, shape index: {}]
  %s8 = inlined_call_operand.vmem [shape: f32[4,1,32], index: 8, kind: input, shape index: {}]
  %s9 = inlined_call_operand.vmem [shape: f32[56,32], index: 9, kind: output, shape index: {0}]
  %s10 = inlined_call_operand.vmem [shape: f32[56,4], index: 10, kind: output, shape index: {1}]
  %11 = xla_tuple %s9, %s10
  %s12 = sld [smem:[#allocation0]]
  $region85: #{dpt_forward_moe.12} parent=0
    _
  %s14 = ssub.s32 1, %s12
  %s15 = scalar_select 0, %s14, %s12
  loop: start=0, step=1, limit=6
  $region2: #{dpt_forward_moe.12} parent=0 // loop_pre_header
    _
  $region3: #{dpt_forward_moe.12} parent=0 // loop_header
    %s17 = sphi 0, %s21
    %p18 = scmp.ge.s32.totalorder %s17, 6
    %s24 = sphi 0, %s36
    %s25 = sphi 0, %s32
    %s26 = sphi 0, %s24
    %s27 = sphi 0, %s25
    %s28 = sphi 0, %s26
    %s29 = sphi 0, %s27
    %s39 = sphi 0, %s41
    %s42 = sphi 0, %s39
    %s43 = sphi 0, %s42
    %s59 = sphi 0, %s43
    %s63 = sphi 0, %s63
    %s65 = sphi 0, %s63
    %s66 = sphi 0, %s65
    %s80 = sphi 0, %s66
    %s84 = sphi 0, %s84
    %s86 = sphi 0, %s84
    %s87 = sphi 0, %s86
    %s101 = sphi 0, %s87
    %s105 = sphi 0, %s105
    %s107 = sphi 0, %s105
    %s108 = sphi 0, %s107
    %s122 = sphi 0, %s108
    %s126 = sphi 0, %s126
    %s128 = sphi 0, %s126
    %s129 = sphi 0, %s128
    %s143 = sphi 0, %s129
    %s149 = sphi 0, %s151
    %s152 = sphi 0, %s149
    %s153 = sphi 0, %s152
    %s169 = sphi 0, %s153
    %s175 = sphi 0, %s177
    %s178 = sphi 0, %s175
    %s179 = sphi 0, %s178
    %s195 = sphi 0, %s179
    %s201 = sphi 0, %s203
    %s204 = sphi 0, %s201
    %s205 = sphi 0, %s204
    %s221 = sphi 0, %s205
    %s227 = sphi 0, %s229
    %s230 = sphi 0, %s227
    %s231 = sphi 0, %s230
    %s247 = sphi 0, %s231
    %s253 = sphi 0, %s255
    %s256 = sphi 0, %s253
    %s257 = sphi 0, %s256
    %s273 = sphi 0, %s257
    %s279 = sphi 0, %s281
    %s282 = sphi 0, %s279
    %s283 = sphi 0, %s282
    %s299 = sphi 0, %s283
  $region4: #{dpt_forward_moe.12} parent=0 // loop_header_branch
    %20 = sbr.rel (%p18) target = $region8
  $region5: #{dpt_forward_moe.12} parent=0 // loop_body
    %s22 = ssub.s32 %s17, 1
    %s23 = ssub.s32 %s17, 2
    %s30 = sadd.s32 1, %s25
    %p31 = scmp.ge.s32.totalorder %s30, 4
    %s32 = scalar_select %p31, 0, %s30
    %s33 = sadd.s32 1, %s24
    %s34 = scalar_select %p31, %s33, %s24
    %p35 = scmp.ge.s32.totalorder %s34, 1
    %s36 = scalar_select %p35, 0, %s34
    %s37 = ssub.s32 %s24, %s36
    %p38 = scmp.eq.s32.totalorder %s37, 0
    %s40 = sadd.s32 %s39, 1
    %s41 = scalar_select %p38, %s39, %s40
    %p44 = pneg %p38
    %p45 = scmp.eq.s32.totalorder %s17, 3
    %p46 = por %p44, %p45
    %p47 = scmp.ne.s32.totalorder %s39, %s42
    %p48 = scmp.eq.s32.totalorder %s17, 0
    %p49 = por %p47, %p48
    %p50 = scmp.ne.s32.totalorder %s39, %s42
    %p51 = scmp.eq.s32.totalorder %s22, 3
    %p52 = por %p50, %p51
    %p53 = scmp.ne.s32.totalorder %s42, %s43
    %p54 = scmp.eq.s32.totalorder %s22, 0
    %p55 = por %p53, %p54
    %p56 = scmp.ne.s32.totalorder %s42, %s43
    %p57 = scmp.eq.s32.totalorder %s23, 3
    %p58 = por %p56, %p57
    %p60 = scmp.ne.s32.totalorder %s43, %s59
    %p61 = scmp.eq.s32.totalorder %s23, 0
    %p62 = por %p60, %p61
    %s64 = sadd.s32 %s63, 1
    %p67 = scmp.eq.s32.totalorder %s17, 3
    %p68 = scmp.ne.s32.totalorder %s63, %s65
    %p69 = scmp.eq.s32.totalorder %s17, 0
    %p70 = por %p68, %p69
    %p71 = scmp.ne.s32.totalorder %s63, %s65
    %p72 = scmp.eq.s32.totalorder %s22, 3
    %p73 = por %p71, %p72
    %p74 = scmp.ne.s32.totalorder %s65, %s66
    %p75 = scmp.eq.s32.totalorder %s22, 0
    %p76 = por %p74, %p75
    %p77 = scmp.ne.s32.totalorder %s65, %s66
    %p78 = scmp.eq.s32.totalorder %s23, 3
    %p79 = por %p77, %p78
    %p81 = scmp.ne.s32.totalorder %s66, %s80
    %p82 = scmp.eq.s32.totalorder %s23, 0
    %p83 = por %p81, %p82
    %s85 = sadd.s32 %s84, 1
    %p88 = scmp.eq.s32.totalorder %s17, 3
    %p89 = scmp.ne.s32.totalorder %s84, %s86
    %p90 = scmp.eq.s32.totalorder %s17, 0
    %p91 = por %p89, %p90
    %p92 = scmp.ne.s32.totalorder %s84, %s86
    %p93 = scmp.eq.s32.totalorder %s22, 3
    %p94 = por %p92, %p93
    %p95 = scmp.ne.s32.totalorder %s86, %s87
    %p96 = scmp.eq.s32.totalorder %s22, 0
    %p97 = por %p95, %p96
    %p98 = scmp.ne.s32.totalorder %s86, %s87
    %p99 = scmp.eq.s32.totalorder %s23, 3
    %p100 = por %p98, %p99
    %p102 = scmp.ne.s32.totalorder %s87, %s101
    %p103 = scmp.eq.s32.totalorder %s23, 0
    %p104 = por %p102, %p103
    %s106 = sadd.s32 %s105, 1
    %p109 = scmp.eq.s32.totalorder %s17, 3
    %p110 = scmp.ne.s32.totalorder %s105, %s107
    %p111 = scmp.eq.s32.totalorder %s17, 0
    %p112 = por %p110, %p111
    %p113 = scmp.ne.s32.totalorder %s105, %s107
    %p114 = scmp.eq.s32.totalorder %s22, 3
    %p115 = por %p113, %p114
    %p116 = scmp.ne.s32.totalorder %s107, %s108
    %p117 = scmp.eq.s32.totalorder %s22, 0
    %p118 = por %p116, %p117
    %p119 = scmp.ne.s32.totalorder %s107, %s108
    %p120 = scmp.eq.s32.totalorder %s23, 3
    %p121 = por %p119, %p120
    %p123 = scmp.ne.s32.totalorder %s108, %s122
    %p124 = scmp.eq.s32.totalorder %s23, 0
    %p125 = por %p123, %p124
    %s127 = sadd.s32 %s126, 1
    %p130 = scmp.eq.s32.totalorder %s17, 3
    %p131 = scmp.ne.s32.totalorder %s126, %s128
    %p132 = scmp.eq.s32.totalorder %s17, 0
    %p133 = por %p131, %p132
    %p134 = scmp.ne.s32.totalorder %s126, %s128
    %p135 = scmp.eq.s32.totalorder %s22, 3
    %p136 = por %p134, %p135
    %p137 = scmp.ne.s32.totalorder %s128, %s129
    %p138 = scmp.eq.s32.totalorder %s22, 0
    %p139 = por %p137, %p138
    %p140 = scmp.ne.s32.totalorder %s128, %s129
    %p141 = scmp.eq.s32.totalorder %s23, 3
    %p142 = por %p140, %p141
    %p144 = scmp.ne.s32.totalorder %s129, %s143
    %p145 = scmp.eq.s32.totalorder %s23, 0
    %p146 = por %p144, %p145
    %s147 = ssub.s32 %s25, %s32
    %p148 = scmp.eq.s32.totalorder %s147, 0
    %s150 = sadd.s32 %s149, 1
    %s151 = scalar_select %p148, %s149, %s150
    %p154 = pneg %p148
    %p155 = scmp.eq.s32.totalorder %s17, 3
    %p156 = por %p154, %p155
    %p157 = scmp.ne.s32.totalorder %s149, %s152
    %p158 = scmp.eq.s32.totalorder %s17, 0
    %p159 = por %p157, %p158
    %p160 = scmp.ne.s32.totalorder %s149, %s152
    %p161 = scmp.eq.s32.totalorder %s22, 3
    %p162 = por %p160, %p161
    %p163 = scmp.ne.s32.totalorder %s152, %s153
    %p164 = scmp.eq.s32.totalorder %s22, 0
    %p165 = por %p163, %p164
    %p166 = scmp.ne.s32.totalorder %s152, %s153
    %p167 = scmp.eq.s32.totalorder %s23, 3
    %p168 = por %p166, %p167
    %p170 = scmp.ne.s32.totalorder %s153, %s169
    %p171 = scmp.eq.s32.totalorder %s23, 0
    %p172 = por %p170, %p171
    %s173 = ssub.s32 %s25, %s32
    %p174 = scmp.eq.s32.totalorder %s173, 0
    %s176 = sadd.s32 %s175, 1
    %s177 = scalar_select %p174, %s175, %s176
    %p180 = pneg %p174
    %p181 = scmp.eq.s32.totalorder %s17, 3
    %p182 = por %p180, %p181
    %p183 = scmp.ne.s32.totalorder %s175, %s178
    %p184 = scmp.eq.s32.totalorder %s17, 0
    %p185 = por %p183, %p184
    %p186 = scmp.ne.s32.totalorder %s175, %s178
    %p187 = scmp.eq.s32.totalorder %s22, 3
    %p188 = por %p186, %p187
    %p189 = scmp.ne.s32.totalorder %s178, %s179
    %p190 = scmp.eq.s32.totalorder %s22, 0
    %p191 = por %p189, %p190
    %p192 = scmp.ne.s32.totalorder %s178, %s179
    %p193 = scmp.eq.s32.totalorder %s23, 3
    %p194 = por %p192, %p193
    %p196 = scmp.ne.s32.totalorder %s179, %s195
    %p197 = scmp.eq.s32.totalorder %s23, 0
    %p198 = por %p196, %p197
    %s199 = ssub.s32 %s25, %s32
    %p200 = scmp.eq.s32.totalorder %s199, 0
    %s202 = sadd.s32 %s201, 1
    %s203 = scalar_select %p200, %s201, %s202
    %p206 = pneg %p200
    %p207 = scmp.eq.s32.totalorder %s17, 3
    %p208 = por %p206, %p207
    %p209 = scmp.ne.s32.totalorder %s201, %s204
    %p210 = scmp.eq.s32.totalorder %s17, 0
    %p211 = por %p209, %p210
    %p212 = scmp.ne.s32.totalorder %s201, %s204
    %p213 = scmp.eq.s32.totalorder %s22, 3
    %p214 = por %p212, %p213
    %p215 = scmp.ne.s32.totalorder %s204, %s205
    %p216 = scmp.eq.s32.totalorder %s22, 0
    %p217 = por %p215, %p216
    %p218 = scmp.ne.s32.totalorder %s204, %s205
    %p219 = scmp.eq.s32.totalorder %s23, 3
    %p220 = por %p218, %p219
    %p222 = scmp.ne.s32.totalorder %s205, %s221
    %p223 = scmp.eq.s32.totalorder %s23, 0
    %p224 = por %p222, %p223
    %s225 = ssub.s32 %s25, %s32
    %p226 = scmp.eq.s32.totalorder %s225, 0
    %s228 = sadd.s32 %s227, 1
    %s229 = scalar_select %p226, %s227, %s228
    %p232 = pneg %p226
    %p233 = scmp.eq.s32.totalorder %s17, 3
    %p234 = por %p232, %p233
    %p235 = scmp.ne.s32.totalorder %s227, %s230
    %p236 = scmp.eq.s32.totalorder %s17, 0
    %p237 = por %p235, %p236
    %p238 = scmp.ne.s32.totalorder %s227, %s230
    %p239 = scmp.eq.s32.totalorder %s22, 3
    %p240 = por %p238, %p239
    %p241 = scmp.ne.s32.totalorder %s230, %s231
    %p242 = scmp.eq.s32.totalorder %s22, 0
    %p243 = por %p241, %p242
    %p244 = scmp.ne.s32.totalorder %s230, %s231
    %p245 = scmp.eq.s32.totalorder %s23, 3
    %p246 = por %p244, %p245
    %p248 = scmp.ne.s32.totalorder %s231, %s247
    %p249 = scmp.eq.s32.totalorder %s23, 0
    %p250 = por %p248, %p249
    %s251 = ssub.s32 %s24, %s36
    %p252 = scmp.eq.s32.totalorder %s251, 0
    %s254 = sadd.s32 %s253, 1
    %s255 = scalar_select %p252, %s253, %s254
    %p258 = pneg %p252
    %p259 = scmp.eq.s32.totalorder %s17, 3
    %p260 = por %p258, %p259
    %p261 = scmp.ne.s32.totalorder %s253, %s256
    %p262 = scmp.eq.s32.totalorder %s17, 0
    %p263 = por %p261, %p262
    %p264 = scmp.ne.s32.totalorder %s253, %s256
    %p265 = scmp.eq.s32.totalorder %s22, 3
    %p266 = por %p264, %p265
    %p267 = scmp.ne.s32.totalorder %s256, %s257
    %p268 = scmp.eq.s32.totalorder %s22, 0
    %p269 = por %p267, %p268
    %p270 = scmp.ne.s32.totalorder %s256, %s257
    %p271 = scmp.eq.s32.totalorder %s23, 3
    %p272 = por %p270, %p271
    %p274 = scmp.ne.s32.totalorder %s257, %s273
    %p275 = scmp.eq.s32.totalorder %s23, 0
    %p276 = por %p274, %p275
    %s277 = ssub.s32 %s24, %s36
    %p278 = scmp.eq.s32.totalorder %s277, 0
    %s280 = sadd.s32 %s279, 1
    %s281 = scalar_select %p278, %s279, %s280
    %p284 = pneg %p278
    %p285 = scmp.eq.s32.totalorder %s17, 3
    %p286 = por %p284, %p285
    %p287 = scmp.ne.s32.totalorder %s279, %s282
    %p288 = scmp.eq.s32.totalorder %s17, 0
    %p289 = por %p287, %p288
    %p290 = scmp.ne.s32.totalorder %s279, %s282
    %p291 = scmp.eq.s32.totalorder %s22, 3
    %p292 = por %p290, %p291
    %p293 = scmp.ne.s32.totalorder %s282, %s283
    %p294 = scmp.eq.s32.totalorder %s22, 0
    %p295 = por %p293, %p294
    %p296 = scmp.ne.s32.totalorder %s282, %s283
    %p297 = scmp.eq.s32.totalorder %s23, 3
    %p298 = por %p296, %p297
    %p300 = scmp.ne.s32.totalorder %s283, %s299
    %p301 = scmp.eq.s32.totalorder %s23, 0
    %p302 = por %p300, %p301
    %p303 = scmp.le.s32.totalorder 1, %s17
    %p304 = scmp.lt.s32.totalorder %s17, 5
    %p305 = pnand %p303, %p304
    %p306 = pneg %p305
    // Predicated region
    $region9: #{dpt_forward_moe.12} parent=5 // pred_check
      _
    $region10: #{dpt_forward_moe.12} parent=5 // pred_check_branch
      %308 = sbr.rel (%p305) target = $region12
    $region11: #{dpt_forward_moe.12} parent=5 // pred_region
      %s309 = ssub.s32 %s17, 1
      // Predicated region
      $region13: #{dpt_forward_moe.12} parent=11 // pred_check
        %p310 = pneg %p55
      $region14: #{dpt_forward_moe.12} parent=11 // pred_check_branch
        %312 = sbr.rel (%p310) target = $region16
      $region15: #{dpt_forward_moe.12} parent=11 // pred_region
        %s313 = smul.u32 7, %s26
        %p314 = scmp.lt.s32.totalorder %s313, 6
        %s315 = scalar_select %p314, %s313, 6
        %s316 = smul.addr %s315, 8
        %s317 = scalar_lea.vmem %s0, %s316
        %s318 = smul.u32 7, %s26
      $region16: #{dpt_forward_moe.12} parent=11 // pred_fallthru
        _
      // Predicated region
      $region17: #{dpt_forward_moe.12} parent=11 // pred_check
        %p319 = pneg %p76
      $region18: #{dpt_forward_moe.12} parent=11 // pred_check_branch
        %321 = sbr.rel (%p319) target = $region20
      $region19: #{dpt_forward_moe.12} parent=11 // pred_region
        _
      $region20: #{dpt_forward_moe.12} parent=11 // pred_fallthru
        _
      // Predicated region
      $region21: #{dpt_forward_moe.12} parent=11 // pred_check
        %p322 = pneg %p97
      $region22: #{dpt_forward_moe.12} parent=11 // pred_check_branch
        %324 = sbr.rel (%p322) target = $region24
      $region23: #{dpt_forward_moe.12} parent=11 // pred_region
        _
      $region24: #{dpt_forward_moe.12} parent=11 // pred_fallthru
        _
      // Predicated region
      $region25: #{dpt_forward_moe.12} parent=11 // pred_check
        %p325 = pneg %p118
      $region26: #{dpt_forward_moe.12} parent=11 // pred_check_branch
        %327 = sbr.rel (%p325) target = $region28
      $region27: #{dpt_forward_moe.12} parent=11 // pred_region
        _
      $region28: #{dpt_forward_moe.12} parent=11 // pred_fallthru
        _
      // Predicated region
      $region29: #{dpt_forward_moe.12} parent=11 // pred_check
        %p328 = pneg %p139
      $region30: #{dpt_forward_moe.12} parent=11 // pred_check_branch
        %330 = sbr.rel (%p328) target = $region32
      $region31: #{dpt_forward_moe.12} parent=11 // pred_region
        _
      $region32: #{dpt_forward_moe.12} parent=11 // pred_fallthru
        _
    $region12: #{dpt_forward_moe.12} parent=5 // pred_fallthru
      _
    %p331 = scmp.lt.s32.totalorder %s17, 4
    // Predicated region
    $region33: #{dpt_forward_moe.12} parent=5 // pred_check
      %p332 = pneg %p331
    $region34: #{dpt_forward_moe.12} parent=5 // pred_check_branch
      %334 = sbr.rel (%p332) target = $region36
    $region35: #{dpt_forward_moe.12} parent=5 // pred_region
      // Predicated region
      $region37: #{dpt_forward_moe.12} parent=35 // pred_check
        %p335 = pneg %p159
      $region38: #{dpt_forward_moe.12} parent=35 // pred_check_branch
        %337 = sbr.rel (%p335) target = $region40
      $region39: #{dpt_forward_moe.12} parent=35 // pred_region
        %p338 = scmp.lt.s32.totalorder %s25, 3
        %s339 = scalar_select %p338, %s25, 3
        %s340 = smul.addr %s339, 4
        %s341 = smul.addr %s340, 4
        %s342 = scalar_lea.vmem %s5, %s341
      $region40: #{dpt_forward_moe.12} parent=35 // pred_fallthru
        _
      // Predicated region
      $region41: #{dpt_forward_moe.12} parent=35 // pred_check
        %p343 = pneg %p185
      $region42: #{dpt_forward_moe.12} parent=35 // pred_check_branch
        %345 = sbr.rel (%p343) target = $region44
      $region43: #{dpt_forward_moe.12} parent=35 // pred_region
        %p346 = scmp.lt.s32.totalorder %s25, 3
        %s347 = scalar_select %p346, %s25, 3
        %s348 = scalar_lea.vmem %s6, %s347
      $region44: #{dpt_forward_moe.12} parent=35 // pred_fallthru
        _
      // Predicated region
      $region45: #{dpt_forward_moe.12} parent=35 // pred_check
        %p349 = pneg %p211
      $region46: #{dpt_forward_moe.12} parent=35 // pred_check_branch
        %351 = sbr.rel (%p349) target = $region48
      $region47: #{dpt_forward_moe.12} parent=35 // pred_region
        %p352 = scmp.lt.s32.totalorder %s25, 3
        %s353 = scalar_select %p352, %s25, 3
        %s354 = smul.addr %s353, 8
        %s355 = smul.addr %s354, 4
        %s356 = scalar_lea.vmem %s7, %s355
      $region48: #{dpt_forward_moe.12} parent=35 // pred_fallthru
        _
      // Predicated region
      $region49: #{dpt_forward_moe.12} parent=35 // pred_check
        %p357 = pneg %p237
      $region50: #{dpt_forward_moe.12} parent=35 // pred_check_branch
        %359 = sbr.rel (%p357) target = $region52
      $region51: #{dpt_forward_moe.12} parent=35 // pred_region
        %p360 = scmp.lt.s32.totalorder %s25, 3
        %s361 = scalar_select %p360, %s25, 3
        %s362 = scalar_lea.vmem %s8, %s361
      $region52: #{dpt_forward_moe.12} parent=35 // pred_fallthru
        _
    $region36: #{dpt_forward_moe.12} parent=5 // pred_fallthru
      _
    %p363 = scmp.le.s32.totalorder 1, %s17
    %p364 = scmp.lt.s32.totalorder %s17, 5
    %p365 = pnand %p363, %p364
    %p366 = pneg %p365
    // Predicated region
    $region53: #{dpt_forward_moe.12} parent=5 // pred_check
      _
    $region54: #{dpt_forward_moe.12} parent=5 // pred_check_branch
      %368 = sbr.rel (%p365) target = $region56
    $region55: #{dpt_forward_moe.12} parent=5 // pred_region
      %s369 = ssub.s32 %s17, 1
      %s370 = smul.u32 7, %s26
      %p371 = scmp.lt.s32.totalorder %s370, 6
      %s372 = scalar_select %p371, %s370, 6
      %s373 = smul.addr %s372, 8
      %s374 = scalar_lea.vmem %s0, %s373
      %p375 = pneg %p55
      %p376 = pneg %p52
      %p377 = pneg %p76
      %p378 = pneg %p73
      %p379 = pneg %p97
      %p380 = pneg %p94
      %p381 = pneg %p118
      %p382 = pneg %p115
      %p383 = pneg %p139
      %p384 = pneg %p136
      %p385 = scmp.lt.s32.totalorder %s27, 3
      %s386 = scalar_select %p385, %s27, 3
      %s387 = smul.addr %s386, 4
      %s388 = smul.addr %s387, 4
      %s389 = scalar_lea.vmem %s5, %s388
      %p390 = pneg %p165
      %p391 = pneg %p162
      %p392 = scmp.lt.s32.totalorder %s27, 3
      %s393 = scalar_select %p392, %s27, 3
      %s394 = scalar_lea.vmem %s6, %s393
      %p395 = pneg %p191
      %p396 = pneg %p188
      %p397 = scmp.lt.s32.totalorder %s27, 3
      %s398 = scalar_select %p397, %s27, 3
      %s399 = smul.addr %s398, 8
      %s400 = smul.addr %s399, 4
      %s401 = scalar_lea.vmem %s7, %s400
      %p402 = pneg %p217
      %p403 = pneg %p214
      %p404 = scmp.lt.s32.totalorder %s27, 3
      %s405 = scalar_select %p404, %s27, 3
      %s406 = scalar_lea.vmem %s8, %s405
      %p407 = pneg %p243
      %p408 = pneg %p240
      %p409 = pneg %p269
      %p410 = pneg %p266
      %s411 = smul.u32 7, %s26
      %p412 = scmp.lt.s32.totalorder %s411, 6
      %s413 = scalar_select %p412, %s411, 6
      %s414 = smul.addr %s413, 8
      %s415 = scalar_lea.vmem %s9, %s414
      %p416 = pneg %p295
      %p417 = pneg %p292
      %s418 = smul.u32 7, %s26
      %p419 = scmp.lt.s32.totalorder %s418, 6
      %s420 = scalar_select %p419, %s418, 6
      %s421 = smul.addr %s420, 8
      %s422 = scalar_lea.vmem %s10, %s421
      %s423 = smul.u32 7, %s26
      %p424 = scmp.lt.s32.totalorder %s423, 6
      %s425 = scalar_select %p424, %s423, 6
      %s426 = smul.addr %s425, 8
      %s427 = scalar_lea.vmem %s0, %s426
      %s428 = smul.u32 7, %s26
      %p429 = scmp.lt.s32.totalorder %s27, 3
      %s430 = scalar_select %p429, %s27, 3
      %s431 = smul.addr %s430, 4
      %s432 = smul.addr %s431, 4
      %s433 = scalar_lea.vmem %s5, %s432
      %p434 = scmp.lt.s32.totalorder %s27, 3
      %s435 = scalar_select %p434, %s27, 3
      %s436 = scalar_lea.vmem %s6, %s435
      %p437 = scmp.lt.s32.totalorder %s27, 3
      %s438 = scalar_select %p437, %s27, 3
      %s439 = smul.addr %s438, 8
      %s440 = smul.addr %s439, 4
      %s441 = scalar_lea.vmem %s7, %s440
      %p442 = scmp.lt.s32.totalorder %s27, 3
      %s443 = scalar_select %p442, %s27, 3
      %s444 = scalar_lea.vmem %s8, %s443
      %s445 = smul.u32 7, %s26
      %p446 = scmp.lt.s32.totalorder %s445, 6
      %s447 = scalar_select %p446, %s445, 6
      %s448 = smul.addr %s447, 8
      %s449 = scalar_lea.vmem %s9, %s448
      %s450 = smul.u32 7, %s26
      %s451 = smul.u32 7, %s26
      %p452 = scmp.lt.s32.totalorder %s451, 6
      %s453 = scalar_select %p452, %s451, 6
      %s454 = smul.addr %s453, 8
      %s455 = scalar_lea.vmem %s10, %s454
      %s456 = smul.u32 7, %s26
      %p458 = scmp.eq.s32.totalorder %s27, 0
      // Predicated region
      $region57: #{dpt_forward_moe.12} parent=55 // pred_check
        %p459 = pneg %p458
      $region58: #{dpt_forward_moe.12} parent=55 // pred_check_branch
        %461 = sbr.rel (%p459) target = $region60
      $region59: #{dpt_forward_moe.12} parent=55 // pred_region
        %v462 = vld [vmem:[%s427] sm:$0xff]
        %v463 = vld [vmem:[%s427 + $0x8] sm:$0xff]
        %v464 = vld [vmem:[%s427 + $0x10] sm:$0xff]
        %v465 = vld [vmem:[%s427 + $0x18] sm:$0xff]
        %v466 = vld [vmem:[%s427 + $0x20] sm:$0xff]
        %v467 = vld [vmem:[%s427 + $0x28] sm:$0xff]
        %v468 = vld [vmem:[%s427 + $0x30] sm:$0xff]
        %vm469 = vcmask 261120
        %v470 = vsel %vm469, %v462, 0.0
        %471 = vadd.xlane.f32.xlu0 %v470
        %v472 = vpop.xlane.xlu0 %471
        %v473 = vsel %vm469, %v463, 0.0
        %474 = vadd.xlane.f32.xlu0 %v473
        %v475 = vpop.xlane.xlu0 %474
        %v476 = vsel %vm469, %v464, 0.0
        %477 = vadd.xlane.f32.xlu0 %v476
        %v478 = vpop.xlane.xlu0 %477
        %v479 = vsel %vm469, %v465, 0.0
        %480 = vadd.xlane.f32.xlu0 %v479
        %v481 = vpop.xlane.xlu0 %480
        %v482 = vsel %vm469, %v466, 0.0
        %483 = vadd.xlane.f32.xlu0 %v482
        %v484 = vpop.xlane.xlu0 %483
        %v485 = vsel %vm469, %v467, 0.0
        %486 = vadd.xlane.f32.xlu0 %v485
        %v487 = vpop.xlane.xlu0 %486
        %v488 = vsel %vm469, %v468, 0.0
        %489 = vadd.xlane.f32.xlu0 %v488
        %v490 = vpop.xlane.xlu0 %489
        %v491 = vrcp.pop 32.0
        %v492 = vmul.f32 32.0, %v491
        %v493 = vsub.f32 1.0, %v492
        %v494 = vmul.f32 %v491, %v493
        %v495 = vadd.f32 %v491, %v494
        %vm496 = vweird.f32 %v491
        %v497 = vsel %vm496, %v491, %v495
        %v498 = vmul.f32 %v472, %v497
        %v499 = vmul.f32 %v475, %v497
        %v500 = vmul.f32 %v478, %v497
        %v501 = vmul.f32 %v481, %v497
        %v502 = vmul.f32 %v484, %v497
        %v503 = vmul.f32 %v487, %v497
        %v504 = vmul.f32 %v490, %v497
        %v505 = vsub.f32 %v462, %v498
        %v506 = vsub.f32 %v463, %v499
        %v507 = vsub.f32 %v464, %v500
        %v508 = vsub.f32 %v465, %v501
        %v509 = vsub.f32 %v466, %v502
        %v510 = vsub.f32 %v467, %v503
        %v511 = vsub.f32 %v468, %v504
        %v512 = vmul.f32 %v505, %v505
        %v513 = vmul.f32 %v506, %v506
        %v514 = vmul.f32 %v507, %v507
        %v515 = vmul.f32 %v508, %v508
        %v516 = vmul.f32 %v509, %v509
        %v517 = vmul.f32 %v510, %v510
        %v518 = vmul.f32 %v511, %v511
        %v519 = vsel %vm469, %v512, 0.0
        %520 = vadd.xlane.f32.xlu0 %v519
        %v521 = vpop.xlane.xlu0 %520
        %v522 = vsel %vm469, %v513, 0.0
        %523 = vadd.xlane.f32.xlu0 %v522
        %v524 = vpop.xlane.xlu0 %523
        %v525 = vsel %vm469, %v514, 0.0
        %526 = vadd.xlane.f32.xlu0 %v525
        %v527 = vpop.xlane.xlu0 %526
        %v528 = vsel %vm469, %v515, 0.0
        %529 = vadd.xlane.f32.xlu0 %v528
        %v530 = vpop.xlane.xlu0 %529
        %v531 = vsel %vm469, %v516, 0.0
        %532 = vadd.xlane.f32.xlu0 %v531
        %v533 = vpop.xlane.xlu0 %532
        %v534 = vsel %vm469, %v517, 0.0
        %535 = vadd.xlane.f32.xlu0 %v534
        %v536 = vpop.xlane.xlu0 %535
        %v537 = vsel %vm469, %v518, 0.0
        %538 = vadd.xlane.f32.xlu0 %v537
        %v539 = vpop.xlane.xlu0 %538
        %v540 = vmul.f32 %v521, %v497
        %v541 = vmul.f32 %v524, %v497
        %v542 = vmul.f32 %v527, %v497
        %v543 = vmul.f32 %v530, %v497
        %v544 = vmul.f32 %v533, %v497
        %v545 = vmul.f32 %v536, %v497
        %v546 = vmul.f32 %v539, %v497
        %v547 = vadd.f32 %v540, 1e-05
        %v548 = vadd.f32 %v541, 1e-05
        %v549 = vadd.f32 %v542, 1e-05
        %v550 = vadd.f32 %v543, 1e-05
        %v551 = vadd.f32 %v544, 1e-05
        %v552 = vadd.f32 %v545, 1e-05
        %v553 = vadd.f32 %v546, 1e-05
        %v554 = vrsqrt.pop %v547
        %v555 = vmul.f32 %v554, %v547
        %v556 = vmul.f32 %v555, %v554
        %v557 = vmul.f32 0.5, %v556
        %v558 = vsub.f32 1.5, %v557
        %v559 = vmul.f32 %v554, %v558
        %vm560 = vweird.f32 %v547
        %vm561 = vweird.f32 %v554
        %vm562 = vmor %vm560, %vm561
        %v563 = vsel %vm562, %v554, %v559
        %v564 = vrsqrt.pop %v548
        %v565 = vmul.f32 %v564, %v548
        %v566 = vmul.f32 %v565, %v564
        %v567 = vmul.f32 0.5, %v566
        %v568 = vsub.f32 1.5, %v567
        %v569 = vmul.f32 %v564, %v568
        %vm570 = vweird.f32 %v548
        %vm571 = vweird.f32 %v564
        %vm572 = vmor %vm570, %vm571
        %v573 = vsel %vm572, %v564, %v569
        %v574 = vrsqrt.pop %v549
        %v575 = vmul.f32 %v574, %v549
        %v576 = vmul.f32 %v575, %v574
        %v577 = vmul.f32 0.5, %v576
        %v578 = vsub.f32 1.5, %v577
        %v579 = vmul.f32 %v574, %v578
        %vm580 = vweird.f32 %v549
        %vm581 = vweird.f32 %v574
        %vm582 = vmor %vm580, %vm581
        %v583 = vsel %vm582, %v574, %v579
        %v584 = vrsqrt.pop %v550
        %v585 = vmul.f32 %v584, %v550
        %v586 = vmul.f32 %v585, %v584
        %v587 = vmul.f32 0.5, %v586
        %v588 = vsub.f32 1.5, %v587
        %v589 = vmul.f32 %v584, %v588
        %vm590 = vweird.f32 %v550
        %vm591 = vweird.f32 %v584
        %vm592 = vmor %vm590, %vm591
        %v593 = vsel %vm592, %v584, %v589
        %v594 = vrsqrt.pop %v551
        %v595 = vmul.f32 %v594, %v551
        %v596 = vmul.f32 %v595, %v594
        %v597 = vmul.f32 0.5, %v596
        %v598 = vsub.f32 1.5, %v597
        %v599 = vmul.f32 %v594, %v598
        %vm600 = vweird.f32 %v551
        %vm601 = vweird.f32 %v594
        %vm602 = vmor %vm600, %vm601
        %v603 = vsel %vm602, %v594, %v599
        %v604 = vrsqrt.pop %v552
        %v605 = vmul.f32 %v604, %v552
        %v606 = vmul.f32 %v605, %v604
        %v607 = vmul.f32 0.5, %v606
        %v608 = vsub.f32 1.5, %v607
        %v609 = vmul.f32 %v604, %v608
        %vm610 = vweird.f32 %v552
        %vm611 = vweird.f32 %v604
        %vm612 = vmor %vm610, %vm611
        %v613 = vsel %vm612, %v604, %v609
        %v614 = vrsqrt.pop %v553
        %v615 = vmul.f32 %v614, %v553
        %v616 = vmul.f32 %v615, %v614
        %v617 = vmul.f32 0.5, %v616
        %v618 = vsub.f32 1.5, %v617
        %v619 = vmul.f32 %v614, %v618
        %vm620 = vweird.f32 %v553
        %vm621 = vweird.f32 %v614
        %vm622 = vmor %vm620, %vm621
        %v623 = vsel %vm622, %v614, %v619
        %v624 = vmul.f32 %v505, %v563
        %v625 = vmul.f32 %v506, %v573
        %v626 = vmul.f32 %v507, %v583
        %v627 = vmul.f32 %v508, %v593
        %v628 = vmul.f32 %v509, %v603
        %v629 = vmul.f32 %v510, %v613
        %v630 = vmul.f32 %v511, %v623
        %v631 = vld [vmem:[%s1] sm:$0x1]
        %v633 = vperm.slane %v631, 0
        %v635 = vmul.f32 %v624, %v633
        %v636 = vmul.f32 %v625, %v633
        %v637 = vmul.f32 %v626, %v633
        %v638 = vmul.f32 %v627, %v633
        %v639 = vmul.f32 %v628, %v633
        %v640 = vmul.f32 %v629, %v633
        %v641 = vmul.f32 %v630, %v633
        %v642 = vld [vmem:[%s2] sm:$0x1]
        %v644 = vperm.slane %v642, 0
        %v646 = vadd.f32 %v635, %v644
        %v647 = vadd.f32 %v636, %v644
        %v648 = vadd.f32 %v637, %v644
        %v649 = vadd.f32 %v638, %v644
        %v650 = vadd.f32 %v639, %v644
        %v651 = vadd.f32 %v640, %v644
        %v652 = vadd.f32 %v641, %v644
        %653 = vst.msk [vmem:[#allocation2] sm:$0xff] %vm469, %v646
        %654 = vst.msk [vmem:[#allocation2 + $0x8] sm:$0xff] %vm469, %v647
        %655 = vst.msk [vmem:[#allocation2 + $0x10] sm:$0xff] %vm469, %v648
        %656 = vst.msk [vmem:[#allocation2 + $0x18] sm:$0xff] %vm469, %v649
        %657 = vst.msk [vmem:[#allocation2 + $0x20] sm:$0xff] %vm469, %v650
        %658 = vst.msk [vmem:[#allocation2 + $0x28] sm:$0xff] %vm469, %v651
        %659 = vst.msk [vmem:[#allocation2 + $0x30] sm:$0xff] %vm469, %v652
        %v660 = vpack.c.bf16 %v647, %v646
        %v661 = vpack.c.bf16 %v649, %v648
        %v662 = vpack.c.bf16 %v651, %v650
        %v663 = vpack.c.bf16 %v652, %v652
        %v664 = vld [vmem:[%s3] sm:$0xf]
        %v665 = vld [vmem:[%s3 + $0x4] sm:$0xf]
        %v666 = vld [vmem:[%s3 + $0x8] sm:$0xf]
        %v667 = vld [vmem:[%s3 + $0xc] sm:$0xf]
        %v668 = vld [vmem:[%s4] sm:$0x1]
        %v670 = vperm.slane %v668, 0
        %v676 = vunpack.c.l.b16 %v664
        %v677 = vunpack.c.l.b16 %v665
        %v678 = vunpack.c.l.b16 %v666
        %v679 = vunpack.c.l.b16 %v667
        %v680 = vpack.c.b16 %v677, %v676
        %v681 = vpack.c.b16 %v679, %v678
        %v685 = vsel %vm469, %v660, 0
        %v688 = vsel %vm469, %v661, 0
        %v691 = vsel %vm469, %v662, 0
        %v694 = vsel %vm469, %v663, 0
        %696 = vmatpush.bf16.msra.mxu0 0
        %697 = vmatpush.bf16.msra.mxu0 0
        %698 = vmatpush.bf16.msra.mxu0 0
        %699 = vmatpush.bf16.msra.mxu0 0
        %700 = vmatpush.bf16.msra.mxu0 0
        %701 = vmatpush.bf16.msra.mxu0 0
        %702 = vmatpush.bf16.msra.mxu0 %v681
        %703 = vmatpush.bf16.msra.mxu0 %v680
        %704 = vmatmul.bf16.gmra.mxu0 %v685
        %v705 = vpop.f32.mrf.mxu0
        %v706 = vadd.f32 %v670, %v705
        %v707 = vpop.f32.mrf.mxu0
        %v708 = vadd.f32 %v670, %v707
        %709 = vmatmul.bf16.gmra.mxu0 %v688
        %v710 = vpop.f32.mrf.mxu0
        %v711 = vadd.f32 %v670, %v710
        %v712 = vpop.f32.mrf.mxu0
        %v713 = vadd.f32 %v670, %v712
        %714 = vmatmul.bf16.gmra.mxu0 %v691
        %v715 = vpop.f32.mrf.mxu0
        %v716 = vadd.f32 %v670, %v715
        %v717 = vpop.f32.mrf.mxu0
        %v718 = vadd.f32 %v670, %v717
        %719 = vmatmul.bf16.gmra.mxu0 %v694
        %v720 = vpop.f32.mrf.mxu0
        %v721 = vadd.f32 %v670, %v720
        %v722 = vpop.f32.mrf.mxu0
        %723 = vdwg.mxu0
        %vm724 = vcmask 31744
        %v725 = vsel %vm724, %v706, -inf
        %726 = vmax.xlane.f32.xlu0 %v725
        %v727 = vpop.xlane.xlu0 %726
        %v728 = vsel %vm724, %v708, -inf
        %729 = vmax.xlane.f32.xlu0 %v728
        %v730 = vpop.xlane.xlu0 %729
        %v731 = vsel %vm724, %v711, -inf
        %732 = vmax.xlane.f32.xlu0 %v731
        %v733 = vpop.xlane.xlu0 %732
        %v734 = vsel %vm724, %v713, -inf
        %735 = vmax.xlane.f32.xlu0 %v734
        %v736 = vpop.xlane.xlu0 %735
        %v737 = vsel %vm724, %v716, -inf
        %738 = vmax.xlane.f32.xlu0 %v737
        %v739 = vpop.xlane.xlu0 %738
        %v740 = vsel %vm724, %v718, -inf
        %741 = vmax.xlane.f32.xlu0 %v740
        %v742 = vpop.xlane.xlu0 %741
        %v743 = vsel %vm724, %v721, -inf
        %744 = vmax.xlane.f32.xlu0 %v743
        %v745 = vpop.xlane.xlu0 %744
        %v746 = vsub.f32 %v706, %v727
        %v747 = vsub.f32 %v708, %v730
        %v748 = vsub.f32 %v711, %v733
        %v749 = vsub.f32 %v713, %v736
        %v750 = vsub.f32 %v716, %v739
        %v751 = vsub.f32 %v718, %v742
        %v752 = vsub.f32 %v721, %v745
        %v753 = vmul.f32 %v746, 1.442695
        %v754 = vpow.pop %v753
        %v755 = vmul.f32 %v747, 1.442695
        %v756 = vpow.pop %v755
        %v757 = vmul.f32 %v748, 1.442695
        %v758 = vpow.pop %v757
        %v759 = vmul.f32 %v749, 1.442695
        %v760 = vpow.pop %v759
        %v761 = vmul.f32 %v750, 1.442695
        %v762 = vpow.pop %v761
        %v763 = vmul.f32 %v751, 1.442695
        %v764 = vpow.pop %v763
        %v765 = vmul.f32 %v752, 1.442695
        %v766 = vpow.pop %v765
        %v767 = vsel %vm724, %v754, 0.0
        %768 = vadd.xlane.f32.xlu0 %v767
        %v769 = vpop.xlane.xlu0 %768
        %v770 = vsel %vm724, %v756, 0.0
        %771 = vadd.xlane.f32.xlu0 %v770
        %v772 = vpop.xlane.xlu0 %771
        %v773 = vsel %vm724, %v758, 0.0
        %774 = vadd.xlane.f32.xlu0 %v773
        %v775 = vpop.xlane.xlu0 %774
        %v776 = vsel %vm724, %v760, 0.0
        %777 = vadd.xlane.f32.xlu0 %v776
        %v778 = vpop.xlane.xlu0 %777
        %v779 = vsel %vm724, %v762, 0.0
        %780 = vadd.xlane.f32.xlu0 %v779
        %v781 = vpop.xlane.xlu0 %780
        %v782 = vsel %vm724, %v764, 0.0
        %783 = vadd.xlane.f32.xlu0 %v782
        %v784 = vpop.xlane.xlu0 %783
        %v785 = vsel %vm724, %v766, 0.0
        %786 = vadd.xlane.f32.xlu0 %v785
        %v787 = vpop.xlane.xlu0 %786
        %v788 = vrcp.pop %v769
        %v789 = vrcp.pop %v772
        %v790 = vrcp.pop %v775
        %v791 = vrcp.pop %v778
        %v792 = vrcp.pop %v781
        %v793 = vrcp.pop %v784
        %v794 = vrcp.pop %v787
        %v795 = vmul.f32 %v754, %v788
        %v796 = vmul.f32 %v756, %v789
        %v797 = vmul.f32 %v758, %v790
        %v798 = vmul.f32 %v760, %v791
        %v799 = vmul.f32 %v762, %v792
        %v800 = vmul.f32 %v764, %v793
        %v801 = vmul.f32 %v766, %v794
        %802 = vst.msk [vmem:[#allocation3] sm:$0xff] %vm724, %v795
        %803 = vst.msk [vmem:[#allocation3 + $0x8] sm:$0xff] %vm724, %v796
        %804 = vst.msk [vmem:[#allocation3 + $0x10] sm:$0xff] %vm724, %v797
        %805 = vst.msk [vmem:[#allocation3 + $0x18] sm:$0xff] %vm724, %v798
        %806 = vst.msk [vmem:[#allocation3 + $0x20] sm:$0xff] %vm724, %v799
        %807 = vst.msk [vmem:[#allocation3 + $0x28] sm:$0xff] %vm724, %v800
        %808 = vst.msk [vmem:[#allocation3 + $0x30] sm:$0xff] %vm724, %v801
        %809 = vst.msk [vmem:[#allocation4] sm:$0xff] %vm469, 0.0
        %810 = vst.msk [vmem:[#allocation4 + $0x8] sm:$0xff] %vm469, 0.0
        %811 = vst.msk [vmem:[#allocation4 + $0x10] sm:$0xff] %vm469, 0.0
        %812 = vst.msk [vmem:[#allocation4 + $0x18] sm:$0xff] %vm469, 0.0
        %813 = vst.msk [vmem:[#allocation4 + $0x20] sm:$0xff] %vm469, 0.0
        %814 = vst.msk [vmem:[#allocation4 + $0x28] sm:$0xff] %vm469, 0.0
        %815 = vst.msk [vmem:[#allocation4 + $0x30] sm:$0xff] %vm469, 0.0
      $region60: #{dpt_forward_moe.12} parent=55 // pred_fallthru
        _
      %v816 = vld [vmem:[#allocation2] sm:$0xff]
      %v817 = vld [vmem:[#allocation2 + $0x8] sm:$0xff]
      %v818 = vld [vmem:[#allocation2 + $0x10] sm:$0xff]
      %v819 = vld [vmem:[#allocation2 + $0x18] sm:$0xff]
      %v820 = vld [vmem:[#allocation2 + $0x20] sm:$0xff]
      %v821 = vld [vmem:[#allocation2 + $0x28] sm:$0xff]
      %v822 = vld [vmem:[#allocation2 + $0x30] sm:$0xff]
      %v823 = vpack.c.bf16 %v817, %v816
      %v824 = vpack.c.bf16 %v819, %v818
      %v825 = vpack.c.bf16 %v821, %v820
      %v826 = vpack.c.bf16 %v822, %v822
      %v827 = vld [vmem:[%s433] sm:$0xf]
      %v828 = vld [vmem:[%s433 + $0x4] sm:$0xf]
      %v829 = vld [vmem:[%s433 + $0x8] sm:$0xf]
      %v830 = vld [vmem:[%s433 + $0xc] sm:$0xf]
      %v831 = vld [vmem:[%s436] sm:$0x1]
      %v833 = vperm.slane %v831, 0
      %v839 = vunpack.c.l.b16 %v827
      %v840 = vunpack.c.l.b16 %v828
      %v841 = vunpack.c.l.b16 %v829
      %v842 = vunpack.c.l.b16 %v830
      %v843 = vpack.c.b16 %v840, %v839
      %v844 = vpack.c.b16 %v842, %v841
      %vm847 = vcmask 261120
      %v849 = vsel %vm847, %v823, 0
      %v852 = vsel %vm847, %v824, 0
      %v855 = vsel %vm847, %v825, 0
      %v858 = vsel %vm847, %v826, 0
      %860 = vmatpush.bf16.msra.mxu0 0
      %861 = vmatpush.bf16.msra.mxu0 0
      %862 = vmatpush.bf16.msra.mxu0 0
      %863 = vmatpush.bf16.msra.mxu0 0
      %864 = vmatpush.bf16.msra.mxu0 0
      %865 = vmatpush.bf16.msra.mxu0 0
      %866 = vmatpush.bf16.msra.mxu0 %v844
      %867 = vmatpush.bf16.msra.mxu0 %v843
      %868 = vmatmul.bf16.gmra.mxu0 %v849
      %v869 = vpop.f32.mrf.mxu0
      %v870 = vadd.f32 %v833, %v869
      %v871 = vpop.f32.mrf.mxu0
      %v872 = vadd.f32 %v833, %v871
      %873 = vmatmul.bf16.gmra.mxu0 %v852
      %v874 = vpop.f32.mrf.mxu0
      %v875 = vadd.f32 %v833, %v874
      %v876 = vpop.f32.mrf.mxu0
      %v877 = vadd.f32 %v833, %v876
      %878 = vmatmul.bf16.gmra.mxu0 %v855
      %v879 = vpop.f32.mrf.mxu0
      %v880 = vadd.f32 %v833, %v879
      %v881 = vpop.f32.mrf.mxu0
      %v882 = vadd.f32 %v833, %v881
      %883 = vmatmul.bf16.gmra.mxu0 %v858
      %v884 = vpop.f32.mrf.mxu0
      %v885 = vadd.f32 %v833, %v884
      %v886 = vpop.f32.mrf.mxu0
      %887 = vdwg.mxu0
      %v888 = vmul.f32 %v870, 0.5
      %v889 = vmul.f32 %v872, 0.5
      %v890 = vmul.f32 %v875, 0.5
      %v891 = vmul.f32 %v877, 0.5
      %v892 = vmul.f32 %v880, 0.5
      %v893 = vmul.f32 %v882, 0.5
      %v894 = vmul.f32 %v885, 0.5
      %v895 = vmul.f32 %v870, 0.044715
      %v896 = vmul.f32 %v872, 0.044715
      %v897 = vmul.f32 %v875, 0.044715
      %v898 = vmul.f32 %v877, 0.044715
      %v899 = vmul.f32 %v880, 0.044715
      %v900 = vmul.f32 %v882, 0.044715
      %v901 = vmul.f32 %v885, 0.044715
      %v902 = vmul.f32 %v895, %v870
      %v903 = vmul.f32 %v896, %v872
      %v904 = vmul.f32 %v897, %v875
      %v905 = vmul.f32 %v898, %v877
      %v906 = vmul.f32 %v899, %v880
      %v907 = vmul.f32 %v900, %v882
      %v908 = vmul.f32 %v901, %v885
      %v909 = vmul.f32 %v902, %v870
      %v910 = vmul.f32 %v903, %v872
      %v911 = vmul.f32 %v904, %v875
      %v912 = vmul.f32 %v905, %v877
      %v913 = vmul.f32 %v906, %v880
      %v914 = vmul.f32 %v907, %v882
      %v915 = vmul.f32 %v908, %v885
      %v916 = vadd.f32 %v870, %v909
      %v917 = vadd.f32 %v872, %v910
      %v918 = vadd.f32 %v875, %v911
      %v919 = vadd.f32 %v877, %v912
      %v920 = vadd.f32 %v880, %v913
      %v921 = vadd.f32 %v882, %v914
      %v922 = vadd.f32 %v885, %v915
      %v923 = vmul.f32 %v916, 0.7978846
      %v924 = vmul.f32 %v917, 0.7978846
      %v925 = vmul.f32 %v918, 0.7978846
      %v926 = vmul.f32 %v919, 0.7978846
      %v927 = vmul.f32 %v920, 0.7978846
      %v928 = vmul.f32 %v921, 0.7978846
      %v929 = vmul.f32 %v922, 0.7978846
      %v930 = vtanh.pop %v923
      %v931 = vtanh.pop %v924
      %v932 = vtanh.pop %v925
      %v933 = vtanh.pop %v926
      %v934 = vtanh.pop %v927
      %v935 = vtanh.pop %v928
      %v936 = vtanh.pop %v929
      %v937 = vadd.f32 %v930, 1.0
      %v938 = vadd.f32 %v931, 1.0
      %v939 = vadd.f32 %v932, 1.0
      %v940 = vadd.f32 %v933, 1.0
      %v941 = vadd.f32 %v934, 1.0
      %v942 = vadd.f32 %v935, 1.0
      %v943 = vadd.f32 %v936, 1.0
      %v944 = vmul.f32 %v888, %v937
      %v945 = vmul.f32 %v889, %v938
      %v946 = vmul.f32 %v890, %v939
      %v947 = vmul.f32 %v891, %v940
      %v948 = vmul.f32 %v892, %v941
      %v949 = vmul.f32 %v893, %v942
      %v950 = vmul.f32 %v894, %v943
      %v951 = vpack.c.bf16 %v945, %v944
      %v952 = vpack.c.bf16 %v947, %v946
      %v953 = vpack.c.bf16 %v949, %v948
      %v954 = vpack.c.bf16 %v950, %v950
      %v955 = vld [vmem:[%s441] sm:$0xf]
      %v956 = vld [vmem:[%s441 + $0x4] sm:$0xf]
      %v957 = vld [vmem:[%s441 + $0x8] sm:$0xf]
      %v958 = vld [vmem:[%s441 + $0xc] sm:$0xf]
      %v959 = vld [vmem:[%s441 + $0x10] sm:$0xf]
      %v960 = vld [vmem:[%s441 + $0x14] sm:$0xf]
      %v961 = vld [vmem:[%s441 + $0x18] sm:$0xf]
      %v962 = vld [vmem:[%s441 + $0x1c] sm:$0xf]
      %v963 = vld [vmem:[%s444] sm:$0x1]
      %v965 = vperm.slane %v963, 0
      %v975 = vunpack.c.l.b16 %v955
      %v976 = vunpack.c.l.b16 %v956
      %v977 = vunpack.c.l.b16 %v957
      %v978 = vunpack.c.l.b16 %v958
      %v979 = vunpack.c.l.b16 %v959
      %v980 = vunpack.c.l.b16 %v960
      %v981 = vunpack.c.l.b16 %v961
      %v982 = vunpack.c.l.b16 %v962
      %v983 = vpack.c.b16 %v976, %v975
      %v984 = vpack.c.b16 %v978, %v977
      %v985 = vpack.c.b16 %v980, %v979
      %v986 = vpack.c.b16 %v982, %v981
      %vm991 = vcmask 523264
      %v993 = vsel %vm991, %v951, 0
      %v996 = vsel %vm991, %v952, 0
      %v999 = vsel %vm991, %v953, 0
      %v1002 = vsel %vm991, %v954, 0
      %1004 = vmatpush.bf16.msra.mxu0 0
      %1005 = vmatpush.bf16.msra.mxu0 0
      %1006 = vmatpush.bf16.msra.mxu0 0
      %1007 = vmatpush.bf16.msra.mxu0 0
      %1008 = vmatpush.bf16.msra.mxu0 %v986
      %1009 = vmatpush.bf16.msra.mxu0 %v985
      %1010 = vmatpush.bf16.msra.mxu0 %v984
      %1011 = vmatpush.bf16.msra.mxu0 %v983
      %1012 = vmatmul.bf16.gmra.mxu0 %v993
      %v1013 = vpop.f32.mrf.mxu0
      %v1014 = vadd.f32 %v965, %v1013
      %v1015 = vpop.f32.mrf.mxu0
      %v1016 = vadd.f32 %v965, %v1015
      %1017 = vmatmul.bf16.gmra.mxu0 %v996
      %v1018 = vpop.f32.mrf.mxu0
      %v1019 = vadd.f32 %v965, %v1018
      %v1020 = vpop.f32.mrf.mxu0
      %v1021 = vadd.f32 %v965, %v1020
      %1022 = vmatmul.bf16.gmra.mxu0 %v999
      %v1023 = vpop.f32.mrf.mxu0
      %v1024 = vadd.f32 %v965, %v1023
      %v1025 = vpop.f32.mrf.mxu0
      %v1026 = vadd.f32 %v965, %v1025
      %1027 = vmatmul.bf16.gmra.mxu0 %v1002
      %v1028 = vpop.f32.mrf.mxu0
      %v1029 = vadd.f32 %v965, %v1028
      %v1030 = vpop.f32.mrf.mxu0
      %1031 = vdwg.mxu0
      %v1032 = vlaneseq
      %v1033 = vand.u32 %v1032, 127
      %v1034 = vstv %s27
      %vm1035 = vcmp.eq.s32.totalorder %v1033, %v1034
      %v1036 = vld [vmem:[#allocation3] sm:$0xff]
      %v1037 = vld [vmem:[#allocation3 + $0x8] sm:$0xff]
      %v1038 = vld [vmem:[#allocation3 + $0x10] sm:$0xff]
      %v1039 = vld [vmem:[#allocation3 + $0x18] sm:$0xff]
      %v1040 = vld [vmem:[#allocation3 + $0x20] sm:$0xff]
      %v1041 = vld [vmem:[#allocation3 + $0x28] sm:$0xff]
      %v1042 = vld [vmem:[#allocation3 + $0x30] sm:$0xff]
      %v1043 = vsel %vm1035, %v1036, 0.0
      %v1044 = vsel %vm1035, %v1037, 0.0
      %v1045 = vsel %vm1035, %v1038, 0.0
      %v1046 = vsel %vm1035, %v1039, 0.0
      %v1047 = vsel %vm1035, %v1040, 0.0
      %v1048 = vsel %vm1035, %v1041, 0.0
      %v1049 = vsel %vm1035, %v1042, 0.0
      %vm1050 = vcmask 31744
      %v1051 = vsel %vm1050, %v1043, 0.0
      %1052 = vadd.xlane.f32.xlu0 %v1051
      %v1053 = vpop.xlane.xlu0 %1052
      %v1054 = vsel %vm1050, %v1044, 0.0
      %1055 = vadd.xlane.f32.xlu0 %v1054
      %v1056 = vpop.xlane.xlu0 %1055
      %v1057 = vsel %vm1050, %v1045, 0.0
      %1058 = vadd.xlane.f32.xlu0 %v1057
      %v1059 = vpop.xlane.xlu0 %1058
      %v1060 = vsel %vm1050, %v1046, 0.0
      %1061 = vadd.xlane.f32.xlu0 %v1060
      %v1062 = vpop.xlane.xlu0 %1061
      %v1063 = vsel %vm1050, %v1047, 0.0
      %1064 = vadd.xlane.f32.xlu0 %v1063
      %v1065 = vpop.xlane.xlu0 %1064
      %v1066 = vsel %vm1050, %v1048, 0.0
      %1067 = vadd.xlane.f32.xlu0 %v1066
      %v1068 = vpop.xlane.xlu0 %1067
      %v1069 = vsel %vm1050, %v1049, 0.0
      %1070 = vadd.xlane.f32.xlu0 %v1069
      %v1071 = vpop.xlane.xlu0 %1070
      %v1072 = vld [vmem:[#allocation4] sm:$0xff]
      %v1073 = vld [vmem:[#allocation4 + $0x8] sm:$0xff]
      %v1074 = vld [vmem:[#allocation4 + $0x10] sm:$0xff]
      %v1075 = vld [vmem:[#allocation4 + $0x18] sm:$0xff]
      %v1076 = vld [vmem:[#allocation4 + $0x20] sm:$0xff]
      %v1077 = vld [vmem:[#allocation4 + $0x28] sm:$0xff]
      %v1078 = vld [vmem:[#allocation4 + $0x30] sm:$0xff]
      %v1079 = vmul.f32 %v1053, %v1014
      %v1080 = vmul.f32 %v1056, %v1016
      %v1081 = vmul.f32 %v1059, %v1019
      %v1082 = vmul.f32 %v1062, %v1021
      %v1083 = vmul.f32 %v1065, %v1024
      %v1084 = vmul.f32 %v1068, %v1026
      %v1085 = vmul.f32 %v1071, %v1029
      %v1086 = vadd.f32 %v1072, %v1079
      %v1087 = vadd.f32 %v1073, %v1080
      %v1088 = vadd.f32 %v1074, %v1081
      %v1089 = vadd.f32 %v1075, %v1082
      %v1090 = vadd.f32 %v1076, %v1083
      %v1091 = vadd.f32 %v1077, %v1084
      %v1092 = vadd.f32 %v1078, %v1085
      %1093 = vst.msk [vmem:[#allocation4] sm:$0xff] %vm847, %v1086
      %1094 = vst.msk [vmem:[#allocation4 + $0x8] sm:$0xff] %vm847, %v1087
      %1095 = vst.msk [vmem:[#allocation4 + $0x10] sm:$0xff] %vm847, %v1088
      %1096 = vst.msk [vmem:[#allocation4 + $0x18] sm:$0xff] %vm847, %v1089
      %1097 = vst.msk [vmem:[#allocation4 + $0x20] sm:$0xff] %vm847, %v1090
      %1098 = vst.msk [vmem:[#allocation4 + $0x28] sm:$0xff] %vm847, %v1091
      %1099 = vst.msk [vmem:[#allocation4 + $0x30] sm:$0xff] %vm847, %v1092
      %p1100 = scmp.eq.s32.totalorder %s27, 3
      // Predicated region
      $region61: #{dpt_forward_moe.12} parent=55 // pred_check
        %p1101 = pneg %p1100
      $region62: #{dpt_forward_moe.12} parent=55 // pred_check_branch
        %1103 = sbr.rel (%p1101) target = $region64
      $region63: #{dpt_forward_moe.12} parent=55 // pred_region
        %v1104 = vld [vmem:[%s427] sm:$0xff]
        %v1105 = vld [vmem:[%s427 + $0x8] sm:$0xff]
        %v1106 = vld [vmem:[%s427 + $0x10] sm:$0xff]
        %v1107 = vld [vmem:[%s427 + $0x18] sm:$0xff]
        %v1108 = vld [vmem:[%s427 + $0x20] sm:$0xff]
        %v1109 = vld [vmem:[%s427 + $0x28] sm:$0xff]
        %v1110 = vld [vmem:[%s427 + $0x30] sm:$0xff]
        %v1111 = vld [vmem:[#allocation4] sm:$0xff]
        %v1112 = vld [vmem:[#allocation4 + $0x8] sm:$0xff]
        %v1113 = vld [vmem:[#allocation4 + $0x10] sm:$0xff]
        %v1114 = vld [vmem:[#allocation4 + $0x18] sm:$0xff]
        %v1115 = vld [vmem:[#allocation4 + $0x20] sm:$0xff]
        %v1116 = vld [vmem:[#allocation4 + $0x28] sm:$0xff]
        %v1117 = vld [vmem:[#allocation4 + $0x30] sm:$0xff]
        %v1118 = vadd.f32 %v1104, %v1111
        %v1119 = vadd.f32 %v1105, %v1112
        %v1120 = vadd.f32 %v1106, %v1113
        %v1121 = vadd.f32 %v1107, %v1114
        %v1122 = vadd.f32 %v1108, %v1115
        %v1123 = vadd.f32 %v1109, %v1116
        %v1124 = vadd.f32 %v1110, %v1117
        %1125 = vst.msk [vmem:[%s449] sm:$0xff] %vm847, %v1118
        %1126 = vst.msk [vmem:[%s449 + $0x8] sm:$0xff] %vm847, %v1119
        %1127 = vst.msk [vmem:[%s449 + $0x10] sm:$0xff] %vm847, %v1120
        %1128 = vst.msk [vmem:[%s449 + $0x18] sm:$0xff] %vm847, %v1121
        %1129 = vst.msk [vmem:[%s449 + $0x20] sm:$0xff] %vm847, %v1122
        %1130 = vst.msk [vmem:[%s449 + $0x28] sm:$0xff] %vm847, %v1123
        %1131 = vst.msk [vmem:[%s449 + $0x30] sm:$0xff] %vm847, %v1124
        %s1132 = smul.u32 %s26, 56
        %v1133 = vlaneseq
        %v1134 = vshrl.u32 %v1133, 7
        %v1135 = vadd.s32 %v1134, 8
        %v1136 = vadd.s32 %v1134, 16
        %v1137 = vadd.s32 %v1134, 24
        %v1138 = vadd.s32 %v1134, 32
        %v1139 = vadd.s32 %v1134, 40
        %v1140 = vadd.s32 %v1134, 48
        %v1141 = vstv %s1132
        %v1142 = vadd.s32 %v1141, %v1134
        %v1143 = vadd.s32 %v1141, %v1135
        %v1144 = vadd.s32 %v1141, %v1136
        %v1145 = vadd.s32 %v1141, %v1137
        %v1146 = vadd.s32 %v1141, %v1138
        %v1147 = vadd.s32 %v1141, %v1139
        %v1148 = vadd.s32 %v1141, %v1140
        %vm1149 = vcmp.lt.s32.totalorder %v1142, 50
        %vm1150 = vcmp.lt.s32.totalorder %v1143, 50
        %vm1151 = vcmp.lt.s32.totalorder %v1144, 50
        %vm1152 = vcmp.lt.s32.totalorder %v1145, 50
        %vm1153 = vcmp.lt.s32.totalorder %v1146, 50
        %vm1154 = vcmp.lt.s32.totalorder %v1147, 50
        %vm1155 = vcmp.lt.s32.totalorder %v1148, 50
        %v1156 = vld [vmem:[#allocation3] sm:$0xff]
        %v1157 = vld [vmem:[#allocation3 + $0x8] sm:$0xff]
        %v1158 = vld [vmem:[#allocation3 + $0x10] sm:$0xff]
        %v1159 = vld [vmem:[#allocation3 + $0x18] sm:$0xff]
        %v1160 = vld [vmem:[#allocation3 + $0x20] sm:$0xff]
        %v1161 = vld [vmem:[#allocation3 + $0x28] sm:$0xff]
        %v1162 = vld [vmem:[#allocation3 + $0x30] sm:$0xff]
        %v1163 = vsel %vm1149, %v1156, 0.0
        %v1164 = vsel %vm1150, %v1157, 0.0
        %v1165 = vsel %vm1151, %v1158, 0.0
        %v1166 = vsel %vm1152, %v1159, 0.0
        %v1167 = vsel %vm1153, %v1160, 0.0
        %v1168 = vsel %vm1154, %v1161, 0.0
        %v1169 = vsel %vm1155, %v1162, 0.0
        %1170 = vst.msk [vmem:[%s455] sm:$0xff] %vm1050, %v1163
        %1171 = vst.msk [vmem:[%s455 + $0x8] sm:$0xff] %vm1050, %v1164
        %1172 = vst.msk [vmem:[%s455 + $0x10] sm:$0xff] %vm1050, %v1165
        %1173 = vst.msk [vmem:[%s455 + $0x18] sm:$0xff] %vm1050, %v1166
        %1174 = vst.msk [vmem:[%s455 + $0x20] sm:$0xff] %vm1050, %v1167
        %1175 = vst.msk [vmem:[%s455 + $0x28] sm:$0xff] %vm1050, %v1168
        %1176 = vst.msk [vmem:[%s455 + $0x30] sm:$0xff] %vm1050, %v1169
      $region64: #{dpt_forward_moe.12} parent=55 // pred_fallthru
        _
      %s1177 = smul.u32 7, %s26
      %p1178 = scmp.lt.s32.totalorder %s1177, 6
      %s1179 = scalar_select %p1178, %s1177, 6
      %s1180 = smul.addr %s1179, 8
      %s1181 = scalar_lea.vmem %s9, %s1180
      %s1182 = smul.u32 7, %s26
      %p1183 = scmp.lt.s32.totalorder %s1182, 6
      %s1184 = scalar_select %p1183, %s1182, 6
      %s1185 = smul.addr %s1184, 8
      %s1186 = scalar_lea.vmem %s10, %s1185
      // Predicated region
      $region65: #{dpt_forward_moe.12} parent=55 // pred_check
        %p1187 = pneg %p266
      $region66: #{dpt_forward_moe.12} parent=55 // pred_check_branch
        %1189 = sbr.rel (%p1187) target = $region68
      $region67: #{dpt_forward_moe.12} parent=55 // pred_region
        %s1190 = smul.u32 7, %s26
      $region68: #{dpt_forward_moe.12} parent=55 // pred_fallthru
        _
      // Predicated region
      $region69: #{dpt_forward_moe.12} parent=55 // pred_check
        %p1191 = pneg %p292
      $region70: #{dpt_forward_moe.12} parent=55 // pred_check_branch
        %1193 = sbr.rel (%p1191) target = $region72
      $region71: #{dpt_forward_moe.12} parent=55 // pred_region
        %s1194 = smul.u32 7, %s26
      $region72: #{dpt_forward_moe.12} parent=55 // pred_fallthru
        _
      // Predicated region
      $region73: #{dpt_forward_moe.12} parent=55 // pred_check
        %p1195 = pneg %p266
      $region74: #{dpt_forward_moe.12} parent=55 // pred_check_branch
        %1197 = sbr.rel (%p1195) target = $region76
      $region75: #{dpt_forward_moe.12} parent=55 // pred_region
        %s1198 = smul.u32 7, %s26
        %p1199 = scmp.lt.s32.totalorder %s1198, 6
        %s1200 = scalar_select %p1199, %s1198, 6
        %s1201 = smul.addr %s1200, 8
        %s1202 = scalar_lea.vmem %s9, %s1201
      $region76: #{dpt_forward_moe.12} parent=55 // pred_fallthru
        _
      // Predicated region
      $region77: #{dpt_forward_moe.12} parent=55 // pred_check
        %p1203 = pneg %p292
      $region78: #{dpt_forward_moe.12} parent=55 // pred_check_branch
        %1205 = sbr.rel (%p1203) target = $region80
      $region79: #{dpt_forward_moe.12} parent=55 // pred_region
        %s1206 = smul.u32 7, %s26
        %p1207 = scmp.lt.s32.totalorder %s1206, 6
        %s1208 = scalar_select %p1207, %s1206, 6
        %s1209 = smul.addr %s1208, 8
        %s1210 = scalar_lea.vmem %s10, %s1209
      $region80: #{dpt_forward_moe.12} parent=55 // pred_fallthru
        _
    $region56: #{dpt_forward_moe.12} parent=5 // pred_fallthru
      _
    %p1211 = scmp.le.s32.totalorder 2, %s17
    // Predicated region
    $region81: #{dpt_forward_moe.12} parent=5 // pred_check
      %p1212 = pneg %p1211
    $region82: #{dpt_forward_moe.12} parent=5 // pred_check_branch
      %1214 = sbr.rel (%p1212) target = $region84
    $region83: #{dpt_forward_moe.12} parent=5 // pred_region
      %s1215 = ssub.s32 %s17, 2
    $region84: #{dpt_forward_moe.12} parent=5 // pred_fallthru
      _
  $region6: #{dpt_forward_moe.12} parent=0 // loop_footer
    %s21 = sadd.s32 1, %s17
  $region7: #{dpt_forward_moe.12} parent=0 // loop_footer_branch
    %16 = sbr.rel target = $region3
  $region8: #{dpt_forward_moe.12} parent=0 // loop_exit
    _

// kernel: dpt_forward_moe.15
$region0: #{dpt_forward_moe.15}
  #allocation0 [shape = 'u32[]', space=smem, size = 0x4, offset = 0x4, fixed_abs, tag = 'smem constant byte address 0x4 - core index']
  #allocation1 [shape = 'u32[72,128]{1,0:T(1,128)}', space=vmem, size = 0x9000, scoped, tag = 'internal scratch']
  %s0 = inlined_call_operand.vmem [shape: f32[24,32], index: 0, kind: input, shape index: {}]
  %s1 = inlined_call_operand.vmem [shape: f32[1,32], index: 1, kind: input, shape index: {}]
  %s2 = inlined_call_operand.vmem [shape: f32[1,32], index: 2, kind: input, shape index: {}]
  %s3 = inlined_call_operand.vmem [shape: bf16[32,3], index: 3, kind: input, shape index: {}]
  %s4 = inlined_call_operand.vmem [shape: f32[1,3], index: 4, kind: input, shape index: {}]
  %s5 = inlined_call_operand.vmem [shape: f32[24,3], index: 5, kind: output, shape index: {}]
  %s6 = sld [smem:[#allocation0]]
  $region30: #{dpt_forward_moe.15} parent=0
    _
  %s8 = ssub.s32 1, %s6
  %s9 = scalar_select 0, %s8, %s6
  // Predicated region
  $region2: #{dpt_forward_moe.15} parent=0 // pred_check
    _
  $region3: #{dpt_forward_moe.15} parent=0 // pred_check_branch
    %11 = sbr.rel (0) target = $region5
  $region4: #{dpt_forward_moe.15} parent=0 // pred_region
    _
  $region5: #{dpt_forward_moe.15} parent=0 // pred_fallthru
    _
  // Predicated region
  $region6: #{dpt_forward_moe.15} parent=0 // pred_check
    _
  $region7: #{dpt_forward_moe.15} parent=0 // pred_check_branch
    %13 = sbr.rel (0) target = $region9
  $region8: #{dpt_forward_moe.15} parent=0 // pred_region
    _
  $region9: #{dpt_forward_moe.15} parent=0 // pred_fallthru
    _
  // Predicated region
  $region10: #{dpt_forward_moe.15} parent=0 // pred_check
    _
  $region11: #{dpt_forward_moe.15} parent=0 // pred_check_branch
    %15 = sbr.rel (0) target = $region13
  $region12: #{dpt_forward_moe.15} parent=0 // pred_region
    _
  $region13: #{dpt_forward_moe.15} parent=0 // pred_fallthru
    _
  // Predicated region
  $region14: #{dpt_forward_moe.15} parent=0 // pred_check
    _
  $region15: #{dpt_forward_moe.15} parent=0 // pred_check_branch
    %17 = sbr.rel (0) target = $region17
  $region16: #{dpt_forward_moe.15} parent=0 // pred_region
    _
  $region17: #{dpt_forward_moe.15} parent=0 // pred_fallthru
    _
  // Predicated region
  $region18: #{dpt_forward_moe.15} parent=0 // pred_check
    _
  $region19: #{dpt_forward_moe.15} parent=0 // pred_check_branch
    %19 = sbr.rel (0) target = $region21
  $region20: #{dpt_forward_moe.15} parent=0 // pred_region
    _
  $region21: #{dpt_forward_moe.15} parent=0 // pred_fallthru
    _
  %v21 = vld [vmem:[%s0] sm:$0xff]
  %v22 = vld [vmem:[%s0 + $0x8] sm:$0xff]
  %v23 = vld [vmem:[%s0 + $0x10] sm:$0xff]
  %vm24 = vcmask 261120
  %v25 = vsel %vm24, %v21, 0.0
  %26 = vadd.xlane.f32.xlu0 %v25
  %v27 = vpop.xlane.xlu0 %26
  %v28 = vsel %vm24, %v22, 0.0
  %29 = vadd.xlane.f32.xlu0 %v28
  %v30 = vpop.xlane.xlu0 %29
  %v31 = vsel %vm24, %v23, 0.0
  %32 = vadd.xlane.f32.xlu0 %v31
  %v33 = vpop.xlane.xlu0 %32
  %v34 = vrcp.pop 32.0
  %v35 = vmul.f32 32.0, %v34
  %v36 = vsub.f32 1.0, %v35
  %v37 = vmul.f32 %v34, %v36
  %v38 = vadd.f32 %v34, %v37
  %vm39 = vweird.f32 %v34
  %v40 = vsel %vm39, %v34, %v38
  %v41 = vmul.f32 %v27, %v40
  %v42 = vmul.f32 %v30, %v40
  %v43 = vmul.f32 %v33, %v40
  %v44 = vsub.f32 %v21, %v41
  %v45 = vsub.f32 %v22, %v42
  %v46 = vsub.f32 %v23, %v43
  %v47 = vmul.f32 %v44, %v44
  %v48 = vmul.f32 %v45, %v45
  %v49 = vmul.f32 %v46, %v46
  %v50 = vsel %vm24, %v47, 0.0
  %51 = vadd.xlane.f32.xlu0 %v50
  %v52 = vpop.xlane.xlu0 %51
  %v53 = vsel %vm24, %v48, 0.0
  %54 = vadd.xlane.f32.xlu0 %v53
  %v55 = vpop.xlane.xlu0 %54
  %v56 = vsel %vm24, %v49, 0.0
  %57 = vadd.xlane.f32.xlu0 %v56
  %v58 = vpop.xlane.xlu0 %57
  %v59 = vmul.f32 %v52, %v40
  %v60 = vmul.f32 %v55, %v40
  %v61 = vmul.f32 %v58, %v40
  %v62 = vadd.f32 %v59, 1e-05
  %v63 = vadd.f32 %v60, 1e-05
  %v64 = vadd.f32 %v61, 1e-05
  %v65 = vrsqrt.pop %v62
  %v66 = vmul.f32 %v65, %v62
  %v67 = vmul.f32 %v66, %v65
  %v68 = vmul.f32 0.5, %v67
  %v69 = vsub.f32 1.5, %v68
  %v70 = vmul.f32 %v65, %v69
  %vm71 = vweird.f32 %v62
  %vm72 = vweird.f32 %v65
  %vm73 = vmor %vm71, %vm72
  %v74 = vsel %vm73, %v65, %v70
  %v75 = vrsqrt.pop %v63
  %v76 = vmul.f32 %v75, %v63
  %v77 = vmul.f32 %v76, %v75
  %v78 = vmul.f32 0.5, %v77
  %v79 = vsub.f32 1.5, %v78
  %v80 = vmul.f32 %v75, %v79
  %vm81 = vweird.f32 %v63
  %vm82 = vweird.f32 %v75
  %vm83 = vmor %vm81, %vm82
  %v84 = vsel %vm83, %v75, %v80
  %v85 = vrsqrt.pop %v64
  %v86 = vmul.f32 %v85, %v64
  %v87 = vmul.f32 %v86, %v85
  %v88 = vmul.f32 0.5, %v87
  %v89 = vsub.f32 1.5, %v88
  %v90 = vmul.f32 %v85, %v89
  %vm91 = vweird.f32 %v64
  %vm92 = vweird.f32 %v85
  %vm93 = vmor %vm91, %vm92
  %v94 = vsel %vm93, %v85, %v90
  %v95 = vmul.f32 %v44, %v74
  %v96 = vmul.f32 %v45, %v84
  %v97 = vmul.f32 %v46, %v94
  %v98 = vld [vmem:[%s1] sm:$0x1]
  %v100 = vperm.slane %v98, 0
  %v102 = vmul.f32 %v95, %v100
  %v103 = vmul.f32 %v96, %v100
  %v104 = vmul.f32 %v97, %v100
  %v105 = vld [vmem:[%s2] sm:$0x1]
  %v107 = vperm.slane %v105, 0
  %v109 = vadd.f32 %v102, %v107
  %v110 = vadd.f32 %v103, %v107
  %v111 = vadd.f32 %v104, %v107
  %v112 = vpack.c.bf16 %v110, %v109
  %v113 = vpack.c.bf16 %v111, %v111
  %v114 = vld [vmem:[%s3] sm:$0xf]
  %v115 = vld [vmem:[%s3 + $0x4] sm:$0xf]
  %v116 = vld [vmem:[%s3 + $0x8] sm:$0xf]
  %v117 = vld [vmem:[%s3 + $0xc] sm:$0xf]
  %v118 = vld [vmem:[%s4] sm:$0x1]
  %v120 = vperm.slane %v118, 0
  %v126 = vunpack.c.l.b16 %v114
  %v127 = vunpack.c.l.b16 %v115
  %v128 = vunpack.c.l.b16 %v116
  %v129 = vunpack.c.l.b16 %v117
  %v130 = vpack.c.b16 %v127, %v126
  %v131 = vpack.c.b16 %v129, %v128
  %v135 = vsel %vm24, %v112, 0
  %v138 = vsel %vm24, %v113, 0
  %140 = vmatpush.bf16.msra.mxu0 0
  %141 = vmatpush.bf16.msra.mxu0 0
  %142 = vmatpush.bf16.msra.mxu0 0
  %143 = vmatpush.bf16.msra.mxu0 0
  %144 = vmatpush.bf16.msra.mxu0 0
  %145 = vmatpush.bf16.msra.mxu0 0
  %146 = vmatpush.bf16.msra.mxu0 %v131
  %147 = vmatpush.bf16.msra.mxu0 %v130
  %148 = vmatmul.bf16.gmra.mxu0 %v135
  %v149 = vpop.f32.mrf.mxu0
  %v150 = vadd.f32 %v120, %v149
  %v151 = vpop.f32.mrf.mxu0
  %v152 = vadd.f32 %v120, %v151
  %153 = vmatmul.bf16.gmra.mxu0 %v138
  %v154 = vpop.f32.mrf.mxu0
  %v155 = vadd.f32 %v120, %v154
  %v156 = vpop.f32.mrf.mxu0
  %157 = vdwg.mxu0
  %v158 = vtanh.pop %v150
  %v159 = vtanh.pop %v152
  %v160 = vtanh.pop %v155
  %vm161 = vcmask 23552
  %162 = vst.msk [vmem:[%s5] sm:$0xff] %vm161, %v158
  %163 = vst.msk [vmem:[%s5 + $0x8] sm:$0xff] %vm161, %v159
  %164 = vst.msk [vmem:[%s5 + $0x10] sm:$0xff] %vm161, %v160
  // Predicated region
  $region22: #{dpt_forward_moe.15} parent=0 // pred_check
    _
  $region23: #{dpt_forward_moe.15} parent=0 // pred_check_branch
    %166 = sbr.rel (0) target = $region25
  $region24: #{dpt_forward_moe.15} parent=0 // pred_region
    _
  $region25: #{dpt_forward_moe.15} parent=0 // pred_fallthru
    _
  // Predicated region
  $region26: #{dpt_forward_moe.15} parent=0 // pred_check
    _
  $region27: #{dpt_forward_moe.15} parent=0 // pred_check_branch
    %168 = sbr.rel (0) target = $region29
  $region28: #{dpt_forward_moe.15} parent=0 // pred_region
    _
  $region29: #{dpt_forward_moe.15} parent=0 // pred_fallthru
    _

</llo_original>
